<compile_context>
chip_gen: v7x
topology: tpu7x:2x2x1
jax: 0.10.0
libtpu: 0.0.40
codegen_flags: <defaults>
</compile_context>

<pallas_src>
import functools
import math

import numpy as np
import jax
import jax.numpy as jnp
from jax.experimental import pallas as pl
from jax.experimental.pallas import tpu as pltpu

# ---------------------------------------------------------------------------
# Module configuration
# ---------------------------------------------------------------------------
INPLANES = 64
PLANES = 16
BASEWIDTH = 26
SCALE = 4
EXPANSION = 4
WIDTH = int(math.floor(PLANES * (BASEWIDTH / 64.0)))   # 6
WIDTH_PAD = 8                                           # pad 6 -> 8 (sublane)
NUMS = SCALE - 1                                        # 3
OUTPLANES = PLANES * EXPANSION                          # 64 == INPLANES -> no downsample
WIDTH_SCALE_PAD = WIDTH_PAD * SCALE                     # 32
BN_EPS = 1e-5
N_TAPS = 9                                              # 3x3 kernel taps

# Real channel j of the 24-ch conv1 output lives at padded row PAD_IDX[j].
PAD_IDX = np.array([c * WIDTH_PAD + r for c in range(SCALE) for r in range(WIDTH)])

# Set True on v6e/v7x to run the MXU in bf16 (f32 accumulation); kept False to
# preserve the reference float32 forward-pass semantics.
USE_BF16_MATMUL = False


def _dot(a, b):
    if USE_BF16_MATMUL:
        a = a.astype(jnp.bfloat16)
        b = b.astype(jnp.bfloat16)
    return jnp.dot(a, b, preferred_element_type=jnp.float32)


# ---------------------------------------------------------------------------
# Constant spatial-shift matrices: tap t=(kh*3+kw), S[t] is (HW, HW) with
# (x @ S[t])[c, q] = x[c, flat(h+kh-1, w+kw-1)] (zero outside the image),
# i.e. the 3x3 tap shift with the zero halo baked in.
# ---------------------------------------------------------------------------
@functools.lru_cache(maxsize=None)
def _shift_matrices(H, W):
    HW = H * W
    q = np.arange(HW)
    h, w = q // W, q % W
    mats = []
    for kh in range(3):
        for kw in range(3):
            hh, ww = h + kh - 1, w + kw - 1
            valid = (hh >= 0) & (hh < H) & (ww >= 0) & (ww < W)
            p = hh * W + ww
            s = np.zeros((HW, HW), np.float32)
            s[p[valid], q[valid]] = 1.0
            mats.append(s)
    return np.stack(mats, axis=0)          # (9, HW, HW)


# ---------------------------------------------------------------------------
# Fused Bottle2neck kernel (one grid step = one sample, channel-major layout)
# ---------------------------------------------------------------------------
def _bottle2neck_kernel(x_ref, s_ref, w1_ref, b1_ref, wc_ref, bc_ref,
                        w3_ref, b3_ref, o_ref, y_ref, sh_ref):
    """x_ref:(1,CIN,HW)  s_ref:(9,HW,HW)  w1:(32,CIN) b1:(32,1)
       wc:(3,8,72) bc:(3,8,1)  w3:(COUT,32) b3:(COUT,1)  o_ref:(1,COUT,HW)
       y_ref: VMEM (32,HW) holds conv1 output, then is overwritten in place
              with the Res2Net 'cat' (conv0_out|conv1_out|conv2_out|spx[3]).
       sh_ref: VMEM (72,HW) stacked shifted copies (im2col-style slab)."""
    hw = x_ref.shape[-1]
    x = x_ref[0]                                            # (CIN, HW)

    # conv1 (1x1, BN-scale folded into weights) + bias + ReLU
    y1 = _dot(w1_ref[...], x)                               # (32, HW)
    y_ref[...] = jnp.maximum(y1 + b1_ref[...], 0.0)

    # three 3x3 convs (stride 1, dilation 1, pad 1), stype='normal'
    for i in range(NUMS):
        lo = i * WIDTH_PAD
        if i == 0:
            sp = y_ref[lo:lo + WIDTH_PAD, :]                # spx[0]
        else:
            # previous conv output (already written in place) + spx[i]
            sp = y_ref[lo - WIDTH_PAD:lo, :] + y_ref[lo:lo + WIDTH_PAD, :]
        # 9 shifted copies (zero halo baked into S) -> (72, HW) slab
        for t in range(N_TAPS):
            sh_ref[t * WIDTH_PAD:(t + 1) * WIDTH_PAD, :] = _dot(sp, s_ref[t])
        # single K=72 contraction over (tap, cin) + bias + ReLU, in place
        conv = _dot(wc_ref[i], sh_ref[...])                 # (8, HW)
        y_ref[lo:lo + WIDTH_PAD, :] = jnp.maximum(conv + bc_ref[i], 0.0)

    # conv3 (1x1) + bias + residual add + ReLU  (downsample is None)
    out = _dot(w3_ref[...], y_ref[...])                     # (COUT, HW)
    o_ref[0] = jnp.maximum(out + b3_ref[...] + x, 0.0).astype(o_ref.dtype)


def bottle2neck_forward(x_nchw, params):
    N, C, H, W = x_nchw.shape
    assert C == INPLANES and OUTPLANES == INPLANES          # downsample is None
    HW = H * W
    x = x_nchw.reshape(N, C, HW)                            # NCHW native, no transpose
    shift = jnp.asarray(_shift_matrices(H, W))              # (9, HW, HW) constant

    out = pl.pallas_call(
        _bottle2neck_kernel,
        out_shape=jax.ShapeDtypeStruct((N, OUTPLANES, HW), x.dtype),
        grid=(N,),
        in_specs=[
            pl.BlockSpec((1, INPLANES, HW), lambda n: (n, 0, 0)),
            pl.BlockSpec((N_TAPS, HW, HW), lambda n: (0, 0, 0)),
            pl.BlockSpec((WIDTH_SCALE_PAD, INPLANES), lambda n: (0, 0)),
            pl.BlockSpec((WIDTH_SCALE_PAD, 1), lambda n: (0, 0)),
            pl.BlockSpec((NUMS, WIDTH_PAD, N_TAPS * WIDTH_PAD), lambda n: (0, 0, 0)),
            pl.BlockSpec((NUMS, WIDTH_PAD, 1), lambda n: (0, 0, 0)),
            pl.BlockSpec((OUTPLANES, WIDTH_SCALE_PAD), lambda n: (0, 0)),
            pl.BlockSpec((OUTPLANES, 1), lambda n: (0, 0)),
        ],
        out_specs=pl.BlockSpec((1, OUTPLANES, HW), lambda n: (n, 0, 0)),
        scratch_shapes=[
            pltpu.VMEM((WIDTH_SCALE_PAD, HW), jnp.float32),        # y / cat
            pltpu.VMEM((N_TAPS * WIDTH_PAD, HW), jnp.float32),     # shifted slab
        ],
        compiler_params=pltpu.CompilerParams(
            dimension_semantics=("parallel",)),                    # megacore on v7x
    )(x, shift, params["w1"], params["b1"], params["wc"], params["bc"],
      params["w3"], params["b3"])
    return out.reshape(N, OUTPLANES, H, W)


# ---------------------------------------------------------------------------
# Parameter construction: synthetic weights + BN stats, then fold/pad.
# ---------------------------------------------------------------------------
def _fold_bn(gamma, beta, mean, var):
    s = gamma / jnp.sqrt(var + BN_EPS)
    return s, beta - mean * s


def make_params(key):
    keys = iter(jax.random.split(key, 32))
    nk = lambda: next(keys)

    def bn(c):
        gamma = 0.8 + 0.4 * jax.random.uniform(nk(), (c,), jnp.float32)
        beta = 0.1 * jax.random.normal(nk(), (c,), jnp.float32)
        mean = 0.1 * jax.random.normal(nk(), (c,), jnp.float32)
        var = 0.5 + jax.random.uniform(nk(), (c,), jnp.float32)
        return _fold_bn(gamma, beta, mean, var)

    raw = {}

    # conv1: 1x1, inplanes -> width*scale   (PyTorch layout (Cout, Cin))
    w1 = 0.05 * jax.random.normal(nk(), (WIDTH * SCALE, INPLANES), jnp.float32)
    s1, b1 = bn(WIDTH * SCALE)
    raw["w1"], raw["bn1"] = w1, (s1, b1)
    w1p = jnp.zeros((WIDTH_SCALE_PAD, INPLANES), jnp.float32).at[PAD_IDX, :].set(w1 * s1[:, None])
    b1p = jnp.zeros((WIDTH_SCALE_PAD,), jnp.float32).at[PAD_IDX].set(b1).reshape(-1, 1)

    # convs[i]: 3x3, width -> width  (padded to 8 channels, tap-major flatten)
    raw["wc"], raw["bnc"] = [], []
    wc_list, bc_list = [], []
    for _ in range(NUMS):
        wc = 0.1 * jax.random.normal(nk(), (WIDTH, WIDTH, 3, 3), jnp.float32)
        sc, bc = bn(WIDTH)
        raw["wc"].append(wc)
        raw["bnc"].append((sc, bc))
        wcp = jnp.zeros((WIDTH_PAD, WIDTH_PAD, 3, 3), jnp.float32)
        wcp = wcp.at[:WIDTH, :WIDTH].set(wc * sc[:, None, None, None])
        # (Cout, Cin, kh, kw) -> (Cout, kh, kw, Cin) -> (Cout, 9*WIDTH_PAD),
        # column index = (kh*3+kw)*WIDTH_PAD + cin  (matches the shifted slab)
        wc_list.append(jnp.transpose(wcp, (0, 2, 3, 1)).reshape(WIDTH_PAD, N_TAPS * WIDTH_PAD))
        bc_list.append(jnp.zeros((WIDTH_PAD,), jnp.float32).at[:WIDTH].set(bc).reshape(-1, 1))

    # conv3: 1x1, width*scale -> planes*expansion
    w3 = 0.05 * jax.random.normal(nk(), (OUTPLANES, WIDTH * SCALE), jnp.float32)
    s3, b3 = bn(OUTPLANES)
    raw["w3"], raw["bn3"] = w3, (s3, b3)
    w3p = jnp.zeros((OUTPLANES, WIDTH_SCALE_PAD), jnp.float32).at[:, PAD_IDX].set(w3 * s3[:, None])
    b3p = b3.reshape(-1, 1)

    kernel_params = dict(w1=w1p, b1=b1p, wc=jnp.stack(wc_list), bc=jnp.stack(bc_list),
                         w3=w3p, b3=b3p)
    return kernel_params, raw


# ---------------------------------------------------------------------------
# Pure-JAX reference (unfused, lax convs) for a correctness cross-check.
# ---------------------------------------------------------------------------
def reference_forward(x, raw):
    dn = ("NCHW", "OIHW", "NCHW")
    hp = jax.lax.Precision.HIGHEST
    relu = lambda v: jnp.maximum(v, 0.0)
    bn = lambda v, sb: v * sb[0][None, :, None, None] + sb[1][None, :, None, None]
    conv1x1 = lambda v, w: jax.lax.conv_general_dilated(
        v, w[:, :, None, None], (1, 1), "VALID", dimension_numbers=dn, precision=hp)
    conv3x3 = lambda v, w: jax.lax.conv_general_dilated(
        v, w, (1, 1), ((1, 1), (1, 1)), dimension_numbers=dn, precision=hp)

    out = relu(bn(conv1x1(x, raw["w1"]), raw["bn1"]))
    spx = jnp.split(out, SCALE, axis=1)
    pieces, sp = [], None
    for i in range(NUMS):
        sp = spx[i] if i == 0 else sp + spx[i]
        sp = relu(bn(conv3x3(sp, raw["wc"][i]), raw["bnc"][i]))
        pieces.append(sp)
    pieces.append(spx[NUMS])
    cat = jnp.concatenate(pieces, axis=1)
    return relu(bn(conv1x1(cat, raw["w3"]), raw["bn3"]) + x)


# ---------------------------------------------------------------------------
if __name__ == "__main__":
    key = jax.random.PRNGKey(0)
    kx, kp = jax.random.split(key)
    x = jax.random.normal(kx, (2, INPLANES, 16, 16), jnp.float32)   # NCHW
    params, raw = make_params(kp)

    fwd = jax.jit(bottle2neck_forward)
    y = jax.block_until_ready(fwd(x, params))

    assert y.shape == (2, OUTPLANES, 16, 16)
    assert bool(jnp.all(jnp.isfinite(y)))
    assert bool(jnp.all(y >= 0.0))                                  # final ReLU

    y_ref = reference_forward(x, raw)
    assert bool(jnp.allclose(y, y_ref, atol=1e-2, rtol=1e-2)), \
        f"max abs diff {float(jnp.max(jnp.abs(y - y_ref)))}"

    print("KERNEL_OK")
</pallas_src>

<mosaic_0001>
module attributes {stable_mosaic.version = 11 : i64} {
  func.func @_bottle2neck_kernel(%arg0: i32, %arg1: memref<1x64x256xf32, #tpu.memory_space<vmem>>, %arg2: memref<9x256x256xf32, #tpu.memory_space<vmem>>, %arg3: memref<32x64xf32, #tpu.memory_space<vmem>>, %arg4: memref<32x1xf32, #tpu.memory_space<vmem>>, %arg5: memref<3x8x72xf32, #tpu.memory_space<vmem>>, %arg6: memref<3x8x1xf32, #tpu.memory_space<vmem>>, %arg7: memref<64x32xf32, #tpu.memory_space<vmem>>, %arg8: memref<64x1xf32, #tpu.memory_space<vmem>>, %arg9: memref<1x64x256xf32, #tpu.memory_space<vmem>>, %arg10: memref<32x256xf32, #tpu.memory_space<vmem>>, %arg11: memref<72x256xf32, #tpu.memory_space<vmem>>) attributes {dimension_semantics = [#tpu.dimension_semantics<parallel>], iteration_bounds = array<i64: 2>, scalar_prefetch = 0 : i64, scratch_operands = 2 : i64, tpu.core_type = #tpu.core_type<tc>, window_params = [{transform_indices = @transform_0, window_bounds = array<i64: 1, 64, 256>}, {pipeline_mode = #tpu.pipeline_mode<synchronous>, transform_indices = @transform_1, window_bounds = array<i64: 9, 256, 256>}, {pipeline_mode = #tpu.pipeline_mode<synchronous>, transform_indices = @transform_2, window_bounds = array<i64: 32, 64>}, {pipeline_mode = #tpu.pipeline_mode<synchronous>, transform_indices = @transform_3, window_bounds = array<i64: 32, 1>}, {pipeline_mode = #tpu.pipeline_mode<synchronous>, transform_indices = @transform_4, window_bounds = array<i64: 3, 8, 72>}, {pipeline_mode = #tpu.pipeline_mode<synchronous>, transform_indices = @transform_5, window_bounds = array<i64: 3, 8, 1>}, {pipeline_mode = #tpu.pipeline_mode<synchronous>, transform_indices = @transform_6, window_bounds = array<i64: 64, 32>}, {pipeline_mode = #tpu.pipeline_mode<synchronous>, transform_indices = @transform_7, window_bounds = array<i64: 64, 1>}, {transform_indices = @transform_8, window_bounds = array<i64: 1, 64, 256>}]} {
    %c0 = arith.constant 0 : index
    %c0_0 = arith.constant 0 : index
    %c0_1 = arith.constant 0 : index
    %0 = vector.load %arg1[%c0, %c0_0, %c0_1] : memref<1x64x256xf32, #tpu.memory_space<vmem>>, vector<1x64x256xf32>
    %1 = vector.shape_cast %0 : vector<1x64x256xf32> to vector<64x256xf32>
    %c0_2 = arith.constant 0 : index
    %c0_3 = arith.constant 0 : index
    %2 = vector.load %arg3[%c0_2, %c0_3] : memref<32x64xf32, #tpu.memory_space<vmem>>, vector<32x64xf32>
    %cst = arith.constant dense<0.000000e+00> : vector<32x256xf32>
    %3 = tpu.matmul %2, %1, %cst {dimension_numbers = #tpu.dot_dimension_numbers<[1], [0], [0], [1], [0, 0, 1, 1], [], []>} : vector<32x64xf32>, vector<64x256xf32>, vector<32x256xf32> -> vector<32x256xf32>
    %c0_4 = arith.constant 0 : index
    %c0_5 = arith.constant 0 : index
    %4 = vector.load %arg4[%c0_4, %c0_5] : memref<32x1xf32, #tpu.memory_space<vmem>>, vector<32x1xf32>
    %5 = vector.broadcast %4 : vector<32x1xf32> to vector<32x256xf32>
    %6 = arith.addf %3, %5 : vector<32x256xf32>
    %cst_6 = arith.constant 0.000000e+00 : f32
    %7 = vector.broadcast %cst_6 : f32 to vector<32x256xf32>
    %8 = arith.maximumf %6, %7 : vector<32x256xf32>
    %c0_7 = arith.constant 0 : index
    %c0_8 = arith.constant 0 : index
    %9 = vector.load %arg10[%c0_7, %c0_8] : memref<32x256xf32, #tpu.memory_space<vmem>>, vector<32x256xf32>
    tpu.vector_store %arg10[%c0_7, %c0_8], %8 {strides = array<i32>} : memref<32x256xf32, #tpu.memory_space<vmem>>, vector<32x256xf32>,
    %c0_9 = arith.constant 0 : index
    %c0_10 = arith.constant 0 : index
    %10 = vector.load %arg10[%c0_9, %c0_10] : memref<32x256xf32, #tpu.memory_space<vmem>>, vector<8x256xf32>
    %c0_11 = arith.constant 0 : index
    %c0_12 = arith.constant 0 : index
    %c0_13 = arith.constant 0 : index
    %11 = vector.load %arg2[%c0_11, %c0_12, %c0_13] : memref<9x256x256xf32, #tpu.memory_space<vmem>>, vector<1x256x256xf32>
    %12 = vector.shape_cast %11 : vector<1x256x256xf32> to vector<256x256xf32>
    %cst_14 = arith.constant dense<0.000000e+00> : vector<8x256xf32>
    %13 = tpu.matmul %10, %12, %cst_14 {dimension_numbers = #tpu.dot_dimension_numbers<[1], [0], [0], [1], [0, 0, 1, 1], [], []>} : vector<8x256xf32>, vector<256x256xf32>, vector<8x256xf32> -> vector<8x256xf32>
    %c0_15 = arith.constant 0 : index
    %c0_16 = arith.constant 0 : index
    %14 = vector.load %arg11[%c0_15, %c0_16] : memref<72x256xf32, #tpu.memory_space<vmem>>, vector<8x256xf32>
    tpu.vector_store %arg11[%c0_15, %c0_16], %13 {strides = array<i32>} : memref<72x256xf32, #tpu.memory_space<vmem>>, vector<8x256xf32>,
    %c1 = arith.constant 1 : index
    %c0_17 = arith.constant 0 : index
    %c0_18 = arith.constant 0 : index
    %15 = vector.load %arg2[%c1, %c0_17, %c0_18] : memref<9x256x256xf32, #tpu.memory_space<vmem>>, vector<1x256x256xf32>
    %16 = vector.shape_cast %15 : vector<1x256x256xf32> to vector<256x256xf32>
    %cst_19 = arith.constant dense<0.000000e+00> : vector<8x256xf32>
    %17 = tpu.matmul %10, %16, %cst_19 {dimension_numbers = #tpu.dot_dimension_numbers<[1], [0], [0], [1], [0, 0, 1, 1], [], []>} : vector<8x256xf32>, vector<256x256xf32>, vector<8x256xf32> -> vector<8x256xf32>
    %c8 = arith.constant 8 : index
    %c0_20 = arith.constant 0 : index
    %18 = vector.load %arg11[%c8, %c0_20] : memref<72x256xf32, #tpu.memory_space<vmem>>, vector<8x256xf32>
    tpu.vector_store %arg11[%c8, %c0_20], %17 {strides = array<i32>} : memref<72x256xf32, #tpu.memory_space<vmem>>, vector<8x256xf32>,
    %c2 = arith.constant 2 : index
    %c0_21 = arith.constant 0 : index
    %c0_22 = arith.constant 0 : index
    %19 = vector.load %arg2[%c2, %c0_21, %c0_22] : memref<9x256x256xf32, #tpu.memory_space<vmem>>, vector<1x256x256xf32>
    %20 = vector.shape_cast %19 : vector<1x256x256xf32> to vector<256x256xf32>
    %cst_23 = arith.constant dense<0.000000e+00> : vector<8x256xf32>
    %21 = tpu.matmul %10, %20, %cst_23 {dimension_numbers = #tpu.dot_dimension_numbers<[1], [0], [0], [1], [0, 0, 1, 1], [], []>} : vector<8x256xf32>, vector<256x256xf32>, vector<8x256xf32> -> vector<8x256xf32>
    %c16 = arith.constant 16 : index
    %c0_24 = arith.constant 0 : index
    %22 = vector.load %arg11[%c16, %c0_24] : memref<72x256xf32, #tpu.memory_space<vmem>>, vector<8x256xf32>
    tpu.vector_store %arg11[%c16, %c0_24], %21 {strides = array<i32>} : memref<72x256xf32, #tpu.memory_space<vmem>>, vector<8x256xf32>,
    %c3 = arith.constant 3 : index
    %c0_25 = arith.constant 0 : index
    %c0_26 = arith.constant 0 : index
    %23 = vector.load %arg2[%c3, %c0_25, %c0_26] : memref<9x256x256xf32, #tpu.memory_space<vmem>>, vector<1x256x256xf32>
    %24 = vector.shape_cast %23 : vector<1x256x256xf32> to vector<256x256xf32>
    %cst_27 = arith.constant dense<0.000000e+00> : vector<8x256xf32>
    %25 = tpu.matmul %10, %24, %cst_27 {dimension_numbers = #tpu.dot_dimension_numbers<[1], [0], [0], [1], [0, 0, 1, 1], [], []>} : vector<8x256xf32>, vector<256x256xf32>, vector<8x256xf32> -> vector<8x256xf32>
    %c24 = arith.constant 24 : index
    %c0_28 = arith.constant 0 : index
    %26 = vector.load %arg11[%c24, %c0_28] : memref<72x256xf32, #tpu.memory_space<vmem>>, vector<8x256xf32>
    tpu.vector_store %arg11[%c24, %c0_28], %25 {strides = array<i32>} : memref<72x256xf32, #tpu.memory_space<vmem>>, vector<8x256xf32>,
    %c4 = arith.constant 4 : index
    %c0_29 = arith.constant 0 : index
    %c0_30 = arith.constant 0 : index
    %27 = vector.load %arg2[%c4, %c0_29, %c0_30] : memref<9x256x256xf32, #tpu.memory_space<vmem>>, vector<1x256x256xf32>
    %28 = vector.shape_cast %27 : vector<1x256x256xf32> to vector<256x256xf32>
    %cst_31 = arith.constant dense<0.000000e+00> : vector<8x256xf32>
    %29 = tpu.matmul %10, %28, %cst_31 {dimension_numbers = #tpu.dot_dimension_numbers<[1], [0], [0], [1], [0, 0, 1, 1], [], []>} : vector<8x256xf32>, vector<256x256xf32>, vector<8x256xf32> -> vector<8x256xf32>
    %c32 = arith.constant 32 : index
    %c0_32 = arith.constant 0 : index
    %30 = vector.load %arg11[%c32, %c0_32] : memref<72x256xf32, #tpu.memory_space<vmem>>, vector<8x256xf32>
    tpu.vector_store %arg11[%c32, %c0_32], %29 {strides = array<i32>} : memref<72x256xf32, #tpu.memory_space<vmem>>, vector<8x256xf32>,
    %c5 = arith.constant 5 : index
    %c0_33 = arith.constant 0 : index
    %c0_34 = arith.constant 0 : index
    %31 = vector.load %arg2[%c5, %c0_33, %c0_34] : memref<9x256x256xf32, #tpu.memory_space<vmem>>, vector<1x256x256xf32>
    %32 = vector.shape_cast %31 : vector<1x256x256xf32> to vector<256x256xf32>
    %cst_35 = arith.constant dense<0.000000e+00> : vector<8x256xf32>
    %33 = tpu.matmul %10, %32, %cst_35 {dimension_numbers = #tpu.dot_dimension_numbers<[1], [0], [0], [1], [0, 0, 1, 1], [], []>} : vector<8x256xf32>, vector<256x256xf32>, vector<8x256xf32> -> vector<8x256xf32>
    %c40 = arith.constant 40 : index
    %c0_36 = arith.constant 0 : index
    %34 = vector.load %arg11[%c40, %c0_36] : memref<72x256xf32, #tpu.memory_space<vmem>>, vector<8x256xf32>
    tpu.vector_store %arg11[%c40, %c0_36], %33 {strides = array<i32>} : memref<72x256xf32, #tpu.memory_space<vmem>>, vector<8x256xf32>,
    %c6 = arith.constant 6 : index
    %c0_37 = arith.constant 0 : index
    %c0_38 = arith.constant 0 : index
    %35 = vector.load %arg2[%c6, %c0_37, %c0_38] : memref<9x256x256xf32, #tpu.memory_space<vmem>>, vector<1x256x256xf32>
    %36 = vector.shape_cast %35 : vector<1x256x256xf32> to vector<256x256xf32>
    %cst_39 = arith.constant dense<0.000000e+00> : vector<8x256xf32>
    %37 = tpu.matmul %10, %36, %cst_39 {dimension_numbers = #tpu.dot_dimension_numbers<[1], [0], [0], [1], [0, 0, 1, 1], [], []>} : vector<8x256xf32>, vector<256x256xf32>, vector<8x256xf32> -> vector<8x256xf32>
    %c48 = arith.constant 48 : index
    %c0_40 = arith.constant 0 : index
    %38 = vector.load %arg11[%c48, %c0_40] : memref<72x256xf32, #tpu.memory_space<vmem>>, vector<8x256xf32>
    tpu.vector_store %arg11[%c48, %c0_40], %37 {strides = array<i32>} : memref<72x256xf32, #tpu.memory_space<vmem>>, vector<8x256xf32>,
    %c7 = arith.constant 7 : index
    %c0_41 = arith.constant 0 : index
    %c0_42 = arith.constant 0 : index
    %39 = vector.load %arg2[%c7, %c0_41, %c0_42] : memref<9x256x256xf32, #tpu.memory_space<vmem>>, vector<1x256x256xf32>
    %40 = vector.shape_cast %39 : vector<1x256x256xf32> to vector<256x256xf32>
    %cst_43 = arith.constant dense<0.000000e+00> : vector<8x256xf32>
    %41 = tpu.matmul %10, %40, %cst_43 {dimension_numbers = #tpu.dot_dimension_numbers<[1], [0], [0], [1], [0, 0, 1, 1], [], []>} : vector<8x256xf32>, vector<256x256xf32>, vector<8x256xf32> -> vector<8x256xf32>
    %c56 = arith.constant 56 : index
    %c0_44 = arith.constant 0 : index
    %42 = vector.load %arg11[%c56, %c0_44] : memref<72x256xf32, #tpu.memory_space<vmem>>, vector<8x256xf32>
    tpu.vector_store %arg11[%c56, %c0_44], %41 {strides = array<i32>} : memref<72x256xf32, #tpu.memory_space<vmem>>, vector<8x256xf32>,
    %c8_45 = arith.constant 8 : index
    %c0_46 = arith.constant 0 : index
    %c0_47 = arith.constant 0 : index
    %43 = vector.load %arg2[%c8_45, %c0_46, %c0_47] : memref<9x256x256xf32, #tpu.memory_space<vmem>>, vector<1x256x256xf32>
    %44 = vector.shape_cast %43 : vector<1x256x256xf32> to vector<256x256xf32>
    %cst_48 = arith.constant dense<0.000000e+00> : vector<8x256xf32>
    %45 = tpu.matmul %10, %44, %cst_48 {dimension_numbers = #tpu.dot_dimension_numbers<[1], [0], [0], [1], [0, 0, 1, 1], [], []>} : vector<8x256xf32>, vector<256x256xf32>, vector<8x256xf32> -> vector<8x256xf32>
    %c64 = arith.constant 64 : index
    %c0_49 = arith.constant 0 : index
    %46 = vector.load %arg11[%c64, %c0_49] : memref<72x256xf32, #tpu.memory_space<vmem>>, vector<8x256xf32>
    tpu.vector_store %arg11[%c64, %c0_49], %45 {strides = array<i32>} : memref<72x256xf32, #tpu.memory_space<vmem>>, vector<8x256xf32>,
    %c0_50 = arith.constant 0 : index
    %c0_51 = arith.constant 0 : index
    %c0_52 = arith.constant 0 : index
    %47 = vector.load %arg5[%c0_50, %c0_51, %c0_52] : memref<3x8x72xf32, #tpu.memory_space<vmem>>, vector<1x8x72xf32>
    %48 = vector.shape_cast %47 : vector<1x8x72xf32> to vector<8x72xf32>
    %c0_53 = arith.constant 0 : index
    %c0_54 = arith.constant 0 : index
    %49 = vector.load %arg11[%c0_53, %c0_54] : memref<72x256xf32, #tpu.memory_space<vmem>>, vector<72x256xf32>
    %cst_55 = arith.constant dense<0.000000e+00> : vector<8x256xf32>
    %50 = tpu.matmul %48, %49, %cst_55 {dimension_numbers = #tpu.dot_dimension_numbers<[1], [0], [0], [1], [0, 0, 1, 1], [], []>} : vector<8x72xf32>, vector<72x256xf32>, vector<8x256xf32> -> vector<8x256xf32>
    %c0_56 = arith.constant 0 : index
    %c0_57 = arith.constant 0 : index
    %c0_58 = arith.constant 0 : index
    %51 = vector.load %arg6[%c0_56, %c0_57, %c0_58] : memref<3x8x1xf32, #tpu.memory_space<vmem>>, vector<1x8x1xf32>
    %52 = vector.shape_cast %51 : vector<1x8x1xf32> to vector<8x1xf32>
    %53 = vector.broadcast %52 : vector<8x1xf32> to vector<8x256xf32>
    %54 = arith.addf %50, %53 : vector<8x256xf32>
    %cst_59 = arith.constant 0.000000e+00 : f32
    %55 = vector.broadcast %cst_59 : f32 to vector<8x256xf32>
    %56 = arith.maximumf %54, %55 : vector<8x256xf32>
    %c0_60 = arith.constant 0 : index
    %c0_61 = arith.constant 0 : index
    %57 = vector.load %arg10[%c0_60, %c0_61] : memref<32x256xf32, #tpu.memory_space<vmem>>, vector<8x256xf32>
    tpu.vector_store %arg10[%c0_60, %c0_61], %56 {strides = array<i32>} : memref<32x256xf32, #tpu.memory_space<vmem>>, vector<8x256xf32>,
    %c0_62 = arith.constant 0 : index
    %c0_63 = arith.constant 0 : index
    %58 = vector.load %arg10[%c0_62, %c0_63] : memref<32x256xf32, #tpu.memory_space<vmem>>, vector<8x256xf32>
    %c8_64 = arith.constant 8 : index
    %c0_65 = arith.constant 0 : index
    %59 = vector.load %arg10[%c8_64, %c0_65] : memref<32x256xf32, #tpu.memory_space<vmem>>, vector<8x256xf32>
    %60 = arith.addf %58, %59 : vector<8x256xf32>
    %c0_66 = arith.constant 0 : index
    %c0_67 = arith.constant 0 : index
    %c0_68 = arith.constant 0 : index
    %61 = vector.load %arg2[%c0_66, %c0_67, %c0_68] : memref<9x256x256xf32, #tpu.memory_space<vmem>>, vector<1x256x256xf32>
    %62 = vector.shape_cast %61 : vector<1x256x256xf32> to vector<256x256xf32>
    %cst_69 = arith.constant dense<0.000000e+00> : vector<8x256xf32>
    %63 = tpu.matmul %60, %62, %cst_69 {dimension_numbers = #tpu.dot_dimension_numbers<[1], [0], [0], [1], [0, 0, 1, 1], [], []>} : vector<8x256xf32>, vector<256x256xf32>, vector<8x256xf32> -> vector<8x256xf32>
    %c0_70 = arith.constant 0 : index
    %c0_71 = arith.constant 0 : index
    %64 = vector.load %arg11[%c0_70, %c0_71] : memref<72x256xf32, #tpu.memory_space<vmem>>, vector<8x256xf32>
    tpu.vector_store %arg11[%c0_70, %c0_71], %63 {strides = array<i32>} : memref<72x256xf32, #tpu.memory_space<vmem>>, vector<8x256xf32>,
    %c1_72 = arith.constant 1 : index
    %c0_73 = arith.constant 0 : index
    %c0_74 = arith.constant 0 : index
    %65 = vector.load %arg2[%c1_72, %c0_73, %c0_74] : memref<9x256x256xf32, #tpu.memory_space<vmem>>, vector<1x256x256xf32>
    %66 = vector.shape_cast %65 : vector<1x256x256xf32> to vector<256x256xf32>
    %cst_75 = arith.constant dense<0.000000e+00> : vector<8x256xf32>
    %67 = tpu.matmul %60, %66, %cst_75 {dimension_numbers = #tpu.dot_dimension_numbers<[1], [0], [0], [1], [0, 0, 1, 1], [], []>} : vector<8x256xf32>, vector<256x256xf32>, vector<8x256xf32> -> vector<8x256xf32>
    %c8_76 = arith.constant 8 : index
    %c0_77 = arith.constant 0 : index
    %68 = vector.load %arg11[%c8_76, %c0_77] : memref<72x256xf32, #tpu.memory_space<vmem>>, vector<8x256xf32>
    tpu.vector_store %arg11[%c8_76, %c0_77], %67 {strides = array<i32>} : memref<72x256xf32, #tpu.memory_space<vmem>>, vector<8x256xf32>,
    %c2_78 = arith.constant 2 : index
    %c0_79 = arith.constant 0 : index
    %c0_80 = arith.constant 0 : index
    %69 = vector.load %arg2[%c2_78, %c0_79, %c0_80] : memref<9x256x256xf32, #tpu.memory_space<vmem>>, vector<1x256x256xf32>
    %70 = vector.shape_cast %69 : vector<1x256x256xf32> to vector<256x256xf32>
    %cst_81 = arith.constant dense<0.000000e+00> : vector<8x256xf32>
    %71 = tpu.matmul %60, %70, %cst_81 {dimension_numbers = #tpu.dot_dimension_numbers<[1], [0], [0], [1], [0, 0, 1, 1], [], []>} : vector<8x256xf32>, vector<256x256xf32>, vector<8x256xf32> -> vector<8x256xf32>
    %c16_82 = arith.constant 16 : index
    %c0_83 = arith.constant 0 : index
    %72 = vector.load %arg11[%c16_82, %c0_83] : memref<72x256xf32, #tpu.memory_space<vmem>>, vector<8x256xf32>
    tpu.vector_store %arg11[%c16_82, %c0_83], %71 {strides = array<i32>} : memref<72x256xf32, #tpu.memory_space<vmem>>, vector<8x256xf32>,
    %c3_84 = arith.constant 3 : index
    %c0_85 = arith.constant 0 : index
    %c0_86 = arith.constant 0 : index
    %73 = vector.load %arg2[%c3_84, %c0_85, %c0_86] : memref<9x256x256xf32, #tpu.memory_space<vmem>>, vector<1x256x256xf32>
    %74 = vector.shape_cast %73 : vector<1x256x256xf32> to vector<256x256xf32>
    %cst_87 = arith.constant dense<0.000000e+00> : vector<8x256xf32>
    %75 = tpu.matmul %60, %74, %cst_87 {dimension_numbers = #tpu.dot_dimension_numbers<[1], [0], [0], [1], [0, 0, 1, 1], [], []>} : vector<8x256xf32>, vector<256x256xf32>, vector<8x256xf32> -> vector<8x256xf32>
    %c24_88 = arith.constant 24 : index
    %c0_89 = arith.constant 0 : index
    %76 = vector.load %arg11[%c24_88, %c0_89] : memref<72x256xf32, #tpu.memory_space<vmem>>, vector<8x256xf32>
    tpu.vector_store %arg11[%c24_88, %c0_89], %75 {strides = array<i32>} : memref<72x256xf32, #tpu.memory_space<vmem>>, vector<8x256xf32>,
    %c4_90 = arith.constant 4 : index
    %c0_91 = arith.constant 0 : index
    %c0_92 = arith.constant 0 : index
    %77 = vector.load %arg2[%c4_90, %c0_91, %c0_92] : memref<9x256x256xf32, #tpu.memory_space<vmem>>, vector<1x256x256xf32>
    %78 = vector.shape_cast %77 : vector<1x256x256xf32> to vector<256x256xf32>
    %cst_93 = arith.constant dense<0.000000e+00> : vector<8x256xf32>
    %79 = tpu.matmul %60, %78, %cst_93 {dimension_numbers = #tpu.dot_dimension_numbers<[1], [0], [0], [1], [0, 0, 1, 1], [], []>} : vector<8x256xf32>, vector<256x256xf32>, vector<8x256xf32> -> vector<8x256xf32>
    %c32_94 = arith.constant 32 : index
    %c0_95 = arith.constant 0 : index
    %80 = vector.load %arg11[%c32_94, %c0_95] : memref<72x256xf32, #tpu.memory_space<vmem>>, vector<8x256xf32>
    tpu.vector_store %arg11[%c32_94, %c0_95], %79 {strides = array<i32>} : memref<72x256xf32, #tpu.memory_space<vmem>>, vector<8x256xf32>,
    %c5_96 = arith.constant 5 : index
    %c0_97 = arith.constant 0 : index
    %c0_98 = arith.constant 0 : index
    %81 = vector.load %arg2[%c5_96, %c0_97, %c0_98] : memref<9x256x256xf32, #tpu.memory_space<vmem>>, vector<1x256x256xf32>
    %82 = vector.shape_cast %81 : vector<1x256x256xf32> to vector<256x256xf32>
    %cst_99 = arith.constant dense<0.000000e+00> : vector<8x256xf32>
    %83 = tpu.matmul %60, %82, %cst_99 {dimension_numbers = #tpu.dot_dimension_numbers<[1], [0], [0], [1], [0, 0, 1, 1], [], []>} : vector<8x256xf32>, vector<256x256xf32>, vector<8x256xf32> -> vector<8x256xf32>
    %c40_100 = arith.constant 40 : index
    %c0_101 = arith.constant 0 : index
    %84 = vector.load %arg11[%c40_100, %c0_101] : memref<72x256xf32, #tpu.memory_space<vmem>>, vector<8x256xf32>
    tpu.vector_store %arg11[%c40_100, %c0_101], %83 {strides = array<i32>} : memref<72x256xf32, #tpu.memory_space<vmem>>, vector<8x256xf32>,
    %c6_102 = arith.constant 6 : index
    %c0_103 = arith.constant 0 : index
    %c0_104 = arith.constant 0 : index
    %85 = vector.load %arg2[%c6_102, %c0_103, %c0_104] : memref<9x256x256xf32, #tpu.memory_space<vmem>>, vector<1x256x256xf32>
    %86 = vector.shape_cast %85 : vector<1x256x256xf32> to vector<256x256xf32>
    %cst_105 = arith.constant dense<0.000000e+00> : vector<8x256xf32>
    %87 = tpu.matmul %60, %86, %cst_105 {dimension_numbers = #tpu.dot_dimension_numbers<[1], [0], [0], [1], [0, 0, 1, 1], [], []>} : vector<8x256xf32>, vector<256x256xf32>, vector<8x256xf32> -> vector<8x256xf32>
    %c48_106 = arith.constant 48 : index
    %c0_107 = arith.constant 0 : index
    %88 = vector.load %arg11[%c48_106, %c0_107] : memref<72x256xf32, #tpu.memory_space<vmem>>, vector<8x256xf32>
    tpu.vector_store %arg11[%c48_106, %c0_107], %87 {strides = array<i32>} : memref<72x256xf32, #tpu.memory_space<vmem>>, vector<8x256xf32>,
    %c7_108 = arith.constant 7 : index
    %c0_109 = arith.constant 0 : index
    %c0_110 = arith.constant 0 : index
    %89 = vector.load %arg2[%c7_108, %c0_109, %c0_110] : memref<9x256x256xf32, #tpu.memory_space<vmem>>, vector<1x256x256xf32>
    %90 = vector.shape_cast %89 : vector<1x256x256xf32> to vector<256x256xf32>
    %cst_111 = arith.constant dense<0.000000e+00> : vector<8x256xf32>
    %91 = tpu.matmul %60, %90, %cst_111 {dimension_numbers = #tpu.dot_dimension_numbers<[1], [0], [0], [1], [0, 0, 1, 1], [], []>} : vector<8x256xf32>, vector<256x256xf32>, vector<8x256xf32> -> vector<8x256xf32>
    %c56_112 = arith.constant 56 : index
    %c0_113 = arith.constant 0 : index
    %92 = vector.load %arg11[%c56_112, %c0_113] : memref<72x256xf32, #tpu.memory_space<vmem>>, vector<8x256xf32>
    tpu.vector_store %arg11[%c56_112, %c0_113], %91 {strides = array<i32>} : memref<72x256xf32, #tpu.memory_space<vmem>>, vector<8x256xf32>,
    %c8_114 = arith.constant 8 : index
    %c0_115 = arith.constant 0 : index
    %c0_116 = arith.constant 0 : index
    %93 = vector.load %arg2[%c8_114, %c0_115, %c0_116] : memref<9x256x256xf32, #tpu.memory_space<vmem>>, vector<1x256x256xf32>
    %94 = vector.shape_cast %93 : vector<1x256x256xf32> to vector<256x256xf32>
    %cst_117 = arith.constant dense<0.000000e+00> : vector<8x256xf32>
    %95 = tpu.matmul %60, %94, %cst_117 {dimension_numbers = #tpu.dot_dimension_numbers<[1], [0], [0], [1], [0, 0, 1, 1], [], []>} : vector<8x256xf32>, vector<256x256xf32>, vector<8x256xf32> -> vector<8x256xf32>
    %c64_118 = arith.constant 64 : index
    %c0_119 = arith.constant 0 : index
    %96 = vector.load %arg11[%c64_118, %c0_119] : memref<72x256xf32, #tpu.memory_space<vmem>>, vector<8x256xf32>
    tpu.vector_store %arg11[%c64_118, %c0_119], %95 {strides = array<i32>} : memref<72x256xf32, #tpu.memory_space<vmem>>, vector<8x256xf32>,
    %c1_120 = arith.constant 1 : index
    %c0_121 = arith.constant 0 : index
    %c0_122 = arith.constant 0 : index
    %97 = vector.load %arg5[%c1_120, %c0_121, %c0_122] : memref<3x8x72xf32, #tpu.memory_space<vmem>>, vector<1x8x72xf32>
    %98 = vector.shape_cast %97 : vector<1x8x72xf32> to vector<8x72xf32>
    %c0_123 = arith.constant 0 : index
    %c0_124 = arith.constant 0 : index
    %99 = vector.load %arg11[%c0_123, %c0_124] : memref<72x256xf32, #tpu.memory_space<vmem>>, vector<72x256xf32>
    %cst_125 = arith.constant dense<0.000000e+00> : vector<8x256xf32>
    %100 = tpu.matmul %98, %99, %cst_125 {dimension_numbers = #tpu.dot_dimension_numbers<[1], [0], [0], [1], [0, 0, 1, 1], [], []>} : vector<8x72xf32>, vector<72x256xf32>, vector<8x256xf32> -> vector<8x256xf32>
    %c1_126 = arith.constant 1 : index
    %c0_127 = arith.constant 0 : index
    %c0_128 = arith.constant 0 : index
    %101 = vector.load %arg6[%c1_126, %c0_127, %c0_128] : memref<3x8x1xf32, #tpu.memory_space<vmem>>, vector<1x8x1xf32>
    %102 = vector.shape_cast %101 : vector<1x8x1xf32> to vector<8x1xf32>
    %103 = vector.broadcast %102 : vector<8x1xf32> to vector<8x256xf32>
    %104 = arith.addf %100, %103 : vector<8x256xf32>
    %cst_129 = arith.constant 0.000000e+00 : f32
    %105 = vector.broadcast %cst_129 : f32 to vector<8x256xf32>
    %106 = arith.maximumf %104, %105 : vector<8x256xf32>
    %c8_130 = arith.constant 8 : index
    %c0_131 = arith.constant 0 : index
    %107 = vector.load %arg10[%c8_130, %c0_131] : memref<32x256xf32, #tpu.memory_space<vmem>>, vector<8x256xf32>
    tpu.vector_store %arg10[%c8_130, %c0_131], %106 {strides = array<i32>} : memref<32x256xf32, #tpu.memory_space<vmem>>, vector<8x256xf32>,
    %c8_132 = arith.constant 8 : index
    %c0_133 = arith.constant 0 : index
    %108 = vector.load %arg10[%c8_132, %c0_133] : memref<32x256xf32, #tpu.memory_space<vmem>>, vector<8x256xf32>
    %c16_134 = arith.constant 16 : index
    %c0_135 = arith.constant 0 : index
    %109 = vector.load %arg10[%c16_134, %c0_135] : memref<32x256xf32, #tpu.memory_space<vmem>>, vector<8x256xf32>
    %110 = arith.addf %108, %109 : vector<8x256xf32>
    %c0_136 = arith.constant 0 : index
    %c0_137 = arith.constant 0 : index
    %c0_138 = arith.constant 0 : index
    %111 = vector.load %arg2[%c0_136, %c0_137, %c0_138] : memref<9x256x256xf32, #tpu.memory_space<vmem>>, vector<1x256x256xf32>
    %112 = vector.shape_cast %111 : vector<1x256x256xf32> to vector<256x256xf32>
    %cst_139 = arith.constant dense<0.000000e+00> : vector<8x256xf32>
    %113 = tpu.matmul %110, %112, %cst_139 {dimension_numbers = #tpu.dot_dimension_numbers<[1], [0], [0], [1], [0, 0, 1, 1], [], []>} : vector<8x256xf32>, vector<256x256xf32>, vector<8x256xf32> -> vector<8x256xf32>
    %c0_140 = arith.constant 0 : index
    %c0_141 = arith.constant 0 : index
    %114 = vector.load %arg11[%c0_140, %c0_141] : memref<72x256xf32, #tpu.memory_space<vmem>>, vector<8x256xf32>
    tpu.vector_store %arg11[%c0_140, %c0_141], %113 {strides = array<i32>} : memref<72x256xf32, #tpu.memory_space<vmem>>, vector<8x256xf32>,
    %c1_142 = arith.constant 1 : index
    %c0_143 = arith.constant 0 : index
    %c0_144 = arith.constant 0 : index
    %115 = vector.load %arg2[%c1_142, %c0_143, %c0_144] : memref<9x256x256xf32, #tpu.memory_space<vmem>>, vector<1x256x256xf32>
    %116 = vector.shape_cast %115 : vector<1x256x256xf32> to vector<256x256xf32>
    %cst_145 = arith.constant dense<0.000000e+00> : vector<8x256xf32>
    %117 = tpu.matmul %110, %116, %cst_145 {dimension_numbers = #tpu.dot_dimension_numbers<[1], [0], [0], [1], [0, 0, 1, 1], [], []>} : vector<8x256xf32>, vector<256x256xf32>, vector<8x256xf32> -> vector<8x256xf32>
    %c8_146 = arith.constant 8 : index
    %c0_147 = arith.constant 0 : index
    %118 = vector.load %arg11[%c8_146, %c0_147] : memref<72x256xf32, #tpu.memory_space<vmem>>, vector<8x256xf32>
    tpu.vector_store %arg11[%c8_146, %c0_147], %117 {strides = array<i32>} : memref<72x256xf32, #tpu.memory_space<vmem>>, vector<8x256xf32>,
    %c2_148 = arith.constant 2 : index
    %c0_149 = arith.constant 0 : index
    %c0_150 = arith.constant 0 : index
    %119 = vector.load %arg2[%c2_148, %c0_149, %c0_150] : memref<9x256x256xf32, #tpu.memory_space<vmem>>, vector<1x256x256xf32>
    %120 = vector.shape_cast %119 : vector<1x256x256xf32> to vector<256x256xf32>
    %cst_151 = arith.constant dense<0.000000e+00> : vector<8x256xf32>
    %121 = tpu.matmul %110, %120, %cst_151 {dimension_numbers = #tpu.dot_dimension_numbers<[1], [0], [0], [1], [0, 0, 1, 1], [], []>} : vector<8x256xf32>, vector<256x256xf32>, vector<8x256xf32> -> vector<8x256xf32>
    %c16_152 = arith.constant 16 : index
    %c0_153 = arith.constant 0 : index
    %122 = vector.load %arg11[%c16_152, %c0_153] : memref<72x256xf32, #tpu.memory_space<vmem>>, vector<8x256xf32>
    tpu.vector_store %arg11[%c16_152, %c0_153], %121 {strides = array<i32>} : memref<72x256xf32, #tpu.memory_space<vmem>>, vector<8x256xf32>,
    %c3_154 = arith.constant 3 : index
    %c0_155 = arith.constant 0 : index
    %c0_156 = arith.constant 0 : index
    %123 = vector.load %arg2[%c3_154, %c0_155, %c0_156] : memref<9x256x256xf32, #tpu.memory_space<vmem>>, vector<1x256x256xf32>
    %124 = vector.shape_cast %123 : vector<1x256x256xf32> to vector<256x256xf32>
    %cst_157 = arith.constant dense<0.000000e+00> : vector<8x256xf32>
    %125 = tpu.matmul %110, %124, %cst_157 {dimension_numbers = #tpu.dot_dimension_numbers<[1], [0], [0], [1], [0, 0, 1, 1], [], []>} : vector<8x256xf32>, vector<256x256xf32>, vector<8x256xf32> -> vector<8x256xf32>
    %c24_158 = arith.constant 24 : index
    %c0_159 = arith.constant 0 : index
    %126 = vector.load %arg11[%c24_158, %c0_159] : memref<72x256xf32, #tpu.memory_space<vmem>>, vector<8x256xf32>
    tpu.vector_store %arg11[%c24_158, %c0_159], %125 {strides = array<i32>} : memref<72x256xf32, #tpu.memory_space<vmem>>, vector<8x256xf32>,
    %c4_160 = arith.constant 4 : index
    %c0_161 = arith.constant 0 : index
    %c0_162 = arith.constant 0 : index
    %127 = vector.load %arg2[%c4_160, %c0_161, %c0_162] : memref<9x256x256xf32, #tpu.memory_space<vmem>>, vector<1x256x256xf32>
    %128 = vector.shape_cast %127 : vector<1x256x256xf32> to vector<256x256xf32>
    %cst_163 = arith.constant dense<0.000000e+00> : vector<8x256xf32>
    %129 = tpu.matmul %110, %128, %cst_163 {dimension_numbers = #tpu.dot_dimension_numbers<[1], [0], [0], [1], [0, 0, 1, 1], [], []>} : vector<8x256xf32>, vector<256x256xf32>, vector<8x256xf32> -> vector<8x256xf32>
    %c32_164 = arith.constant 32 : index
    %c0_165 = arith.constant 0 : index
    %130 = vector.load %arg11[%c32_164, %c0_165] : memref<72x256xf32, #tpu.memory_space<vmem>>, vector<8x256xf32>
    tpu.vector_store %arg11[%c32_164, %c0_165], %129 {strides = array<i32>} : memref<72x256xf32, #tpu.memory_space<vmem>>, vector<8x256xf32>,
    %c5_166 = arith.constant 5 : index
    %c0_167 = arith.constant 0 : index
    %c0_168 = arith.constant 0 : index
    %131 = vector.load %arg2[%c5_166, %c0_167, %c0_168] : memref<9x256x256xf32, #tpu.memory_space<vmem>>, vector<1x256x256xf32>
    %132 = vector.shape_cast %131 : vector<1x256x256xf32> to vector<256x256xf32>
    %cst_169 = arith.constant dense<0.000000e+00> : vector<8x256xf32>
    %133 = tpu.matmul %110, %132, %cst_169 {dimension_numbers = #tpu.dot_dimension_numbers<[1], [0], [0], [1], [0, 0, 1, 1], [], []>} : vector<8x256xf32>, vector<256x256xf32>, vector<8x256xf32> -> vector<8x256xf32>
    %c40_170 = arith.constant 40 : index
    %c0_171 = arith.constant 0 : index
    %134 = vector.load %arg11[%c40_170, %c0_171] : memref<72x256xf32, #tpu.memory_space<vmem>>, vector<8x256xf32>
    tpu.vector_store %arg11[%c40_170, %c0_171], %133 {strides = array<i32>} : memref<72x256xf32, #tpu.memory_space<vmem>>, vector<8x256xf32>,
    %c6_172 = arith.constant 6 : index
    %c0_173 = arith.constant 0 : index
    %c0_174 = arith.constant 0 : index
    %135 = vector.load %arg2[%c6_172, %c0_173, %c0_174] : memref<9x256x256xf32, #tpu.memory_space<vmem>>, vector<1x256x256xf32>
    %136 = vector.shape_cast %135 : vector<1x256x256xf32> to vector<256x256xf32>
    %cst_175 = arith.constant dense<0.000000e+00> : vector<8x256xf32>
    %137 = tpu.matmul %110, %136, %cst_175 {dimension_numbers = #tpu.dot_dimension_numbers<[1], [0], [0], [1], [0, 0, 1, 1], [], []>} : vector<8x256xf32>, vector<256x256xf32>, vector<8x256xf32> -> vector<8x256xf32>
    %c48_176 = arith.constant 48 : index
    %c0_177 = arith.constant 0 : index
    %138 = vector.load %arg11[%c48_176, %c0_177] : memref<72x256xf32, #tpu.memory_space<vmem>>, vector<8x256xf32>
    tpu.vector_store %arg11[%c48_176, %c0_177], %137 {strides = array<i32>} : memref<72x256xf32, #tpu.memory_space<vmem>>, vector<8x256xf32>,
    %c7_178 = arith.constant 7 : index
    %c0_179 = arith.constant 0 : index
    %c0_180 = arith.constant 0 : index
    %139 = vector.load %arg2[%c7_178, %c0_179, %c0_180] : memref<9x256x256xf32, #tpu.memory_space<vmem>>, vector<1x256x256xf32>
    %140 = vector.shape_cast %139 : vector<1x256x256xf32> to vector<256x256xf32>
    %cst_181 = arith.constant dense<0.000000e+00> : vector<8x256xf32>
    %141 = tpu.matmul %110, %140, %cst_181 {dimension_numbers = #tpu.dot_dimension_numbers<[1], [0], [0], [1], [0, 0, 1, 1], [], []>} : vector<8x256xf32>, vector<256x256xf32>, vector<8x256xf32> -> vector<8x256xf32>
    %c56_182 = arith.constant 56 : index
    %c0_183 = arith.constant 0 : index
    %142 = vector.load %arg11[%c56_182, %c0_183] : memref<72x256xf32, #tpu.memory_space<vmem>>, vector<8x256xf32>
    tpu.vector_store %arg11[%c56_182, %c0_183], %141 {strides = array<i32>} : memref<72x256xf32, #tpu.memory_space<vmem>>, vector<8x256xf32>,
    %c8_184 = arith.constant 8 : index
    %c0_185 = arith.constant 0 : index
    %c0_186 = arith.constant 0 : index
    %143 = vector.load %arg2[%c8_184, %c0_185, %c0_186] : memref<9x256x256xf32, #tpu.memory_space<vmem>>, vector<1x256x256xf32>
    %144 = vector.shape_cast %143 : vector<1x256x256xf32> to vector<256x256xf32>
    %cst_187 = arith.constant dense<0.000000e+00> : vector<8x256xf32>
    %145 = tpu.matmul %110, %144, %cst_187 {dimension_numbers = #tpu.dot_dimension_numbers<[1], [0], [0], [1], [0, 0, 1, 1], [], []>} : vector<8x256xf32>, vector<256x256xf32>, vector<8x256xf32> -> vector<8x256xf32>
    %c64_188 = arith.constant 64 : index
    %c0_189 = arith.constant 0 : index
    %146 = vector.load %arg11[%c64_188, %c0_189] : memref<72x256xf32, #tpu.memory_space<vmem>>, vector<8x256xf32>
    tpu.vector_store %arg11[%c64_188, %c0_189], %145 {strides = array<i32>} : memref<72x256xf32, #tpu.memory_space<vmem>>, vector<8x256xf32>,
    %c2_190 = arith.constant 2 : index
    %c0_191 = arith.constant 0 : index
    %c0_192 = arith.constant 0 : index
    %147 = vector.load %arg5[%c2_190, %c0_191, %c0_192] : memref<3x8x72xf32, #tpu.memory_space<vmem>>, vector<1x8x72xf32>
    %148 = vector.shape_cast %147 : vector<1x8x72xf32> to vector<8x72xf32>
    %c0_193 = arith.constant 0 : index
    %c0_194 = arith.constant 0 : index
    %149 = vector.load %arg11[%c0_193, %c0_194] : memref<72x256xf32, #tpu.memory_space<vmem>>, vector<72x256xf32>
    %cst_195 = arith.constant dense<0.000000e+00> : vector<8x256xf32>
    %150 = tpu.matmul %148, %149, %cst_195 {dimension_numbers = #tpu.dot_dimension_numbers<[1], [0], [0], [1], [0, 0, 1, 1], [], []>} : vector<8x72xf32>, vector<72x256xf32>, vector<8x256xf32> -> vector<8x256xf32>
    %c2_196 = arith.constant 2 : index
    %c0_197 = arith.constant 0 : index
    %c0_198 = arith.constant 0 : index
    %151 = vector.load %arg6[%c2_196, %c0_197, %c0_198] : memref<3x8x1xf32, #tpu.memory_space<vmem>>, vector<1x8x1xf32>
    %152 = vector.shape_cast %151 : vector<1x8x1xf32> to vector<8x1xf32>
    %153 = vector.broadcast %152 : vector<8x1xf32> to vector<8x256xf32>
    %154 = arith.addf %150, %153 : vector<8x256xf32>
    %cst_199 = arith.constant 0.000000e+00 : f32
    %155 = vector.broadcast %cst_199 : f32 to vector<8x256xf32>
    %156 = arith.maximumf %154, %155 : vector<8x256xf32>
    %c16_200 = arith.constant 16 : index
    %c0_201 = arith.constant 0 : index
    %157 = vector.load %arg10[%c16_200, %c0_201] : memref<32x256xf32, #tpu.memory_space<vmem>>, vector<8x256xf32>
    tpu.vector_store %arg10[%c16_200, %c0_201], %156 {strides = array<i32>} : memref<32x256xf32, #tpu.memory_space<vmem>>, vector<8x256xf32>,
    %c0_202 = arith.constant 0 : index
    %c0_203 = arith.constant 0 : index
    %158 = vector.load %arg7[%c0_202, %c0_203] : memref<64x32xf32, #tpu.memory_space<vmem>>, vector<64x32xf32>
    %c0_204 = arith.constant 0 : index
    %c0_205 = arith.constant 0 : index
    %159 = vector.load %arg10[%c0_204, %c0_205] : memref<32x256xf32, #tpu.memory_space<vmem>>, vector<32x256xf32>
    %cst_206 = arith.constant dense<0.000000e+00> : vector<64x256xf32>
    %160 = tpu.matmul %158, %159, %cst_206 {dimension_numbers = #tpu.dot_dimension_numbers<[1], [0], [0], [1], [0, 0, 1, 1], [], []>} : vector<64x32xf32>, vector<32x256xf32>, vector<64x256xf32> -> vector<64x256xf32>
    %c0_207 = arith.constant 0 : index
    %c0_208 = arith.constant 0 : index
    %161 = vector.load %arg8[%c0_207, %c0_208] : memref<64x1xf32, #tpu.memory_space<vmem>>, vector<64x1xf32>
    %162 = vector.broadcast %161 : vector<64x1xf32> to vector<64x256xf32>
    %163 = arith.addf %160, %162 : vector<64x256xf32>
    %164 = arith.addf %163, %1 : vector<64x256xf32>
    %cst_209 = arith.constant 0.000000e+00 : f32
    %165 = vector.broadcast %cst_209 : f32 to vector<64x256xf32>
    %166 = arith.maximumf %164, %165 : vector<64x256xf32>
    %c0_210 = arith.constant 0 : index
    %c0_211 = arith.constant 0 : index
    %c0_212 = arith.constant 0 : index
    %167 = vector.load %arg9[%c0_210, %c0_211, %c0_212] : memref<1x64x256xf32, #tpu.memory_space<vmem>>, vector<1x64x256xf32>
    %168 = vector.shape_cast %167 : vector<1x64x256xf32> to vector<64x256xf32>
    %169 = vector.shape_cast %166 : vector<64x256xf32> to vector<1x64x256xf32>
    tpu.vector_store %arg9[%c0_210, %c0_211, %c0_212], %169 {strides = array<i32>} : memref<1x64x256xf32, #tpu.memory_space<vmem>>, vector<1x64x256xf32>,
    return
  }
  func.func @transform_0(%arg0: i32) -> (i32, i32, i32) {
    %c0_i32 = arith.constant 0 : i32
    %c0_i32_0 = arith.constant 0 : i32
    %c0_i32_1 = arith.constant 0 : i32
    return %arg0, %c0_i32, %c0_i32_0 : i32, i32, i32
  }
  func.func @transform_1(%arg0: i32) -> (i32, i32, i32) {
    %c0_i32 = arith.constant 0 : i32
    %c0_i32_0 = arith.constant 0 : i32
    %c0_i32_1 = arith.constant 0 : i32
    %c0_i32_2 = arith.constant 0 : i32
    return %c0_i32, %c0_i32_0, %c0_i32_1 : i32, i32, i32
  }
  func.func @transform_2(%arg0: i32) -> (i32, i32) {
    %c0_i32 = arith.constant 0 : i32
    %c0_i32_0 = arith.constant 0 : i32
    %c0_i32_1 = arith.constant 0 : i32
    return %c0_i32, %c0_i32_0 : i32, i32
  }
  func.func @transform_3(%arg0: i32) -> (i32, i32) {
    %c0_i32 = arith.constant 0 : i32
    %c0_i32_0 = arith.constant 0 : i32
    %c0_i32_1 = arith.constant 0 : i32
    return %c0_i32, %c0_i32_0 : i32, i32
  }
  func.func @transform_4(%arg0: i32) -> (i32, i32, i32) {
    %c0_i32 = arith.constant 0 : i32
    %c0_i32_0 = arith.constant 0 : i32
    %c0_i32_1 = arith.constant 0 : i32
    %c0_i32_2 = arith.constant 0 : i32
    return %c0_i32, %c0_i32_0, %c0_i32_1 : i32, i32, i32
  }
  func.func @transform_5(%arg0: i32) -> (i32, i32, i32) {
    %c0_i32 = arith.constant 0 : i32
    %c0_i32_0 = arith.constant 0 : i32
    %c0_i32_1 = arith.constant 0 : i32
    %c0_i32_2 = arith.constant 0 : i32
    return %c0_i32, %c0_i32_0, %c0_i32_1 : i32, i32, i32
  }
  func.func @transform_6(%arg0: i32) -> (i32, i32) {
    %c0_i32 = arith.constant 0 : i32
    %c0_i32_0 = arith.constant 0 : i32
    %c0_i32_1 = arith.constant 0 : i32
    return %c0_i32, %c0_i32_0 : i32, i32
  }
  func.func @transform_7(%arg0: i32) -> (i32, i32) {
    %c0_i32 = arith.constant 0 : i32
    %c0_i32_0 = arith.constant 0 : i32
    %c0_i32_1 = arith.constant 0 : i32
    return %c0_i32, %c0_i32_0 : i32, i32
  }
  func.func @transform_8(%arg0: i32) -> (i32, i32, i32) {
    %c0_i32 = arith.constant 0 : i32
    %c0_i32_0 = arith.constant 0 : i32
    %c0_i32_1 = arith.constant 0 : i32
    return %arg0, %c0_i32, %c0_i32_0 : i32, i32, i32
  }
}

</mosaic_0001>

<llo_original>
// kernel: bottle2neck_forward.1
$region0: #{bottle2neck_forward.1}
  #allocation0 [shape = 'u32[]', space=smem, size = 0x4, offset = 0x4, fixed_abs, tag = 'smem constant byte address 0x4 - core index']
  #allocation1 [shape = 'u32[144,128]{1,0:T(1,128)}', space=vmem, size = 0x12000, scoped, tag = 'internal scratch']
  #allocation2 [shape = 'f32[32,256]{1,0:T(8,128)}', space=vmem, size = 0x8000, scoped, tag = 'scratch operand']
  #allocation3 [shape = 'f32[72,256]{1,0:T(8,128)}', space=vmem, size = 0x12000, scoped, tag = 'scratch operand']
  %s0 = inlined_call_operand.vmem [shape: f32[2,64,256], index: 0, kind: input, shape index: {}]
  %s1 = inlined_call_operand.hbm [shape: f32[9,256,256], index: 1, kind: input, shape index: {}]
  %s2 = inlined_call_operand.hbm [shape: f32[32,64], index: 2, kind: input, shape index: {}]
  %s3 = inlined_call_operand.vmem [shape: f32[32,1], index: 3, kind: input, shape index: {}]
  %s4 = inlined_call_operand.hbm [shape: f32[3,8,72], index: 4, kind: input, shape index: {}]
  %s5 = inlined_call_operand.vmem [shape: f32[3,8,1], index: 5, kind: input, shape index: {}]
  %s6 = inlined_call_operand.vmem [shape: f32[64,32], index: 6, kind: input, shape index: {}]
  %s7 = inlined_call_operand.vmem [shape: f32[64,1], index: 7, kind: input, shape index: {}]
  %s8 = inlined_call_operand.vmem [shape: f32[2,64,256], index: 8, kind: output, shape index: {}]
  %s9 = sld [smem:[#allocation0]]
  $region77: #{bottle2neck_forward.1} parent=0
    _
  %s11 = ssub.s32 1, %s9
  %s12 = scalar_select 0, %s11, %s9
  $region1: #{bottle2neck_forward.1} parent=0
    #allocation4 [shape = 'u8[2359296]{0}', space=vmem, size = 0x240000, scoped, tag = 'input window, operand 1, single buffered']
    #allocation5 [shape = 's32[2]{0}', space=sflag, size = 0x8, scoped, tag = 'scoped memory for bottle2neck_forward.1']
    #allocation6 [shape = 'u8[16384]{0}', space=vmem, size = 0x4000, scoped, tag = 'input window, operand 2, single buffered']
    #allocation7 [shape = 's32[1]{0}', space=sflag, size = 0x4, scoped, tag = 'scoped memory for bottle2neck_forward.1']
    #allocation8 [shape = 'u8[12288]{0}', space=vmem, size = 0x3000, scoped, tag = 'input window, operand 4, single buffered']
    %13 = vsyncpa [#allocation5], 0
    %14 = vsyncpa [#allocation7], 0
    loop: start=0, step=1, limit=4
    $region2: #{bottle2neck_forward.1} parent=1 // loop_pre_header
      _
    $region3: #{bottle2neck_forward.1} parent=1 // loop_header
      %s16 = sphi 0, %s20
      %p17 = scmp.ge.s32.totalorder %s16, 4
      %s26 = sphi 0, %s28
      %s29 = sphi 0, %s26
      %s30 = sphi 0, %s29
      %s46 = sphi 0, %s30
      %s50 = sphi 0, %s50
      %s52 = sphi 0, %s50
      %s53 = sphi 0, %s52
      %s67 = sphi 0, %s53
      %s71 = sphi 0, %s71
      %s73 = sphi 0, %s71
      %s74 = sphi 0, %s73
      %s88 = sphi 0, %s74
      %s92 = sphi 0, %s92
      %s94 = sphi 0, %s92
      %s95 = sphi 0, %s94
      %s109 = sphi 0, %s95
      %s113 = sphi 0, %s113
      %s115 = sphi 0, %s113
      %s116 = sphi 0, %s115
      %s130 = sphi 0, %s116
      %s134 = sphi 0, %s134
      %s136 = sphi 0, %s134
      %s137 = sphi 0, %s136
      %s151 = sphi 0, %s137
      %s155 = sphi 0, %s155
      %s157 = sphi 0, %s155
      %s158 = sphi 0, %s157
      %s172 = sphi 0, %s158
      %s176 = sphi 0, %s176
      %s178 = sphi 0, %s176
      %s179 = sphi 0, %s178
      %s193 = sphi 0, %s179
      %s199 = sphi 0, %s201
      %s202 = sphi 0, %s199
      %s203 = sphi 0, %s202
      %s219 = sphi 0, %s203
    $region4: #{bottle2neck_forward.1} parent=1 // loop_header_branch
      %19 = sbr.rel (%p17) target = $region8
    $region5: #{bottle2neck_forward.1} parent=1 // loop_body
      %s21 = ssub.s32 %s16, 1
      %s22 = ssub.s32 %s16, 2
      %s23 = sadd.s32 %s16, 1
      %s24 = ssub.s32 %s16, %s23
      %p25 = scmp.eq.s32.totalorder %s24, 0
      %s27 = sadd.s32 %s26, 1
      %s28 = scalar_select %p25, %s26, %s27
      %p31 = pneg %p25
      %p32 = scmp.eq.s32.totalorder %s16, 1
      %p33 = por %p31, %p32
      %p34 = scmp.ne.s32.totalorder %s26, %s29
      %p35 = scmp.eq.s32.totalorder %s16, 0
      %p36 = por %p34, %p35
      %p37 = scmp.ne.s32.totalorder %s26, %s29
      %p38 = scmp.eq.s32.totalorder %s21, 1
      %p39 = por %p37, %p38
      %p40 = scmp.ne.s32.totalorder %s29, %s30
      %p41 = scmp.eq.s32.totalorder %s21, 0
      %p42 = por %p40, %p41
      %p43 = scmp.ne.s32.totalorder %s29, %s30
      %p44 = scmp.eq.s32.totalorder %s22, 1
      %p45 = por %p43, %p44
      %p47 = scmp.ne.s32.totalorder %s30, %s46
      %p48 = scmp.eq.s32.totalorder %s22, 0
      %p49 = por %p47, %p48
      %s51 = sadd.s32 %s50, 1
      %p54 = scmp.eq.s32.totalorder %s16, 1
      %p55 = scmp.ne.s32.totalorder %s50, %s52
      %p56 = scmp.eq.s32.totalorder %s16, 0
      %p57 = por %p55, %p56
      %p58 = scmp.ne.s32.totalorder %s50, %s52
      %p59 = scmp.eq.s32.totalorder %s21, 1
      %p60 = por %p58, %p59
      %p61 = scmp.ne.s32.totalorder %s52, %s53
      %p62 = scmp.eq.s32.totalorder %s21, 0
      %p63 = por %p61, %p62
      %p64 = scmp.ne.s32.totalorder %s52, %s53
      %p65 = scmp.eq.s32.totalorder %s22, 1
      %p66 = por %p64, %p65
      %p68 = scmp.ne.s32.totalorder %s53, %s67
      %p69 = scmp.eq.s32.totalorder %s22, 0
      %p70 = por %p68, %p69
      %s72 = sadd.s32 %s71, 1
      %p75 = scmp.eq.s32.totalorder %s16, 1
      %p76 = scmp.ne.s32.totalorder %s71, %s73
      %p77 = scmp.eq.s32.totalorder %s16, 0
      %p78 = por %p76, %p77
      %p79 = scmp.ne.s32.totalorder %s71, %s73
      %p80 = scmp.eq.s32.totalorder %s21, 1
      %p81 = por %p79, %p80
      %p82 = scmp.ne.s32.totalorder %s73, %s74
      %p83 = scmp.eq.s32.totalorder %s21, 0
      %p84 = por %p82, %p83
      %p85 = scmp.ne.s32.totalorder %s73, %s74
      %p86 = scmp.eq.s32.totalorder %s22, 1
      %p87 = por %p85, %p86
      %p89 = scmp.ne.s32.totalorder %s74, %s88
      %p90 = scmp.eq.s32.totalorder %s22, 0
      %p91 = por %p89, %p90
      %s93 = sadd.s32 %s92, 1
      %p96 = scmp.eq.s32.totalorder %s16, 1
      %p97 = scmp.ne.s32.totalorder %s92, %s94
      %p98 = scmp.eq.s32.totalorder %s16, 0
      %p99 = por %p97, %p98
      %p100 = scmp.ne.s32.totalorder %s92, %s94
      %p101 = scmp.eq.s32.totalorder %s21, 1
      %p102 = por %p100, %p101
      %p103 = scmp.ne.s32.totalorder %s94, %s95
      %p104 = scmp.eq.s32.totalorder %s21, 0
      %p105 = por %p103, %p104
      %p106 = scmp.ne.s32.totalorder %s94, %s95
      %p107 = scmp.eq.s32.totalorder %s22, 1
      %p108 = por %p106, %p107
      %p110 = scmp.ne.s32.totalorder %s95, %s109
      %p111 = scmp.eq.s32.totalorder %s22, 0
      %p112 = por %p110, %p111
      %s114 = sadd.s32 %s113, 1
      %p117 = scmp.eq.s32.totalorder %s16, 1
      %p118 = scmp.ne.s32.totalorder %s113, %s115
      %p119 = scmp.eq.s32.totalorder %s16, 0
      %p120 = por %p118, %p119
      %p121 = scmp.ne.s32.totalorder %s113, %s115
      %p122 = scmp.eq.s32.totalorder %s21, 1
      %p123 = por %p121, %p122
      %p124 = scmp.ne.s32.totalorder %s115, %s116
      %p125 = scmp.eq.s32.totalorder %s21, 0
      %p126 = por %p124, %p125
      %p127 = scmp.ne.s32.totalorder %s115, %s116
      %p128 = scmp.eq.s32.totalorder %s22, 1
      %p129 = por %p127, %p128
      %p131 = scmp.ne.s32.totalorder %s116, %s130
      %p132 = scmp.eq.s32.totalorder %s22, 0
      %p133 = por %p131, %p132
      %s135 = sadd.s32 %s134, 1
      %p138 = scmp.eq.s32.totalorder %s16, 1
      %p139 = scmp.ne.s32.totalorder %s134, %s136
      %p140 = scmp.eq.s32.totalorder %s16, 0
      %p141 = por %p139, %p140
      %p142 = scmp.ne.s32.totalorder %s134, %s136
      %p143 = scmp.eq.s32.totalorder %s21, 1
      %p144 = por %p142, %p143
      %p145 = scmp.ne.s32.totalorder %s136, %s137
      %p146 = scmp.eq.s32.totalorder %s21, 0
      %p147 = por %p145, %p146
      %p148 = scmp.ne.s32.totalorder %s136, %s137
      %p149 = scmp.eq.s32.totalorder %s22, 1
      %p150 = por %p148, %p149
      %p152 = scmp.ne.s32.totalorder %s137, %s151
      %p153 = scmp.eq.s32.totalorder %s22, 0
      %p154 = por %p152, %p153
      %s156 = sadd.s32 %s155, 1
      %p159 = scmp.eq.s32.totalorder %s16, 1
      %p160 = scmp.ne.s32.totalorder %s155, %s157
      %p161 = scmp.eq.s32.totalorder %s16, 0
      %p162 = por %p160, %p161
      %p163 = scmp.ne.s32.totalorder %s155, %s157
      %p164 = scmp.eq.s32.totalorder %s21, 1
      %p165 = por %p163, %p164
      %p166 = scmp.ne.s32.totalorder %s157, %s158
      %p167 = scmp.eq.s32.totalorder %s21, 0
      %p168 = por %p166, %p167
      %p169 = scmp.ne.s32.totalorder %s157, %s158
      %p170 = scmp.eq.s32.totalorder %s22, 1
      %p171 = por %p169, %p170
      %p173 = scmp.ne.s32.totalorder %s158, %s172
      %p174 = scmp.eq.s32.totalorder %s22, 0
      %p175 = por %p173, %p174
      %s177 = sadd.s32 %s176, 1
      %p180 = scmp.eq.s32.totalorder %s16, 1
      %p181 = scmp.ne.s32.totalorder %s176, %s178
      %p182 = scmp.eq.s32.totalorder %s16, 0
      %p183 = por %p181, %p182
      %p184 = scmp.ne.s32.totalorder %s176, %s178
      %p185 = scmp.eq.s32.totalorder %s21, 1
      %p186 = por %p184, %p185
      %p187 = scmp.ne.s32.totalorder %s178, %s179
      %p188 = scmp.eq.s32.totalorder %s21, 0
      %p189 = por %p187, %p188
      %p190 = scmp.ne.s32.totalorder %s178, %s179
      %p191 = scmp.eq.s32.totalorder %s22, 1
      %p192 = por %p190, %p191
      %p194 = scmp.ne.s32.totalorder %s179, %s193
      %p195 = scmp.eq.s32.totalorder %s22, 0
      %p196 = por %p194, %p195
      %s197 = ssub.s32 %s16, %s23
      %p198 = scmp.eq.s32.totalorder %s197, 0
      %s200 = sadd.s32 %s199, 1
      %s201 = scalar_select %p198, %s199, %s200
      %p204 = pneg %p198
      %p205 = scmp.eq.s32.totalorder %s16, 1
      %p206 = por %p204, %p205
      %p207 = scmp.ne.s32.totalorder %s199, %s202
      %p208 = scmp.eq.s32.totalorder %s16, 0
      %p209 = por %p207, %p208
      %p210 = scmp.ne.s32.totalorder %s199, %s202
      %p211 = scmp.eq.s32.totalorder %s21, 1
      %p212 = por %p210, %p211
      %p213 = scmp.ne.s32.totalorder %s202, %s203
      %p214 = scmp.eq.s32.totalorder %s21, 0
      %p215 = por %p213, %p214
      %p216 = scmp.ne.s32.totalorder %s202, %s203
      %p217 = scmp.eq.s32.totalorder %s22, 1
      %p218 = por %p216, %p217
      %p220 = scmp.ne.s32.totalorder %s203, %s219
      %p221 = scmp.eq.s32.totalorder %s22, 0
      %p222 = por %p220, %p221
      %p223 = scmp.le.s32.totalorder 1, %s16
      %p224 = scmp.lt.s32.totalorder %s16, 3
      %p225 = pnand %p223, %p224
      %p226 = pneg %p225
      // Predicated region
      $region9: #{bottle2neck_forward.1} parent=5 // pred_check
        _
      $region10: #{bottle2neck_forward.1} parent=5 // pred_check_branch
        %228 = sbr.rel (%p225) target = $region12
      $region11: #{bottle2neck_forward.1} parent=5 // pred_region
        %s229 = ssub.s32 %s16, 1
        // Predicated region
        $region13: #{bottle2neck_forward.1} parent=11 // pred_check
          %p230 = pneg %p63
        $region14: #{bottle2neck_forward.1} parent=11 // pred_check_branch
          %232 = sbr.rel (%p230) target = $region16
        $region15: #{bottle2neck_forward.1} parent=11 // pred_region
          %s234 = ssub.s32 73728, 73728
          %235 = vsyncadd [#allocation5], %s234
          %s236 = sshll.u32 [#allocation4], 4
          %s237 = int_to_ptr.vmem [resolvable:$true] %s236
          %242 = dma.hbm_to_vmem [thread:$0]  %s1, 73728, %s237, [#allocation5], 256, 256, 16
        $region16: #{bottle2neck_forward.1} parent=11 // pred_fallthru
          _
        // Predicated region
        $region17: #{bottle2neck_forward.1} parent=11 // pred_check
          %p243 = pneg %p84
        $region18: #{bottle2neck_forward.1} parent=11 // pred_check_branch
          %245 = sbr.rel (%p243) target = $region20
        $region19: #{bottle2neck_forward.1} parent=11 // pred_region
          %s247 = ssub.s32 512, 512
          %248 = vsyncadd [#allocation7], %s247
          %s249 = sshll.u32 [#allocation6], 4
          %s250 = int_to_ptr.vmem [resolvable:$true] %s249
          %255 = dma.hbm_to_vmem [thread:$0]  %s2, 512, %s250, [#allocation7], 128, 128, 8
        $region20: #{bottle2neck_forward.1} parent=11 // pred_fallthru
          _
        // Predicated region
        $region21: #{bottle2neck_forward.1} parent=11 // pred_check
          %p256 = pneg %p105
        $region22: #{bottle2neck_forward.1} parent=11 // pred_check_branch
          %258 = sbr.rel (%p256) target = $region24
        $region23: #{bottle2neck_forward.1} parent=11 // pred_region
          _
        $region24: #{bottle2neck_forward.1} parent=11 // pred_fallthru
          _
        // Predicated region
        $region25: #{bottle2neck_forward.1} parent=11 // pred_check
          %p259 = pneg %p126
        $region26: #{bottle2neck_forward.1} parent=11 // pred_check_branch
          %261 = sbr.rel (%p259) target = $region28
        $region27: #{bottle2neck_forward.1} parent=11 // pred_region
          %s263 = ssub.s32 384, 384
          %264 = vsyncadd [#allocation7], %s263
          %s265 = sshll.u32 [#allocation8], 4
          %s266 = int_to_ptr.vmem [resolvable:$true] %s265
          %271 = dma.hbm_to_vmem [thread:$0]  %s4, 384, %s266, [#allocation7], 128, 128, 8
        $region28: #{bottle2neck_forward.1} parent=11 // pred_fallthru
          _
        // Predicated region
        $region29: #{bottle2neck_forward.1} parent=11 // pred_check
          %p272 = pneg %p147
        $region30: #{bottle2neck_forward.1} parent=11 // pred_check_branch
          %274 = sbr.rel (%p272) target = $region32
        $region31: #{bottle2neck_forward.1} parent=11 // pred_region
          _
        $region32: #{bottle2neck_forward.1} parent=11 // pred_fallthru
          _
        // Predicated region
        $region33: #{bottle2neck_forward.1} parent=11 // pred_check
          %p275 = pneg %p168
        $region34: #{bottle2neck_forward.1} parent=11 // pred_check_branch
          %277 = sbr.rel (%p275) target = $region36
        $region35: #{bottle2neck_forward.1} parent=11 // pred_region
          _
        $region36: #{bottle2neck_forward.1} parent=11 // pred_fallthru
          _
        // Predicated region
        $region37: #{bottle2neck_forward.1} parent=11 // pred_check
          %p278 = pneg %p189
        $region38: #{bottle2neck_forward.1} parent=11 // pred_check_branch
          %280 = sbr.rel (%p278) target = $region40
        $region39: #{bottle2neck_forward.1} parent=11 // pred_region
          _
        $region40: #{bottle2neck_forward.1} parent=11 // pred_fallthru
          _
      $region12: #{bottle2neck_forward.1} parent=5 // pred_fallthru
        _
      %p281 = scmp.lt.s32.totalorder %s16, 2
      // Predicated region
      $region41: #{bottle2neck_forward.1} parent=5 // pred_check
        %p282 = pneg %p281
      $region42: #{bottle2neck_forward.1} parent=5 // pred_check_branch
        %284 = sbr.rel (%p282) target = $region44
      $region43: #{bottle2neck_forward.1} parent=5 // pred_region
        // Predicated region
        $region45: #{bottle2neck_forward.1} parent=43 // pred_check
          %p285 = pneg %p36
        $region46: #{bottle2neck_forward.1} parent=43 // pred_check_branch
          %287 = sbr.rel (%p285) target = $region48
        $region47: #{bottle2neck_forward.1} parent=43 // pred_region
          %p288 = scmp.lt.s32.totalorder %s16, 1
          %s289 = scalar_select %p288, %s16, 1
          %s290 = smul.addr %s289, 16
          %s291 = smul.addr %s290, 8
          %s292 = scalar_lea.vmem %s0, %s291
        $region48: #{bottle2neck_forward.1} parent=43 // pred_fallthru
          _
      $region44: #{bottle2neck_forward.1} parent=5 // pred_fallthru
        _
      %p293 = scmp.le.s32.totalorder 1, %s16
      %p294 = scmp.lt.s32.totalorder %s16, 3
      %p295 = pnand %p293, %p294
      %p296 = pneg %p295
      // Predicated region
      $region49: #{bottle2neck_forward.1} parent=5 // pred_check
        _
      $region50: #{bottle2neck_forward.1} parent=5 // pred_check_branch
        %298 = sbr.rel (%p295) target = $region52
      $region51: #{bottle2neck_forward.1} parent=5 // pred_region
        %s299 = ssub.s32 %s16, 1
        // Predicated region
        $region53: #{bottle2neck_forward.1} parent=51 // pred_check
          %p300 = pneg %p63
        $region54: #{bottle2neck_forward.1} parent=51 // pred_check_branch
          %302 = sbr.rel (%p300) target = $region56
        $region55: #{bottle2neck_forward.1} parent=51 // pred_region
          %303 = dma.done [#allocation5], 73728
        $region56: #{bottle2neck_forward.1} parent=51 // pred_fallthru
          _
        // Predicated region
        $region57: #{bottle2neck_forward.1} parent=51 // pred_check
          %p304 = pneg %p84
        $region58: #{bottle2neck_forward.1} parent=51 // pred_check_branch
          %306 = sbr.rel (%p304) target = $region60
        $region59: #{bottle2neck_forward.1} parent=51 // pred_region
          %307 = dma.done [#allocation7], 512
        $region60: #{bottle2neck_forward.1} parent=51 // pred_fallthru
          _
        // Predicated region
        $region61: #{bottle2neck_forward.1} parent=51 // pred_check
          %p308 = pneg %p126
        $region62: #{bottle2neck_forward.1} parent=51 // pred_check_branch
          %310 = sbr.rel (%p308) target = $region64
        $region63: #{bottle2neck_forward.1} parent=51 // pred_region
          %311 = dma.done [#allocation7], 384
        $region64: #{bottle2neck_forward.1} parent=51 // pred_fallthru
          _
        %p312 = scmp.lt.s32.totalorder %s21, 1
        %s313 = scalar_select %p312, %s21, 1
        %s314 = smul.addr %s313, 16
        %s315 = smul.addr %s314, 8
        %s316 = scalar_lea.vmem %s0, %s315
        %p317 = pneg %p42
        %p318 = pneg %p39
        %p319 = pneg %p63
        %p320 = pneg %p60
        %p321 = pneg %p84
        %p322 = pneg %p81
        %p323 = pneg %p105
        %p324 = pneg %p102
        %p325 = pneg %p126
        %p326 = pneg %p123
        %p327 = pneg %p147
        %p328 = pneg %p144
        %p329 = pneg %p168
        %p330 = pneg %p165
        %p331 = pneg %p189
        %p332 = pneg %p186
        %p333 = pneg %p215
        %p334 = pneg %p212
        %p335 = scmp.lt.s32.totalorder %s21, 1
        %s336 = scalar_select %p335, %s21, 1
        %s337 = smul.addr %s336, 16
        %s338 = smul.addr %s337, 8
        %s339 = scalar_lea.vmem %s8, %s338
        %p340 = scmp.lt.s32.totalorder %s21, 1
        %s341 = scalar_select %p340, %s21, 1
        %s342 = smul.addr %s341, 16
        %s343 = smul.addr %s342, 8
        %s344 = scalar_lea.vmem %s0, %s343
        %p345 = scmp.lt.s32.totalorder %s21, 1
        %s346 = scalar_select %p345, %s21, 1
        %s347 = smul.addr %s346, 16
        %s348 = smul.addr %s347, 8
        %s349 = scalar_lea.vmem %s8, %s348
        %v350 = vld [vmem:[%s344] sm:$0xff]
        %v351 = vld [vmem:[%s344 + $0x8] sm:$0xff]
        %v352 = vld [vmem:[%s344 + $0x10] sm:$0xff]
        %v353 = vld [vmem:[%s344 + $0x18] sm:$0xff]
        %v354 = vld [vmem:[%s344 + $0x20] sm:$0xff]
        %v355 = vld [vmem:[%s344 + $0x28] sm:$0xff]
        %v356 = vld [vmem:[%s344 + $0x30] sm:$0xff]
        %v357 = vld [vmem:[%s344 + $0x38] sm:$0xff]
        %v358 = vld [vmem:[%s344 + $0x40] sm:$0xff]
        %v359 = vld [vmem:[%s344 + $0x48] sm:$0xff]
        %v360 = vld [vmem:[%s344 + $0x50] sm:$0xff]
        %v361 = vld [vmem:[%s344 + $0x58] sm:$0xff]
        %v362 = vld [vmem:[%s344 + $0x60] sm:$0xff]
        %v363 = vld [vmem:[%s344 + $0x68] sm:$0xff]
        %v364 = vld [vmem:[%s344 + $0x70] sm:$0xff]
        %v365 = vld [vmem:[%s344 + $0x78] sm:$0xff]
        %v366 = vld [vmem:[#allocation6] sm:$0xff]
        %v367 = vld [vmem:[#allocation6 + $0x8] sm:$0xff]
        %v368 = vld [vmem:[#allocation6 + $0x10] sm:$0xff]
        %v369 = vld [vmem:[#allocation6 + $0x18] sm:$0xff]
        %v370 = vld [vmem:[%s3] sm:$0xff]
        %v371 = vld [vmem:[%s3 + $0x8] sm:$0xff]
        %v372 = vld [vmem:[%s3 + $0x10] sm:$0xff]
        %v373 = vld [vmem:[%s3 + $0x18] sm:$0xff]
        %375 = vset.pattern.permute.xlu0 0
        %376 = vperm.xlu0 %375, %v370
        %v377 = vpop.permute.xlu0 %376
        %380 = vset.pattern.permute.xlu0 0
        %381 = vperm.xlu0 %380, %v371
        %v382 = vpop.permute.xlu0 %381
        %385 = vset.pattern.permute.xlu0 0
        %386 = vperm.xlu0 %385, %v372
        %v387 = vpop.permute.xlu0 %386
        %390 = vset.pattern.permute.xlu0 0
        %391 = vperm.xlu0 %390, %v373
        %v392 = vpop.permute.xlu0 %391
        %vm394 = vcmask 523264
        %v396 = vsel %vm394, %v366, 0
        %v399 = vsel %vm394, %v367, 0
        %v402 = vsel %vm394, %v368, 0
        %v405 = vsel %vm394, %v369, 0
        %407 = vmatprep.subr.mxu0 %v351
        %408 = vmatpush1.msra.mxu0 %v350
        %409 = vmatprep.subr.mxu0 %v353
        %410 = vmatpush1.msra.mxu0 %v352
        %411 = vmatprep.subr.mxu0 %v355
        %412 = vmatpush1.msra.mxu0 %v354
        %413 = vmatprep.subr.mxu0 %v357
        %414 = vmatpush1.msra.mxu0 %v356
        %415 = vmatprep.subr.mxu0 %v359
        %416 = vmatpush1.msra.mxu0 %v358
        %417 = vmatprep.subr.mxu0 %v361
        %418 = vmatpush1.msra.mxu0 %v360
        %419 = vmatprep.subr.mxu0 %v363
        %420 = vmatpush1.msra.mxu0 %v362
        %421 = vmatprep.subr.mxu0 %v365
        %422 = vmatpush1.msra.mxu0 %v364
        %423 = vmatprep.subr.mxu0 0.0
        %424 = vmatpush1.msra.mxu0 0.0
        %425 = vmatprep.subr.mxu0 0.0
        %426 = vmatpush1.msra.mxu0 0.0
        %427 = vmatprep.subr.mxu0 0.0
        %428 = vmatpush1.msra.mxu0 0.0
        %429 = vmatprep.subr.mxu0 0.0
        %430 = vmatpush1.msra.mxu0 0.0
        %431 = vmatprep.subr.mxu0 0.0
        %432 = vmatpush1.msra.mxu0 0.0
        %433 = vmatprep.subr.mxu0 0.0
        %434 = vmatpush1.msra.mxu0 0.0
        %435 = vmatprep.subr.mxu0 0.0
        %436 = vmatpush1.msra.mxu0 0.0
        %437 = vmatprep.subr.mxu0 0.0
        %438 = vmatpush1.msra.mxu0 0.0
        %439 = vmatprep.subr.mxu0 0.0
        %440 = vmatpush1.msra.mxu0 0.0
        %441 = vmatprep.subr.mxu0 0.0
        %442 = vmatpush1.msra.mxu0 0.0
        %443 = vmatprep.subr.mxu0 0.0
        %444 = vmatpush1.msra.mxu0 0.0
        %445 = vmatprep.subr.mxu0 0.0
        %446 = vmatpush1.msra.mxu0 0.0
        %447 = vmatprep.subr.mxu0 0.0
        %448 = vmatpush1.msra.mxu0 0.0
        %449 = vmatprep.subr.mxu0 0.0
        %450 = vmatpush1.msra.mxu0 0.0
        %451 = vmatprep.subr.mxu0 0.0
        %452 = vmatpush1.msra.mxu0 0.0
        %453 = vmatprep.subr.mxu0 0.0
        %454 = vmatpush1.msra.mxu0 0.0
        %455 = vmatprep.subr.mxu0 0.0
        %456 = vmatpush1.msra.mxu0 0.0
        %457 = vmatprep.subr.mxu0 0.0
        %458 = vmatpush1.msra.mxu0 0.0
        %459 = vmatprep.subr.mxu0 0.0
        %460 = vmatpush1.msra.mxu0 0.0
        %461 = vmatprep.subr.mxu0 0.0
        %462 = vmatpush1.msra.mxu0 0.0
        %463 = vmatprep.subr.mxu0 0.0
        %464 = vmatpush1.msra.mxu0 0.0
        %465 = vmatprep.subr.mxu0 0.0
        %466 = vmatpush1.msra.mxu0 0.0
        %467 = vmatprep.subr.mxu0 0.0
        %468 = vmatpush1.msra.mxu0 0.0
        %469 = vmatprep.subr.mxu0 0.0
        %470 = vmatpush1.msra.mxu0 0.0
        %471 = vmatprep.mubr.f32.mxu0 0.0
        %472 = vmatmul.mubr.f32.gmra.mrb[0].mxu0 %v396
        %v473 = vpop.f32.mrb[0].mxu0
        %v474 = vadd.f32 %v377, %v473
        %v475 = vpop.f32.mrb[0].mxu0
        %v476 = vadd.f32 %v377, %v475
        %477 = vmatprep.mubr.f32.mxu0 0.0
        %478 = vmatmul.mubr.f32.gmra.mrb[0].mxu0 %v399
        %v479 = vpop.f32.mrb[0].mxu0
        %v480 = vadd.f32 %v382, %v479
        %v481 = vpop.f32.mrb[0].mxu0
        %v482 = vadd.f32 %v382, %v481
        %483 = vmatprep.mubr.f32.mxu0 0.0
        %484 = vmatmul.mubr.f32.gmra.mrb[0].mxu0 %v402
        %v485 = vpop.f32.mrb[0].mxu0
        %v486 = vadd.f32 %v387, %v485
        %v487 = vpop.f32.mrb[0].mxu0
        %v488 = vadd.f32 %v387, %v487
        %489 = vmatprep.mubr.f32.mxu0 0.0
        %490 = vmatmul.mubr.f32.gmra.mrb[0].mxu0 %v405
        %v491 = vpop.f32.mrb[0].mxu0
        %v492 = vadd.f32 %v392, %v491
        %v493 = vpop.f32.mrb[0].mxu0
        %v494 = vadd.f32 %v392, %v493
        %495 = vdwg.mxu0
        %v496 = vmax.f32 %v474, 0.0
        %v497 = vmax.f32 %v476, 0.0
        %v498 = vmax.f32 %v480, 0.0
        %v499 = vmax.f32 %v482, 0.0
        %v500 = vmax.f32 %v486, 0.0
        %v501 = vmax.f32 %v488, 0.0
        %v502 = vmax.f32 %v492, 0.0
        %v503 = vmax.f32 %v494, 0.0
        %504 = vst [vmem:[#allocation2] sm:$0xff] %v496
        %505 = vst [vmem:[#allocation2 + $0x8] sm:$0xff] %v497
        %506 = vst [vmem:[#allocation2 + $0x10] sm:$0xff] %v498
        %507 = vst [vmem:[#allocation2 + $0x18] sm:$0xff] %v499
        %508 = vst [vmem:[#allocation2 + $0x20] sm:$0xff] %v500
        %509 = vst [vmem:[#allocation2 + $0x28] sm:$0xff] %v501
        %510 = vst [vmem:[#allocation2 + $0x30] sm:$0xff] %v502
        %511 = vst [vmem:[#allocation2 + $0x38] sm:$0xff] %v503
        %v512 = vld [vmem:[#allocation2] sm:$0xff]
        %v513 = vld [vmem:[#allocation2 + $0x8] sm:$0xff]
        %v514 = vld [vmem:[#allocation4] sm:$0xff]
        %v515 = vld [vmem:[#allocation4 + $0x8] sm:$0xff]
        %v516 = vld [vmem:[#allocation4 + $0x10] sm:$0xff]
        %v517 = vld [vmem:[#allocation4 + $0x18] sm:$0xff]
        %v518 = vld [vmem:[#allocation4 + $0x20] sm:$0xff]
        %v519 = vld [vmem:[#allocation4 + $0x28] sm:$0xff]
        %v520 = vld [vmem:[#allocation4 + $0x30] sm:$0xff]
        %v521 = vld [vmem:[#allocation4 + $0x38] sm:$0xff]
        %v522 = vld [vmem:[#allocation4 + $0x40] sm:$0xff]
        %v523 = vld [vmem:[#allocation4 + $0x48] sm:$0xff]
        %v524 = vld [vmem:[#allocation4 + $0x50] sm:$0xff]
        %v525 = vld [vmem:[#allocation4 + $0x58] sm:$0xff]
        %v526 = vld [vmem:[#allocation4 + $0x60] sm:$0xff]
        %v527 = vld [vmem:[#allocation4 + $0x68] sm:$0xff]
        %v528 = vld [vmem:[#allocation4 + $0x70] sm:$0xff]
        %v529 = vld [vmem:[#allocation4 + $0x78] sm:$0xff]
        %v530 = vld [vmem:[#allocation4 + $0x80] sm:$0xff]
        %v531 = vld [vmem:[#allocation4 + $0x88] sm:$0xff]
        %v532 = vld [vmem:[#allocation4 + $0x90] sm:$0xff]
        %v533 = vld [vmem:[#allocation4 + $0x98] sm:$0xff]
        %v534 = vld [vmem:[#allocation4 + $0xa0] sm:$0xff]
        %v535 = vld [vmem:[#allocation4 + $0xa8] sm:$0xff]
        %v536 = vld [vmem:[#allocation4 + $0xb0] sm:$0xff]
        %v537 = vld [vmem:[#allocation4 + $0xb8] sm:$0xff]
        %v538 = vld [vmem:[#allocation4 + $0xc0] sm:$0xff]
        %v539 = vld [vmem:[#allocation4 + $0xc8] sm:$0xff]
        %v540 = vld [vmem:[#allocation4 + $0xd0] sm:$0xff]
        %v541 = vld [vmem:[#allocation4 + $0xd8] sm:$0xff]
        %v542 = vld [vmem:[#allocation4 + $0xe0] sm:$0xff]
        %v543 = vld [vmem:[#allocation4 + $0xe8] sm:$0xff]
        %v544 = vld [vmem:[#allocation4 + $0xf0] sm:$0xff]
        %v545 = vld [vmem:[#allocation4 + $0xf8] sm:$0xff]
        %v546 = vld [vmem:[#allocation4 + $0x100] sm:$0xff]
        %v547 = vld [vmem:[#allocation4 + $0x108] sm:$0xff]
        %v548 = vld [vmem:[#allocation4 + $0x110] sm:$0xff]
        %v549 = vld [vmem:[#allocation4 + $0x118] sm:$0xff]
        %v550 = vld [vmem:[#allocation4 + $0x120] sm:$0xff]
        %v551 = vld [vmem:[#allocation4 + $0x128] sm:$0xff]
        %v552 = vld [vmem:[#allocation4 + $0x130] sm:$0xff]
        %v553 = vld [vmem:[#allocation4 + $0x138] sm:$0xff]
        %v554 = vld [vmem:[#allocation4 + $0x140] sm:$0xff]
        %v555 = vld [vmem:[#allocation4 + $0x148] sm:$0xff]
        %v556 = vld [vmem:[#allocation4 + $0x150] sm:$0xff]
        %v557 = vld [vmem:[#allocation4 + $0x158] sm:$0xff]
        %v558 = vld [vmem:[#allocation4 + $0x160] sm:$0xff]
        %v559 = vld [vmem:[#allocation4 + $0x168] sm:$0xff]
        %v560 = vld [vmem:[#allocation4 + $0x170] sm:$0xff]
        %v561 = vld [vmem:[#allocation4 + $0x178] sm:$0xff]
        %v562 = vld [vmem:[#allocation4 + $0x180] sm:$0xff]
        %v563 = vld [vmem:[#allocation4 + $0x188] sm:$0xff]
        %v564 = vld [vmem:[#allocation4 + $0x190] sm:$0xff]
        %v565 = vld [vmem:[#allocation4 + $0x198] sm:$0xff]
        %v566 = vld [vmem:[#allocation4 + $0x1a0] sm:$0xff]
        %v567 = vld [vmem:[#allocation4 + $0x1a8] sm:$0xff]
        %v568 = vld [vmem:[#allocation4 + $0x1b0] sm:$0xff]
        %v569 = vld [vmem:[#allocation4 + $0x1b8] sm:$0xff]
        %v570 = vld [vmem:[#allocation4 + $0x1c0] sm:$0xff]
        %v571 = vld [vmem:[#allocation4 + $0x1c8] sm:$0xff]
        %v572 = vld [vmem:[#allocation4 + $0x1d0] sm:$0xff]
        %v573 = vld [vmem:[#allocation4 + $0x1d8] sm:$0xff]
        %v574 = vld [vmem:[#allocation4 + $0x1e0] sm:$0xff]
        %v575 = vld [vmem:[#allocation4 + $0x1e8] sm:$0xff]
        %v576 = vld [vmem:[#allocation4 + $0x1f0] sm:$0xff]
        %v577 = vld [vmem:[#allocation4 + $0x1f8] sm:$0xff]
        %578 = vmatprep.subr.mxu0 %v515
        %579 = vmatpush1.msra.mxu0 %v514
        %580 = vmatprep.subr.mxu0 %v517
        %581 = vmatpush1.msra.mxu0 %v516
        %582 = vmatprep.subr.mxu0 %v519
        %583 = vmatpush1.msra.mxu0 %v518
        %584 = vmatprep.subr.mxu0 %v521
        %585 = vmatpush1.msra.mxu0 %v520
        %586 = vmatprep.subr.mxu0 %v523
        %587 = vmatpush1.msra.mxu0 %v522
        %588 = vmatprep.subr.mxu0 %v525
        %589 = vmatpush1.msra.mxu0 %v524
        %590 = vmatprep.subr.mxu0 %v527
        %591 = vmatpush1.msra.mxu0 %v526
        %592 = vmatprep.subr.mxu0 %v529
        %593 = vmatpush1.msra.mxu0 %v528
        %594 = vmatprep.subr.mxu0 %v531
        %595 = vmatpush1.msra.mxu0 %v530
        %596 = vmatprep.subr.mxu0 %v533
        %597 = vmatpush1.msra.mxu0 %v532
        %598 = vmatprep.subr.mxu0 %v535
        %599 = vmatpush1.msra.mxu0 %v534
        %600 = vmatprep.subr.mxu0 %v537
        %601 = vmatpush1.msra.mxu0 %v536
        %602 = vmatprep.subr.mxu0 %v539
        %603 = vmatpush1.msra.mxu0 %v538
        %604 = vmatprep.subr.mxu0 %v541
        %605 = vmatpush1.msra.mxu0 %v540
        %606 = vmatprep.subr.mxu0 %v543
        %607 = vmatpush1.msra.mxu0 %v542
        %608 = vmatprep.subr.mxu0 %v545
        %609 = vmatpush1.msra.mxu0 %v544
        %610 = vmatprep.subr.mxu0 %v547
        %611 = vmatpush1.msra.mxu0 %v546
        %612 = vmatprep.subr.mxu0 %v549
        %613 = vmatpush1.msra.mxu0 %v548
        %614 = vmatprep.subr.mxu0 %v551
        %615 = vmatpush1.msra.mxu0 %v550
        %616 = vmatprep.subr.mxu0 %v553
        %617 = vmatpush1.msra.mxu0 %v552
        %618 = vmatprep.subr.mxu0 %v555
        %619 = vmatpush1.msra.mxu0 %v554
        %620 = vmatprep.subr.mxu0 %v557
        %621 = vmatpush1.msra.mxu0 %v556
        %622 = vmatprep.subr.mxu0 %v559
        %623 = vmatpush1.msra.mxu0 %v558
        %624 = vmatprep.subr.mxu0 %v561
        %625 = vmatpush1.msra.mxu0 %v560
        %626 = vmatprep.subr.mxu0 %v563
        %627 = vmatpush1.msra.mxu0 %v562
        %628 = vmatprep.subr.mxu0 %v565
        %629 = vmatpush1.msra.mxu0 %v564
        %630 = vmatprep.subr.mxu0 %v567
        %631 = vmatpush1.msra.mxu0 %v566
        %632 = vmatprep.subr.mxu0 %v569
        %633 = vmatpush1.msra.mxu0 %v568
        %634 = vmatprep.subr.mxu0 %v571
        %635 = vmatpush1.msra.mxu0 %v570
        %636 = vmatprep.subr.mxu0 %v573
        %637 = vmatpush1.msra.mxu0 %v572
        %638 = vmatprep.subr.mxu0 %v575
        %639 = vmatpush1.msra.mxu0 %v574
        %640 = vmatprep.subr.mxu0 %v577
        %641 = vmatpush1.msra.mxu0 %v576
        %642 = vmatprep.mubr.f32.mxu0 %v513
        %643 = vmatmul.mubr.f32.gmra.mrb[0].mxu0 %v512
        %v644 = vpop.f32.mrb[0].mxu0
        %v645 = vadd.f32 0.0, %v644
        %v646 = vpop.f32.mrb[0].mxu0
        %v647 = vadd.f32 0.0, %v646
        %648 = vdwg.mxu0
        %649 = vst [vmem:[#allocation3] sm:$0xff] %v645
        %650 = vst [vmem:[#allocation3 + $0x8] sm:$0xff] %v647
        %s651 = scalar_lea.vmem [#allocation4], 512
        %v652 = vld [vmem:[%s651] sm:$0xff]
        %v653 = vld [vmem:[%s651 + $0x8] sm:$0xff]
        %v654 = vld [vmem:[%s651 + $0x10] sm:$0xff]
        %v655 = vld [vmem:[%s651 + $0x18] sm:$0xff]
        %v656 = vld [vmem:[%s651 + $0x20] sm:$0xff]
        %v657 = vld [vmem:[%s651 + $0x28] sm:$0xff]
        %v658 = vld [vmem:[%s651 + $0x30] sm:$0xff]
        %v659 = vld [vmem:[%s651 + $0x38] sm:$0xff]
        %v660 = vld [vmem:[%s651 + $0x40] sm:$0xff]
        %v661 = vld [vmem:[%s651 + $0x48] sm:$0xff]
        %v662 = vld [vmem:[%s651 + $0x50] sm:$0xff]
        %v663 = vld [vmem:[%s651 + $0x58] sm:$0xff]
        %v664 = vld [vmem:[%s651 + $0x60] sm:$0xff]
        %v665 = vld [vmem:[%s651 + $0x68] sm:$0xff]
        %v666 = vld [vmem:[%s651 + $0x70] sm:$0xff]
        %v667 = vld [vmem:[%s651 + $0x78] sm:$0xff]
        %v668 = vld [vmem:[%s651 + $0x80] sm:$0xff]
        %v669 = vld [vmem:[%s651 + $0x88] sm:$0xff]
        %v670 = vld [vmem:[%s651 + $0x90] sm:$0xff]
        %v671 = vld [vmem:[%s651 + $0x98] sm:$0xff]
        %v672 = vld [vmem:[%s651 + $0xa0] sm:$0xff]
        %v673 = vld [vmem:[%s651 + $0xa8] sm:$0xff]
        %v674 = vld [vmem:[%s651 + $0xb0] sm:$0xff]
        %v675 = vld [vmem:[%s651 + $0xb8] sm:$0xff]
        %v676 = vld [vmem:[%s651 + $0xc0] sm:$0xff]
        %v677 = vld [vmem:[%s651 + $0xc8] sm:$0xff]
        %v678 = vld [vmem:[%s651 + $0xd0] sm:$0xff]
        %v679 = vld [vmem:[%s651 + $0xd8] sm:$0xff]
        %v680 = vld [vmem:[%s651 + $0xe0] sm:$0xff]
        %v681 = vld [vmem:[%s651 + $0xe8] sm:$0xff]
        %v682 = vld [vmem:[%s651 + $0xf0] sm:$0xff]
        %v683 = vld [vmem:[%s651 + $0xf8] sm:$0xff]
        %v684 = vld [vmem:[%s651 + $0x100] sm:$0xff]
        %v685 = vld [vmem:[%s651 + $0x108] sm:$0xff]
        %v686 = vld [vmem:[%s651 + $0x110] sm:$0xff]
        %v687 = vld [vmem:[%s651 + $0x118] sm:$0xff]
        %v688 = vld [vmem:[%s651 + $0x120] sm:$0xff]
        %v689 = vld [vmem:[%s651 + $0x128] sm:$0xff]
        %v690 = vld [vmem:[%s651 + $0x130] sm:$0xff]
        %v691 = vld [vmem:[%s651 + $0x138] sm:$0xff]
        %v692 = vld [vmem:[%s651 + $0x140] sm:$0xff]
        %v693 = vld [vmem:[%s651 + $0x148] sm:$0xff]
        %v694 = vld [vmem:[%s651 + $0x150] sm:$0xff]
        %v695 = vld [vmem:[%s651 + $0x158] sm:$0xff]
        %v696 = vld [vmem:[%s651 + $0x160] sm:$0xff]
        %v697 = vld [vmem:[%s651 + $0x168] sm:$0xff]
        %v698 = vld [vmem:[%s651 + $0x170] sm:$0xff]
        %v699 = vld [vmem:[%s651 + $0x178] sm:$0xff]
        %v700 = vld [vmem:[%s651 + $0x180] sm:$0xff]
        %v701 = vld [vmem:[%s651 + $0x188] sm:$0xff]
        %v702 = vld [vmem:[%s651 + $0x190] sm:$0xff]
        %v703 = vld [vmem:[%s651 + $0x198] sm:$0xff]
        %v704 = vld [vmem:[%s651 + $0x1a0] sm:$0xff]
        %v705 = vld [vmem:[%s651 + $0x1a8] sm:$0xff]
        %v706 = vld [vmem:[%s651 + $0x1b0] sm:$0xff]
        %v707 = vld [vmem:[%s651 + $0x1b8] sm:$0xff]
        %v708 = vld [vmem:[%s651 + $0x1c0] sm:$0xff]
        %v709 = vld [vmem:[%s651 + $0x1c8] sm:$0xff]
        %v710 = vld [vmem:[%s651 + $0x1d0] sm:$0xff]
        %v711 = vld [vmem:[%s651 + $0x1d8] sm:$0xff]
        %v712 = vld [vmem:[%s651 + $0x1e0] sm:$0xff]
        %v713 = vld [vmem:[%s651 + $0x1e8] sm:$0xff]
        %v714 = vld [vmem:[%s651 + $0x1f0] sm:$0xff]
        %v715 = vld [vmem:[%s651 + $0x1f8] sm:$0xff]
        %716 = vmatprep.subr.mxu0 %v653
        %717 = vmatpush1.msra.mxu0 %v652
        %718 = vmatprep.subr.mxu0 %v655
        %719 = vmatpush1.msra.mxu0 %v654
        %720 = vmatprep.subr.mxu0 %v657
        %721 = vmatpush1.msra.mxu0 %v656
        %722 = vmatprep.subr.mxu0 %v659
        %723 = vmatpush1.msra.mxu0 %v658
        %724 = vmatprep.subr.mxu0 %v661
        %725 = vmatpush1.msra.mxu0 %v660
        %726 = vmatprep.subr.mxu0 %v663
        %727 = vmatpush1.msra.mxu0 %v662
        %728 = vmatprep.subr.mxu0 %v665
        %729 = vmatpush1.msra.mxu0 %v664
        %730 = vmatprep.subr.mxu0 %v667
        %731 = vmatpush1.msra.mxu0 %v666
        %732 = vmatprep.subr.mxu0 %v669
        %733 = vmatpush1.msra.mxu0 %v668
        %734 = vmatprep.subr.mxu0 %v671
        %735 = vmatpush1.msra.mxu0 %v670
        %736 = vmatprep.subr.mxu0 %v673
        %737 = vmatpush1.msra.mxu0 %v672
        %738 = vmatprep.subr.mxu0 %v675
        %739 = vmatpush1.msra.mxu0 %v674
        %740 = vmatprep.subr.mxu0 %v677
        %741 = vmatpush1.msra.mxu0 %v676
        %742 = vmatprep.subr.mxu0 %v679
        %743 = vmatpush1.msra.mxu0 %v678
        %744 = vmatprep.subr.mxu0 %v681
        %745 = vmatpush1.msra.mxu0 %v680
        %746 = vmatprep.subr.mxu0 %v683
        %747 = vmatpush1.msra.mxu0 %v682
        %748 = vmatprep.subr.mxu0 %v685
        %749 = vmatpush1.msra.mxu0 %v684
        %750 = vmatprep.subr.mxu0 %v687
        %751 = vmatpush1.msra.mxu0 %v686
        %752 = vmatprep.subr.mxu0 %v689
        %753 = vmatpush1.msra.mxu0 %v688
        %754 = vmatprep.subr.mxu0 %v691
        %755 = vmatpush1.msra.mxu0 %v690
        %756 = vmatprep.subr.mxu0 %v693
        %757 = vmatpush1.msra.mxu0 %v692
        %758 = vmatprep.subr.mxu0 %v695
        %759 = vmatpush1.msra.mxu0 %v694
        %760 = vmatprep.subr.mxu0 %v697
        %761 = vmatpush1.msra.mxu0 %v696
        %762 = vmatprep.subr.mxu0 %v699
        %763 = vmatpush1.msra.mxu0 %v698
        %764 = vmatprep.subr.mxu0 %v701
        %765 = vmatpush1.msra.mxu0 %v700
        %766 = vmatprep.subr.mxu0 %v703
        %767 = vmatpush1.msra.mxu0 %v702
        %768 = vmatprep.subr.mxu0 %v705
        %769 = vmatpush1.msra.mxu0 %v704
        %770 = vmatprep.subr.mxu0 %v707
        %771 = vmatpush1.msra.mxu0 %v706
        %772 = vmatprep.subr.mxu0 %v709
        %773 = vmatpush1.msra.mxu0 %v708
        %774 = vmatprep.subr.mxu0 %v711
        %775 = vmatpush1.msra.mxu0 %v710
        %776 = vmatprep.subr.mxu0 %v713
        %777 = vmatpush1.msra.mxu0 %v712
        %778 = vmatprep.subr.mxu0 %v715
        %779 = vmatpush1.msra.mxu0 %v714
        %780 = vmatprep.mubr.f32.mxu0 %v513
        %781 = vmatmul.mubr.f32.gmra.mrb[0].mxu0 %v512
        %v782 = vpop.f32.mrb[0].mxu0
        %v783 = vadd.f32 0.0, %v782
        %v784 = vpop.f32.mrb[0].mxu0
        %v785 = vadd.f32 0.0, %v784
        %786 = vdwg.mxu0
        %787 = vst [vmem:[#allocation3 + $0x10] sm:$0xff] %v783
        %788 = vst [vmem:[#allocation3 + $0x18] sm:$0xff] %v785
        %s789 = scalar_lea.vmem [#allocation4], 1024
        %v790 = vld [vmem:[%s789] sm:$0xff]
        %v791 = vld [vmem:[%s789 + $0x8] sm:$0xff]
        %v792 = vld [vmem:[%s789 + $0x10] sm:$0xff]
        %v793 = vld [vmem:[%s789 + $0x18] sm:$0xff]
        %v794 = vld [vmem:[%s789 + $0x20] sm:$0xff]
        %v795 = vld [vmem:[%s789 + $0x28] sm:$0xff]
        %v796 = vld [vmem:[%s789 + $0x30] sm:$0xff]
        %v797 = vld [vmem:[%s789 + $0x38] sm:$0xff]
        %v798 = vld [vmem:[%s789 + $0x40] sm:$0xff]
        %v799 = vld [vmem:[%s789 + $0x48] sm:$0xff]
        %v800 = vld [vmem:[%s789 + $0x50] sm:$0xff]
        %v801 = vld [vmem:[%s789 + $0x58] sm:$0xff]
        %v802 = vld [vmem:[%s789 + $0x60] sm:$0xff]
        %v803 = vld [vmem:[%s789 + $0x68] sm:$0xff]
        %v804 = vld [vmem:[%s789 + $0x70] sm:$0xff]
        %v805 = vld [vmem:[%s789 + $0x78] sm:$0xff]
        %v806 = vld [vmem:[%s789 + $0x80] sm:$0xff]
        %v807 = vld [vmem:[%s789 + $0x88] sm:$0xff]
        %v808 = vld [vmem:[%s789 + $0x90] sm:$0xff]
        %v809 = vld [vmem:[%s789 + $0x98] sm:$0xff]
        %v810 = vld [vmem:[%s789 + $0xa0] sm:$0xff]
        %v811 = vld [vmem:[%s789 + $0xa8] sm:$0xff]
        %v812 = vld [vmem:[%s789 + $0xb0] sm:$0xff]
        %v813 = vld [vmem:[%s789 + $0xb8] sm:$0xff]
        %v814 = vld [vmem:[%s789 + $0xc0] sm:$0xff]
        %v815 = vld [vmem:[%s789 + $0xc8] sm:$0xff]
        %v816 = vld [vmem:[%s789 + $0xd0] sm:$0xff]
        %v817 = vld [vmem:[%s789 + $0xd8] sm:$0xff]
        %v818 = vld [vmem:[%s789 + $0xe0] sm:$0xff]
        %v819 = vld [vmem:[%s789 + $0xe8] sm:$0xff]
        %v820 = vld [vmem:[%s789 + $0xf0] sm:$0xff]
        %v821 = vld [vmem:[%s789 + $0xf8] sm:$0xff]
        %v822 = vld [vmem:[%s789 + $0x100] sm:$0xff]
        %v823 = vld [vmem:[%s789 + $0x108] sm:$0xff]
        %v824 = vld [vmem:[%s789 + $0x110] sm:$0xff]
        %v825 = vld [vmem:[%s789 + $0x118] sm:$0xff]
        %v826 = vld [vmem:[%s789 + $0x120] sm:$0xff]
        %v827 = vld [vmem:[%s789 + $0x128] sm:$0xff]
        %v828 = vld [vmem:[%s789 + $0x130] sm:$0xff]
        %v829 = vld [vmem:[%s789 + $0x138] sm:$0xff]
        %v830 = vld [vmem:[%s789 + $0x140] sm:$0xff]
        %v831 = vld [vmem:[%s789 + $0x148] sm:$0xff]
        %v832 = vld [vmem:[%s789 + $0x150] sm:$0xff]
        %v833 = vld [vmem:[%s789 + $0x158] sm:$0xff]
        %v834 = vld [vmem:[%s789 + $0x160] sm:$0xff]
        %v835 = vld [vmem:[%s789 + $0x168] sm:$0xff]
        %v836 = vld [vmem:[%s789 + $0x170] sm:$0xff]
        %v837 = vld [vmem:[%s789 + $0x178] sm:$0xff]
        %v838 = vld [vmem:[%s789 + $0x180] sm:$0xff]
        %v839 = vld [vmem:[%s789 + $0x188] sm:$0xff]
        %v840 = vld [vmem:[%s789 + $0x190] sm:$0xff]
        %v841 = vld [vmem:[%s789 + $0x198] sm:$0xff]
        %v842 = vld [vmem:[%s789 + $0x1a0] sm:$0xff]
        %v843 = vld [vmem:[%s789 + $0x1a8] sm:$0xff]
        %v844 = vld [vmem:[%s789 + $0x1b0] sm:$0xff]
        %v845 = vld [vmem:[%s789 + $0x1b8] sm:$0xff]
        %v846 = vld [vmem:[%s789 + $0x1c0] sm:$0xff]
        %v847 = vld [vmem:[%s789 + $0x1c8] sm:$0xff]
        %v848 = vld [vmem:[%s789 + $0x1d0] sm:$0xff]
        %v849 = vld [vmem:[%s789 + $0x1d8] sm:$0xff]
        %v850 = vld [vmem:[%s789 + $0x1e0] sm:$0xff]
        %v851 = vld [vmem:[%s789 + $0x1e8] sm:$0xff]
        %v852 = vld [vmem:[%s789 + $0x1f0] sm:$0xff]
        %v853 = vld [vmem:[%s789 + $0x1f8] sm:$0xff]
        %854 = vmatprep.subr.mxu0 %v791
        %855 = vmatpush1.msra.mxu0 %v790
        %856 = vmatprep.subr.mxu0 %v793
        %857 = vmatpush1.msra.mxu0 %v792
        %858 = vmatprep.subr.mxu0 %v795
        %859 = vmatpush1.msra.mxu0 %v794
        %860 = vmatprep.subr.mxu0 %v797
        %861 = vmatpush1.msra.mxu0 %v796
        %862 = vmatprep.subr.mxu0 %v799
        %863 = vmatpush1.msra.mxu0 %v798
        %864 = vmatprep.subr.mxu0 %v801
        %865 = vmatpush1.msra.mxu0 %v800
        %866 = vmatprep.subr.mxu0 %v803
        %867 = vmatpush1.msra.mxu0 %v802
        %868 = vmatprep.subr.mxu0 %v805
        %869 = vmatpush1.msra.mxu0 %v804
        %870 = vmatprep.subr.mxu0 %v807
        %871 = vmatpush1.msra.mxu0 %v806
        %872 = vmatprep.subr.mxu0 %v809
        %873 = vmatpush1.msra.mxu0 %v808
        %874 = vmatprep.subr.mxu0 %v811
        %875 = vmatpush1.msra.mxu0 %v810
        %876 = vmatprep.subr.mxu0 %v813
        %877 = vmatpush1.msra.mxu0 %v812
        %878 = vmatprep.subr.mxu0 %v815
        %879 = vmatpush1.msra.mxu0 %v814
        %880 = vmatprep.subr.mxu0 %v817
        %881 = vmatpush1.msra.mxu0 %v816
        %882 = vmatprep.subr.mxu0 %v819
        %883 = vmatpush1.msra.mxu0 %v818
        %884 = vmatprep.subr.mxu0 %v821
        %885 = vmatpush1.msra.mxu0 %v820
        %886 = vmatprep.subr.mxu0 %v823
        %887 = vmatpush1.msra.mxu0 %v822
        %888 = vmatprep.subr.mxu0 %v825
        %889 = vmatpush1.msra.mxu0 %v824
        %890 = vmatprep.subr.mxu0 %v827
        %891 = vmatpush1.msra.mxu0 %v826
        %892 = vmatprep.subr.mxu0 %v829
        %893 = vmatpush1.msra.mxu0 %v828
        %894 = vmatprep.subr.mxu0 %v831
        %895 = vmatpush1.msra.mxu0 %v830
        %896 = vmatprep.subr.mxu0 %v833
        %897 = vmatpush1.msra.mxu0 %v832
        %898 = vmatprep.subr.mxu0 %v835
        %899 = vmatpush1.msra.mxu0 %v834
        %900 = vmatprep.subr.mxu0 %v837
        %901 = vmatpush1.msra.mxu0 %v836
        %902 = vmatprep.subr.mxu0 %v839
        %903 = vmatpush1.msra.mxu0 %v838
        %904 = vmatprep.subr.mxu0 %v841
        %905 = vmatpush1.msra.mxu0 %v840
        %906 = vmatprep.subr.mxu0 %v843
        %907 = vmatpush1.msra.mxu0 %v842
        %908 = vmatprep.subr.mxu0 %v845
        %909 = vmatpush1.msra.mxu0 %v844
        %910 = vmatprep.subr.mxu0 %v847
        %911 = vmatpush1.msra.mxu0 %v846
        %912 = vmatprep.subr.mxu0 %v849
        %913 = vmatpush1.msra.mxu0 %v848
        %914 = vmatprep.subr.mxu0 %v851
        %915 = vmatpush1.msra.mxu0 %v850
        %916 = vmatprep.subr.mxu0 %v853
        %917 = vmatpush1.msra.mxu0 %v852
        %918 = vmatprep.mubr.f32.mxu0 %v513
        %919 = vmatmul.mubr.f32.gmra.mrb[0].mxu0 %v512
        %v920 = vpop.f32.mrb[0].mxu0
        %v921 = vadd.f32 0.0, %v920
        %v922 = vpop.f32.mrb[0].mxu0
        %v923 = vadd.f32 0.0, %v922
        %924 = vdwg.mxu0
        %925 = vst [vmem:[#allocation3 + $0x20] sm:$0xff] %v921
        %926 = vst [vmem:[#allocation3 + $0x28] sm:$0xff] %v923
        %s927 = scalar_lea.vmem [#allocation4], 1536
        %v928 = vld [vmem:[%s927] sm:$0xff]
        %v929 = vld [vmem:[%s927 + $0x8] sm:$0xff]
        %v930 = vld [vmem:[%s927 + $0x10] sm:$0xff]
        %v931 = vld [vmem:[%s927 + $0x18] sm:$0xff]
        %v932 = vld [vmem:[%s927 + $0x20] sm:$0xff]
        %v933 = vld [vmem:[%s927 + $0x28] sm:$0xff]
        %v934 = vld [vmem:[%s927 + $0x30] sm:$0xff]
        %v935 = vld [vmem:[%s927 + $0x38] sm:$0xff]
        %v936 = vld [vmem:[%s927 + $0x40] sm:$0xff]
        %v937 = vld [vmem:[%s927 + $0x48] sm:$0xff]
        %v938 = vld [vmem:[%s927 + $0x50] sm:$0xff]
        %v939 = vld [vmem:[%s927 + $0x58] sm:$0xff]
        %v940 = vld [vmem:[%s927 + $0x60] sm:$0xff]
        %v941 = vld [vmem:[%s927 + $0x68] sm:$0xff]
        %v942 = vld [vmem:[%s927 + $0x70] sm:$0xff]
        %v943 = vld [vmem:[%s927 + $0x78] sm:$0xff]
        %v944 = vld [vmem:[%s927 + $0x80] sm:$0xff]
        %v945 = vld [vmem:[%s927 + $0x88] sm:$0xff]
        %v946 = vld [vmem:[%s927 + $0x90] sm:$0xff]
        %v947 = vld [vmem:[%s927 + $0x98] sm:$0xff]
        %v948 = vld [vmem:[%s927 + $0xa0] sm:$0xff]
        %v949 = vld [vmem:[%s927 + $0xa8] sm:$0xff]
        %v950 = vld [vmem:[%s927 + $0xb0] sm:$0xff]
        %v951 = vld [vmem:[%s927 + $0xb8] sm:$0xff]
        %v952 = vld [vmem:[%s927 + $0xc0] sm:$0xff]
        %v953 = vld [vmem:[%s927 + $0xc8] sm:$0xff]
        %v954 = vld [vmem:[%s927 + $0xd0] sm:$0xff]
        %v955 = vld [vmem:[%s927 + $0xd8] sm:$0xff]
        %v956 = vld [vmem:[%s927 + $0xe0] sm:$0xff]
        %v957 = vld [vmem:[%s927 + $0xe8] sm:$0xff]
        %v958 = vld [vmem:[%s927 + $0xf0] sm:$0xff]
        %v959 = vld [vmem:[%s927 + $0xf8] sm:$0xff]
        %v960 = vld [vmem:[%s927 + $0x100] sm:$0xff]
        %v961 = vld [vmem:[%s927 + $0x108] sm:$0xff]
        %v962 = vld [vmem:[%s927 + $0x110] sm:$0xff]
        %v963 = vld [vmem:[%s927 + $0x118] sm:$0xff]
        %v964 = vld [vmem:[%s927 + $0x120] sm:$0xff]
        %v965 = vld [vmem:[%s927 + $0x128] sm:$0xff]
        %v966 = vld [vmem:[%s927 + $0x130] sm:$0xff]
        %v967 = vld [vmem:[%s927 + $0x138] sm:$0xff]
        %v968 = vld [vmem:[%s927 + $0x140] sm:$0xff]
        %v969 = vld [vmem:[%s927 + $0x148] sm:$0xff]
        %v970 = vld [vmem:[%s927 + $0x150] sm:$0xff]
        %v971 = vld [vmem:[%s927 + $0x158] sm:$0xff]
        %v972 = vld [vmem:[%s927 + $0x160] sm:$0xff]
        %v973 = vld [vmem:[%s927 + $0x168] sm:$0xff]
        %v974 = vld [vmem:[%s927 + $0x170] sm:$0xff]
        %v975 = vld [vmem:[%s927 + $0x178] sm:$0xff]
        %v976 = vld [vmem:[%s927 + $0x180] sm:$0xff]
        %v977 = vld [vmem:[%s927 + $0x188] sm:$0xff]
        %v978 = vld [vmem:[%s927 + $0x190] sm:$0xff]
        %v979 = vld [vmem:[%s927 + $0x198] sm:$0xff]
        %v980 = vld [vmem:[%s927 + $0x1a0] sm:$0xff]
        %v981 = vld [vmem:[%s927 + $0x1a8] sm:$0xff]
        %v982 = vld [vmem:[%s927 + $0x1b0] sm:$0xff]
        %v983 = vld [vmem:[%s927 + $0x1b8] sm:$0xff]
        %v984 = vld [vmem:[%s927 + $0x1c0] sm:$0xff]
        %v985 = vld [vmem:[%s927 + $0x1c8] sm:$0xff]
        %v986 = vld [vmem:[%s927 + $0x1d0] sm:$0xff]
        %v987 = vld [vmem:[%s927 + $0x1d8] sm:$0xff]
        %v988 = vld [vmem:[%s927 + $0x1e0] sm:$0xff]
        %v989 = vld [vmem:[%s927 + $0x1e8] sm:$0xff]
        %v990 = vld [vmem:[%s927 + $0x1f0] sm:$0xff]
        %v991 = vld [vmem:[%s927 + $0x1f8] sm:$0xff]
        %992 = vmatprep.subr.mxu0 %v929
        %993 = vmatpush1.msra.mxu0 %v928
        %994 = vmatprep.subr.mxu0 %v931
        %995 = vmatpush1.msra.mxu0 %v930
        %996 = vmatprep.subr.mxu0 %v933
        %997 = vmatpush1.msra.mxu0 %v932
        %998 = vmatprep.subr.mxu0 %v935
        %999 = vmatpush1.msra.mxu0 %v934
        %1000 = vmatprep.subr.mxu0 %v937
        %1001 = vmatpush1.msra.mxu0 %v936
        %1002 = vmatprep.subr.mxu0 %v939
        %1003 = vmatpush1.msra.mxu0 %v938
        %1004 = vmatprep.subr.mxu0 %v941
        %1005 = vmatpush1.msra.mxu0 %v940
        %1006 = vmatprep.subr.mxu0 %v943
        %1007 = vmatpush1.msra.mxu0 %v942
        %1008 = vmatprep.subr.mxu0 %v945
        %1009 = vmatpush1.msra.mxu0 %v944
        %1010 = vmatprep.subr.mxu0 %v947
        %1011 = vmatpush1.msra.mxu0 %v946
        %1012 = vmatprep.subr.mxu0 %v949
        %1013 = vmatpush1.msra.mxu0 %v948
        %1014 = vmatprep.subr.mxu0 %v951
        %1015 = vmatpush1.msra.mxu0 %v950
        %1016 = vmatprep.subr.mxu0 %v953
        %1017 = vmatpush1.msra.mxu0 %v952
        %1018 = vmatprep.subr.mxu0 %v955
        %1019 = vmatpush1.msra.mxu0 %v954
        %1020 = vmatprep.subr.mxu0 %v957
        %1021 = vmatpush1.msra.mxu0 %v956
        %1022 = vmatprep.subr.mxu0 %v959
        %1023 = vmatpush1.msra.mxu0 %v958
        %1024 = vmatprep.subr.mxu0 %v961
        %1025 = vmatpush1.msra.mxu0 %v960
        %1026 = vmatprep.subr.mxu0 %v963
        %1027 = vmatpush1.msra.mxu0 %v962
        %1028 = vmatprep.subr.mxu0 %v965
        %1029 = vmatpush1.msra.mxu0 %v964
        %1030 = vmatprep.subr.mxu0 %v967
        %1031 = vmatpush1.msra.mxu0 %v966
        %1032 = vmatprep.subr.mxu0 %v969
        %1033 = vmatpush1.msra.mxu0 %v968
        %1034 = vmatprep.subr.mxu0 %v971
        %1035 = vmatpush1.msra.mxu0 %v970
        %1036 = vmatprep.subr.mxu0 %v973
        %1037 = vmatpush1.msra.mxu0 %v972
        %1038 = vmatprep.subr.mxu0 %v975
        %1039 = vmatpush1.msra.mxu0 %v974
        %1040 = vmatprep.subr.mxu0 %v977
        %1041 = vmatpush1.msra.mxu0 %v976
        %1042 = vmatprep.subr.mxu0 %v979
        %1043 = vmatpush1.msra.mxu0 %v978
        %1044 = vmatprep.subr.mxu0 %v981
        %1045 = vmatpush1.msra.mxu0 %v980
        %1046 = vmatprep.subr.mxu0 %v983
        %1047 = vmatpush1.msra.mxu0 %v982
        %1048 = vmatprep.subr.mxu0 %v985
        %1049 = vmatpush1.msra.mxu0 %v984
        %1050 = vmatprep.subr.mxu0 %v987
        %1051 = vmatpush1.msra.mxu0 %v986
        %1052 = vmatprep.subr.mxu0 %v989
        %1053 = vmatpush1.msra.mxu0 %v988
        %1054 = vmatprep.subr.mxu0 %v991
        %1055 = vmatpush1.msra.mxu0 %v990
        %1056 = vmatprep.mubr.f32.mxu0 %v513
        %1057 = vmatmul.mubr.f32.gmra.mrb[0].mxu0 %v512
        %v1058 = vpop.f32.mrb[0].mxu0
        %v1059 = vadd.f32 0.0, %v1058
        %v1060 = vpop.f32.mrb[0].mxu0
        %v1061 = vadd.f32 0.0, %v1060
        %1062 = vdwg.mxu0
        %1063 = vst [vmem:[#allocation3 + $0x30] sm:$0xff] %v1059
        %1064 = vst [vmem:[#allocation3 + $0x38] sm:$0xff] %v1061
        %s1065 = scalar_lea.vmem [#allocation4], 2048
        %v1066 = vld [vmem:[%s1065] sm:$0xff]
        %v1067 = vld [vmem:[%s1065 + $0x8] sm:$0xff]
        %v1068 = vld [vmem:[%s1065 + $0x10] sm:$0xff]
        %v1069 = vld [vmem:[%s1065 + $0x18] sm:$0xff]
        %v1070 = vld [vmem:[%s1065 + $0x20] sm:$0xff]
        %v1071 = vld [vmem:[%s1065 + $0x28] sm:$0xff]
        %v1072 = vld [vmem:[%s1065 + $0x30] sm:$0xff]
        %v1073 = vld [vmem:[%s1065 + $0x38] sm:$0xff]
        %v1074 = vld [vmem:[%s1065 + $0x40] sm:$0xff]
        %v1075 = vld [vmem:[%s1065 + $0x48] sm:$0xff]
        %v1076 = vld [vmem:[%s1065 + $0x50] sm:$0xff]
        %v1077 = vld [vmem:[%s1065 + $0x58] sm:$0xff]
        %v1078 = vld [vmem:[%s1065 + $0x60] sm:$0xff]
        %v1079 = vld [vmem:[%s1065 + $0x68] sm:$0xff]
        %v1080 = vld [vmem:[%s1065 + $0x70] sm:$0xff]
        %v1081 = vld [vmem:[%s1065 + $0x78] sm:$0xff]
        %v1082 = vld [vmem:[%s1065 + $0x80] sm:$0xff]
        %v1083 = vld [vmem:[%s1065 + $0x88] sm:$0xff]
        %v1084 = vld [vmem:[%s1065 + $0x90] sm:$0xff]
        %v1085 = vld [vmem:[%s1065 + $0x98] sm:$0xff]
        %v1086 = vld [vmem:[%s1065 + $0xa0] sm:$0xff]
        %v1087 = vld [vmem:[%s1065 + $0xa8] sm:$0xff]
        %v1088 = vld [vmem:[%s1065 + $0xb0] sm:$0xff]
        %v1089 = vld [vmem:[%s1065 + $0xb8] sm:$0xff]
        %v1090 = vld [vmem:[%s1065 + $0xc0] sm:$0xff]
        %v1091 = vld [vmem:[%s1065 + $0xc8] sm:$0xff]
        %v1092 = vld [vmem:[%s1065 + $0xd0] sm:$0xff]
        %v1093 = vld [vmem:[%s1065 + $0xd8] sm:$0xff]
        %v1094 = vld [vmem:[%s1065 + $0xe0] sm:$0xff]
        %v1095 = vld [vmem:[%s1065 + $0xe8] sm:$0xff]
        %v1096 = vld [vmem:[%s1065 + $0xf0] sm:$0xff]
        %v1097 = vld [vmem:[%s1065 + $0xf8] sm:$0xff]
        %v1098 = vld [vmem:[%s1065 + $0x100] sm:$0xff]
        %v1099 = vld [vmem:[%s1065 + $0x108] sm:$0xff]
        %v1100 = vld [vmem:[%s1065 + $0x110] sm:$0xff]
        %v1101 = vld [vmem:[%s1065 + $0x118] sm:$0xff]
        %v1102 = vld [vmem:[%s1065 + $0x120] sm:$0xff]
        %v1103 = vld [vmem:[%s1065 + $0x128] sm:$0xff]
        %v1104 = vld [vmem:[%s1065 + $0x130] sm:$0xff]
        %v1105 = vld [vmem:[%s1065 + $0x138] sm:$0xff]
        %v1106 = vld [vmem:[%s1065 + $0x140] sm:$0xff]
        %v1107 = vld [vmem:[%s1065 + $0x148] sm:$0xff]
        %v1108 = vld [vmem:[%s1065 + $0x150] sm:$0xff]
        %v1109 = vld [vmem:[%s1065 + $0x158] sm:$0xff]
        %v1110 = vld [vmem:[%s1065 + $0x160] sm:$0xff]
        %v1111 = vld [vmem:[%s1065 + $0x168] sm:$0xff]
        %v1112 = vld [vmem:[%s1065 + $0x170] sm:$0xff]
        %v1113 = vld [vmem:[%s1065 + $0x178] sm:$0xff]
        %v1114 = vld [vmem:[%s1065 + $0x180] sm:$0xff]
        %v1115 = vld [vmem:[%s1065 + $0x188] sm:$0xff]
        %v1116 = vld [vmem:[%s1065 + $0x190] sm:$0xff]
        %v1117 = vld [vmem:[%s1065 + $0x198] sm:$0xff]
        %v1118 = vld [vmem:[%s1065 + $0x1a0] sm:$0xff]
        %v1119 = vld [vmem:[%s1065 + $0x1a8] sm:$0xff]
        %v1120 = vld [vmem:[%s1065 + $0x1b0] sm:$0xff]
        %v1121 = vld [vmem:[%s1065 + $0x1b8] sm:$0xff]
        %v1122 = vld [vmem:[%s1065 + $0x1c0] sm:$0xff]
        %v1123 = vld [vmem:[%s1065 + $0x1c8] sm:$0xff]
        %v1124 = vld [vmem:[%s1065 + $0x1d0] sm:$0xff]
        %v1125 = vld [vmem:[%s1065 + $0x1d8] sm:$0xff]
        %v1126 = vld [vmem:[%s1065 + $0x1e0] sm:$0xff]
        %v1127 = vld [vmem:[%s1065 + $0x1e8] sm:$0xff]
        %v1128 = vld [vmem:[%s1065 + $0x1f0] sm:$0xff]
        %v1129 = vld [vmem:[%s1065 + $0x1f8] sm:$0xff]
        %1130 = vmatprep.subr.mxu0 %v1067
        %1131 = vmatpush1.msra.mxu0 %v1066
        %1132 = vmatprep.subr.mxu0 %v1069
        %1133 = vmatpush1.msra.mxu0 %v1068
        %1134 = vmatprep.subr.mxu0 %v1071
        %1135 = vmatpush1.msra.mxu0 %v1070
        %1136 = vmatprep.subr.mxu0 %v1073
        %1137 = vmatpush1.msra.mxu0 %v1072
        %1138 = vmatprep.subr.mxu0 %v1075
        %1139 = vmatpush1.msra.mxu0 %v1074
        %1140 = vmatprep.subr.mxu0 %v1077
        %1141 = vmatpush1.msra.mxu0 %v1076
        %1142 = vmatprep.subr.mxu0 %v1079
        %1143 = vmatpush1.msra.mxu0 %v1078
        %1144 = vmatprep.subr.mxu0 %v1081
        %1145 = vmatpush1.msra.mxu0 %v1080
        %1146 = vmatprep.subr.mxu0 %v1083
        %1147 = vmatpush1.msra.mxu0 %v1082
        %1148 = vmatprep.subr.mxu0 %v1085
        %1149 = vmatpush1.msra.mxu0 %v1084
        %1150 = vmatprep.subr.mxu0 %v1087
        %1151 = vmatpush1.msra.mxu0 %v1086
        %1152 = vmatprep.subr.mxu0 %v1089
        %1153 = vmatpush1.msra.mxu0 %v1088
        %1154 = vmatprep.subr.mxu0 %v1091
        %1155 = vmatpush1.msra.mxu0 %v1090
        %1156 = vmatprep.subr.mxu0 %v1093
        %1157 = vmatpush1.msra.mxu0 %v1092
        %1158 = vmatprep.subr.mxu0 %v1095
        %1159 = vmatpush1.msra.mxu0 %v1094
        %1160 = vmatprep.subr.mxu0 %v1097
        %1161 = vmatpush1.msra.mxu0 %v1096
        %1162 = vmatprep.subr.mxu0 %v1099
        %1163 = vmatpush1.msra.mxu0 %v1098
        %1164 = vmatprep.subr.mxu0 %v1101
        %1165 = vmatpush1.msra.mxu0 %v1100
        %1166 = vmatprep.subr.mxu0 %v1103
        %1167 = vmatpush1.msra.mxu0 %v1102
        %1168 = vmatprep.subr.mxu0 %v1105
        %1169 = vmatpush1.msra.mxu0 %v1104
        %1170 = vmatprep.subr.mxu0 %v1107
        %1171 = vmatpush1.msra.mxu0 %v1106
        %1172 = vmatprep.subr.mxu0 %v1109
        %1173 = vmatpush1.msra.mxu0 %v1108
        %1174 = vmatprep.subr.mxu0 %v1111
        %1175 = vmatpush1.msra.mxu0 %v1110
        %1176 = vmatprep.subr.mxu0 %v1113
        %1177 = vmatpush1.msra.mxu0 %v1112
        %1178 = vmatprep.subr.mxu0 %v1115
        %1179 = vmatpush1.msra.mxu0 %v1114
        %1180 = vmatprep.subr.mxu0 %v1117
        %1181 = vmatpush1.msra.mxu0 %v1116
        %1182 = vmatprep.subr.mxu0 %v1119
        %1183 = vmatpush1.msra.mxu0 %v1118
        %1184 = vmatprep.subr.mxu0 %v1121
        %1185 = vmatpush1.msra.mxu0 %v1120
        %1186 = vmatprep.subr.mxu0 %v1123
        %1187 = vmatpush1.msra.mxu0 %v1122
        %1188 = vmatprep.subr.mxu0 %v1125
        %1189 = vmatpush1.msra.mxu0 %v1124
        %1190 = vmatprep.subr.mxu0 %v1127
        %1191 = vmatpush1.msra.mxu0 %v1126
        %1192 = vmatprep.subr.mxu0 %v1129
        %1193 = vmatpush1.msra.mxu0 %v1128
        %1194 = vmatprep.mubr.f32.mxu0 %v513
        %1195 = vmatmul.mubr.f32.gmra.mrb[0].mxu0 %v512
        %v1196 = vpop.f32.mrb[0].mxu0
        %v1197 = vadd.f32 0.0, %v1196
        %v1198 = vpop.f32.mrb[0].mxu0
        %v1199 = vadd.f32 0.0, %v1198
        %1200 = vdwg.mxu0
        %1201 = vst [vmem:[#allocation3 + $0x40] sm:$0xff] %v1197
        %1202 = vst [vmem:[#allocation3 + $0x48] sm:$0xff] %v1199
        %s1203 = scalar_lea.vmem [#allocation4], 2560
        %v1204 = vld [vmem:[%s1203] sm:$0xff]
        %v1205 = vld [vmem:[%s1203 + $0x8] sm:$0xff]
        %v1206 = vld [vmem:[%s1203 + $0x10] sm:$0xff]
        %v1207 = vld [vmem:[%s1203 + $0x18] sm:$0xff]
        %v1208 = vld [vmem:[%s1203 + $0x20] sm:$0xff]
        %v1209 = vld [vmem:[%s1203 + $0x28] sm:$0xff]
        %v1210 = vld [vmem:[%s1203 + $0x30] sm:$0xff]
        %v1211 = vld [vmem:[%s1203 + $0x38] sm:$0xff]
        %v1212 = vld [vmem:[%s1203 + $0x40] sm:$0xff]
        %v1213 = vld [vmem:[%s1203 + $0x48] sm:$0xff]
        %v1214 = vld [vmem:[%s1203 + $0x50] sm:$0xff]
        %v1215 = vld [vmem:[%s1203 + $0x58] sm:$0xff]
        %v1216 = vld [vmem:[%s1203 + $0x60] sm:$0xff]
        %v1217 = vld [vmem:[%s1203 + $0x68] sm:$0xff]
        %v1218 = vld [vmem:[%s1203 + $0x70] sm:$0xff]
        %v1219 = vld [vmem:[%s1203 + $0x78] sm:$0xff]
        %v1220 = vld [vmem:[%s1203 + $0x80] sm:$0xff]
        %v1221 = vld [vmem:[%s1203 + $0x88] sm:$0xff]
        %v1222 = vld [vmem:[%s1203 + $0x90] sm:$0xff]
        %v1223 = vld [vmem:[%s1203 + $0x98] sm:$0xff]
        %v1224 = vld [vmem:[%s1203 + $0xa0] sm:$0xff]
        %v1225 = vld [vmem:[%s1203 + $0xa8] sm:$0xff]
        %v1226 = vld [vmem:[%s1203 + $0xb0] sm:$0xff]
        %v1227 = vld [vmem:[%s1203 + $0xb8] sm:$0xff]
        %v1228 = vld [vmem:[%s1203 + $0xc0] sm:$0xff]
        %v1229 = vld [vmem:[%s1203 + $0xc8] sm:$0xff]
        %v1230 = vld [vmem:[%s1203 + $0xd0] sm:$0xff]
        %v1231 = vld [vmem:[%s1203 + $0xd8] sm:$0xff]
        %v1232 = vld [vmem:[%s1203 + $0xe0] sm:$0xff]
        %v1233 = vld [vmem:[%s1203 + $0xe8] sm:$0xff]
        %v1234 = vld [vmem:[%s1203 + $0xf0] sm:$0xff]
        %v1235 = vld [vmem:[%s1203 + $0xf8] sm:$0xff]
        %v1236 = vld [vmem:[%s1203 + $0x100] sm:$0xff]
        %v1237 = vld [vmem:[%s1203 + $0x108] sm:$0xff]
        %v1238 = vld [vmem:[%s1203 + $0x110] sm:$0xff]
        %v1239 = vld [vmem:[%s1203 + $0x118] sm:$0xff]
        %v1240 = vld [vmem:[%s1203 + $0x120] sm:$0xff]
        %v1241 = vld [vmem:[%s1203 + $0x128] sm:$0xff]
        %v1242 = vld [vmem:[%s1203 + $0x130] sm:$0xff]
        %v1243 = vld [vmem:[%s1203 + $0x138] sm:$0xff]
        %v1244 = vld [vmem:[%s1203 + $0x140] sm:$0xff]
        %v1245 = vld [vmem:[%s1203 + $0x148] sm:$0xff]
        %v1246 = vld [vmem:[%s1203 + $0x150] sm:$0xff]
        %v1247 = vld [vmem:[%s1203 + $0x158] sm:$0xff]
        %v1248 = vld [vmem:[%s1203 + $0x160] sm:$0xff]
        %v1249 = vld [vmem:[%s1203 + $0x168] sm:$0xff]
        %v1250 = vld [vmem:[%s1203 + $0x170] sm:$0xff]
        %v1251 = vld [vmem:[%s1203 + $0x178] sm:$0xff]
        %v1252 = vld [vmem:[%s1203 + $0x180] sm:$0xff]
        %v1253 = vld [vmem:[%s1203 + $0x188] sm:$0xff]
        %v1254 = vld [vmem:[%s1203 + $0x190] sm:$0xff]
        %v1255 = vld [vmem:[%s1203 + $0x198] sm:$0xff]
        %v1256 = vld [vmem:[%s1203 + $0x1a0] sm:$0xff]
        %v1257 = vld [vmem:[%s1203 + $0x1a8] sm:$0xff]
        %v1258 = vld [vmem:[%s1203 + $0x1b0] sm:$0xff]
        %v1259 = vld [vmem:[%s1203 + $0x1b8] sm:$0xff]
        %v1260 = vld [vmem:[%s1203 + $0x1c0] sm:$0xff]
        %v1261 = vld [vmem:[%s1203 + $0x1c8] sm:$0xff]
        %v1262 = vld [vmem:[%s1203 + $0x1d0] sm:$0xff]
        %v1263 = vld [vmem:[%s1203 + $0x1d8] sm:$0xff]
        %v1264 = vld [vmem:[%s1203 + $0x1e0] sm:$0xff]
        %v1265 = vld [vmem:[%s1203 + $0x1e8] sm:$0xff]
        %v1266 = vld [vmem:[%s1203 + $0x1f0] sm:$0xff]
        %v1267 = vld [vmem:[%s1203 + $0x1f8] sm:$0xff]
        %1268 = vmatprep.subr.mxu0 %v1205
        %1269 = vmatpush1.msra.mxu0 %v1204
        %1270 = vmatprep.subr.mxu0 %v1207
        %1271 = vmatpush1.msra.mxu0 %v1206
        %1272 = vmatprep.subr.mxu0 %v1209
        %1273 = vmatpush1.msra.mxu0 %v1208
        %1274 = vmatprep.subr.mxu0 %v1211
        %1275 = vmatpush1.msra.mxu0 %v1210
        %1276 = vmatprep.subr.mxu0 %v1213
        %1277 = vmatpush1.msra.mxu0 %v1212
        %1278 = vmatprep.subr.mxu0 %v1215
        %1279 = vmatpush1.msra.mxu0 %v1214
        %1280 = vmatprep.subr.mxu0 %v1217
        %1281 = vmatpush1.msra.mxu0 %v1216
        %1282 = vmatprep.subr.mxu0 %v1219
        %1283 = vmatpush1.msra.mxu0 %v1218
        %1284 = vmatprep.subr.mxu0 %v1221
        %1285 = vmatpush1.msra.mxu0 %v1220
        %1286 = vmatprep.subr.mxu0 %v1223
        %1287 = vmatpush1.msra.mxu0 %v1222
        %1288 = vmatprep.subr.mxu0 %v1225
        %1289 = vmatpush1.msra.mxu0 %v1224
        %1290 = vmatprep.subr.mxu0 %v1227
        %1291 = vmatpush1.msra.mxu0 %v1226
        %1292 = vmatprep.subr.mxu0 %v1229
        %1293 = vmatpush1.msra.mxu0 %v1228
        %1294 = vmatprep.subr.mxu0 %v1231
        %1295 = vmatpush1.msra.mxu0 %v1230
        %1296 = vmatprep.subr.mxu0 %v1233
        %1297 = vmatpush1.msra.mxu0 %v1232
        %1298 = vmatprep.subr.mxu0 %v1235
        %1299 = vmatpush1.msra.mxu0 %v1234
        %1300 = vmatprep.subr.mxu0 %v1237
        %1301 = vmatpush1.msra.mxu0 %v1236
        %1302 = vmatprep.subr.mxu0 %v1239
        %1303 = vmatpush1.msra.mxu0 %v1238
        %1304 = vmatprep.subr.mxu0 %v1241
        %1305 = vmatpush1.msra.mxu0 %v1240
        %1306 = vmatprep.subr.mxu0 %v1243
        %1307 = vmatpush1.msra.mxu0 %v1242
        %1308 = vmatprep.subr.mxu0 %v1245
        %1309 = vmatpush1.msra.mxu0 %v1244
        %1310 = vmatprep.subr.mxu0 %v1247
        %1311 = vmatpush1.msra.mxu0 %v1246
        %1312 = vmatprep.subr.mxu0 %v1249
        %1313 = vmatpush1.msra.mxu0 %v1248
        %1314 = vmatprep.subr.mxu0 %v1251
        %1315 = vmatpush1.msra.mxu0 %v1250
        %1316 = vmatprep.subr.mxu0 %v1253
        %1317 = vmatpush1.msra.mxu0 %v1252
        %1318 = vmatprep.subr.mxu0 %v1255
        %1319 = vmatpush1.msra.mxu0 %v1254
        %1320 = vmatprep.subr.mxu0 %v1257
        %1321 = vmatpush1.msra.mxu0 %v1256
        %1322 = vmatprep.subr.mxu0 %v1259
        %1323 = vmatpush1.msra.mxu0 %v1258
        %1324 = vmatprep.subr.mxu0 %v1261
        %1325 = vmatpush1.msra.mxu0 %v1260
        %1326 = vmatprep.subr.mxu0 %v1263
        %1327 = vmatpush1.msra.mxu0 %v1262
        %1328 = vmatprep.subr.mxu0 %v1265
        %1329 = vmatpush1.msra.mxu0 %v1264
        %1330 = vmatprep.subr.mxu0 %v1267
        %1331 = vmatpush1.msra.mxu0 %v1266
        %1332 = vmatprep.mubr.f32.mxu0 %v513
        %1333 = vmatmul.mubr.f32.gmra.mrb[0].mxu0 %v512
        %v1334 = vpop.f32.mrb[0].mxu0
        %v1335 = vadd.f32 0.0, %v1334
        %v1336 = vpop.f32.mrb[0].mxu0
        %v1337 = vadd.f32 0.0, %v1336
        %1338 = vdwg.mxu0
        %1339 = vst [vmem:[#allocation3 + $0x50] sm:$0xff] %v1335
        %1340 = vst [vmem:[#allocation3 + $0x58] sm:$0xff] %v1337
        %s1341 = scalar_lea.vmem [#allocation4], 3072
        %v1342 = vld [vmem:[%s1341] sm:$0xff]
        %v1343 = vld [vmem:[%s1341 + $0x8] sm:$0xff]
        %v1344 = vld [vmem:[%s1341 + $0x10] sm:$0xff]
        %v1345 = vld [vmem:[%s1341 + $0x18] sm:$0xff]
        %v1346 = vld [vmem:[%s1341 + $0x20] sm:$0xff]
        %v1347 = vld [vmem:[%s1341 + $0x28] sm:$0xff]
        %v1348 = vld [vmem:[%s1341 + $0x30] sm:$0xff]
        %v1349 = vld [vmem:[%s1341 + $0x38] sm:$0xff]
        %v1350 = vld [vmem:[%s1341 + $0x40] sm:$0xff]
        %v1351 = vld [vmem:[%s1341 + $0x48] sm:$0xff]
        %v1352 = vld [vmem:[%s1341 + $0x50] sm:$0xff]
        %v1353 = vld [vmem:[%s1341 + $0x58] sm:$0xff]
        %v1354 = vld [vmem:[%s1341 + $0x60] sm:$0xff]
        %v1355 = vld [vmem:[%s1341 + $0x68] sm:$0xff]
        %v1356 = vld [vmem:[%s1341 + $0x70] sm:$0xff]
        %v1357 = vld [vmem:[%s1341 + $0x78] sm:$0xff]
        %v1358 = vld [vmem:[%s1341 + $0x80] sm:$0xff]
        %v1359 = vld [vmem:[%s1341 + $0x88] sm:$0xff]
        %v1360 = vld [vmem:[%s1341 + $0x90] sm:$0xff]
        %v1361 = vld [vmem:[%s1341 + $0x98] sm:$0xff]
        %v1362 = vld [vmem:[%s1341 + $0xa0] sm:$0xff]
        %v1363 = vld [vmem:[%s1341 + $0xa8] sm:$0xff]
        %v1364 = vld [vmem:[%s1341 + $0xb0] sm:$0xff]
        %v1365 = vld [vmem:[%s1341 + $0xb8] sm:$0xff]
        %v1366 = vld [vmem:[%s1341 + $0xc0] sm:$0xff]
        %v1367 = vld [vmem:[%s1341 + $0xc8] sm:$0xff]
        %v1368 = vld [vmem:[%s1341 + $0xd0] sm:$0xff]
        %v1369 = vld [vmem:[%s1341 + $0xd8] sm:$0xff]
        %v1370 = vld [vmem:[%s1341 + $0xe0] sm:$0xff]
        %v1371 = vld [vmem:[%s1341 + $0xe8] sm:$0xff]
        %v1372 = vld [vmem:[%s1341 + $0xf0] sm:$0xff]
        %v1373 = vld [vmem:[%s1341 + $0xf8] sm:$0xff]
        %v1374 = vld [vmem:[%s1341 + $0x100] sm:$0xff]
        %v1375 = vld [vmem:[%s1341 + $0x108] sm:$0xff]
        %v1376 = vld [vmem:[%s1341 + $0x110] sm:$0xff]
        %v1377 = vld [vmem:[%s1341 + $0x118] sm:$0xff]
        %v1378 = vld [vmem:[%s1341 + $0x120] sm:$0xff]
        %v1379 = vld [vmem:[%s1341 + $0x128] sm:$0xff]
        %v1380 = vld [vmem:[%s1341 + $0x130] sm:$0xff]
        %v1381 = vld [vmem:[%s1341 + $0x138] sm:$0xff]
        %v1382 = vld [vmem:[%s1341 + $0x140] sm:$0xff]
        %v1383 = vld [vmem:[%s1341 + $0x148] sm:$0xff]
        %v1384 = vld [vmem:[%s1341 + $0x150] sm:$0xff]
        %v1385 = vld [vmem:[%s1341 + $0x158] sm:$0xff]
        %v1386 = vld [vmem:[%s1341 + $0x160] sm:$0xff]
        %v1387 = vld [vmem:[%s1341 + $0x168] sm:$0xff]
        %v1388 = vld [vmem:[%s1341 + $0x170] sm:$0xff]
        %v1389 = vld [vmem:[%s1341 + $0x178] sm:$0xff]
        %v1390 = vld [vmem:[%s1341 + $0x180] sm:$0xff]
        %v1391 = vld [vmem:[%s1341 + $0x188] sm:$0xff]
        %v1392 = vld [vmem:[%s1341 + $0x190] sm:$0xff]
        %v1393 = vld [vmem:[%s1341 + $0x198] sm:$0xff]
        %v1394 = vld [vmem:[%s1341 + $0x1a0] sm:$0xff]
        %v1395 = vld [vmem:[%s1341 + $0x1a8] sm:$0xff]
        %v1396 = vld [vmem:[%s1341 + $0x1b0] sm:$0xff]
        %v1397 = vld [vmem:[%s1341 + $0x1b8] sm:$0xff]
        %v1398 = vld [vmem:[%s1341 + $0x1c0] sm:$0xff]
        %v1399 = vld [vmem:[%s1341 + $0x1c8] sm:$0xff]
        %v1400 = vld [vmem:[%s1341 + $0x1d0] sm:$0xff]
        %v1401 = vld [vmem:[%s1341 + $0x1d8] sm:$0xff]
        %v1402 = vld [vmem:[%s1341 + $0x1e0] sm:$0xff]
        %v1403 = vld [vmem:[%s1341 + $0x1e8] sm:$0xff]
        %v1404 = vld [vmem:[%s1341 + $0x1f0] sm:$0xff]
        %v1405 = vld [vmem:[%s1341 + $0x1f8] sm:$0xff]
        %1406 = vmatprep.subr.mxu0 %v1343
        %1407 = vmatpush1.msra.mxu0 %v1342
        %1408 = vmatprep.subr.mxu0 %v1345
        %1409 = vmatpush1.msra.mxu0 %v1344
        %1410 = vmatprep.subr.mxu0 %v1347
        %1411 = vmatpush1.msra.mxu0 %v1346
        %1412 = vmatprep.subr.mxu0 %v1349
        %1413 = vmatpush1.msra.mxu0 %v1348
        %1414 = vmatprep.subr.mxu0 %v1351
        %1415 = vmatpush1.msra.mxu0 %v1350
        %1416 = vmatprep.subr.mxu0 %v1353
        %1417 = vmatpush1.msra.mxu0 %v1352
        %1418 = vmatprep.subr.mxu0 %v1355
        %1419 = vmatpush1.msra.mxu0 %v1354
        %1420 = vmatprep.subr.mxu0 %v1357
        %1421 = vmatpush1.msra.mxu0 %v1356
        %1422 = vmatprep.subr.mxu0 %v1359
        %1423 = vmatpush1.msra.mxu0 %v1358
        %1424 = vmatprep.subr.mxu0 %v1361
        %1425 = vmatpush1.msra.mxu0 %v1360
        %1426 = vmatprep.subr.mxu0 %v1363
        %1427 = vmatpush1.msra.mxu0 %v1362
        %1428 = vmatprep.subr.mxu0 %v1365
        %1429 = vmatpush1.msra.mxu0 %v1364
        %1430 = vmatprep.subr.mxu0 %v1367
        %1431 = vmatpush1.msra.mxu0 %v1366
        %1432 = vmatprep.subr.mxu0 %v1369
        %1433 = vmatpush1.msra.mxu0 %v1368
        %1434 = vmatprep.subr.mxu0 %v1371
        %1435 = vmatpush1.msra.mxu0 %v1370
        %1436 = vmatprep.subr.mxu0 %v1373
        %1437 = vmatpush1.msra.mxu0 %v1372
        %1438 = vmatprep.subr.mxu0 %v1375
        %1439 = vmatpush1.msra.mxu0 %v1374
        %1440 = vmatprep.subr.mxu0 %v1377
        %1441 = vmatpush1.msra.mxu0 %v1376
        %1442 = vmatprep.subr.mxu0 %v1379
        %1443 = vmatpush1.msra.mxu0 %v1378
        %1444 = vmatprep.subr.mxu0 %v1381
        %1445 = vmatpush1.msra.mxu0 %v1380
        %1446 = vmatprep.subr.mxu0 %v1383
        %1447 = vmatpush1.msra.mxu0 %v1382
        %1448 = vmatprep.subr.mxu0 %v1385
        %1449 = vmatpush1.msra.mxu0 %v1384
        %1450 = vmatprep.subr.mxu0 %v1387
        %1451 = vmatpush1.msra.mxu0 %v1386
        %1452 = vmatprep.subr.mxu0 %v1389
        %1453 = vmatpush1.msra.mxu0 %v1388
        %1454 = vmatprep.subr.mxu0 %v1391
        %1455 = vmatpush1.msra.mxu0 %v1390
        %1456 = vmatprep.subr.mxu0 %v1393
        %1457 = vmatpush1.msra.mxu0 %v1392
        %1458 = vmatprep.subr.mxu0 %v1395
        %1459 = vmatpush1.msra.mxu0 %v1394
        %1460 = vmatprep.subr.mxu0 %v1397
        %1461 = vmatpush1.msra.mxu0 %v1396
        %1462 = vmatprep.subr.mxu0 %v1399
        %1463 = vmatpush1.msra.mxu0 %v1398
        %1464 = vmatprep.subr.mxu0 %v1401
        %1465 = vmatpush1.msra.mxu0 %v1400
        %1466 = vmatprep.subr.mxu0 %v1403
        %1467 = vmatpush1.msra.mxu0 %v1402
        %1468 = vmatprep.subr.mxu0 %v1405
        %1469 = vmatpush1.msra.mxu0 %v1404
        %1470 = vmatprep.mubr.f32.mxu0 %v513
        %1471 = vmatmul.mubr.f32.gmra.mrb[0].mxu0 %v512
        %v1472 = vpop.f32.mrb[0].mxu0
        %v1473 = vadd.f32 0.0, %v1472
        %v1474 = vpop.f32.mrb[0].mxu0
        %v1475 = vadd.f32 0.0, %v1474
        %1476 = vdwg.mxu0
        %1477 = vst [vmem:[#allocation3 + $0x60] sm:$0xff] %v1473
        %1478 = vst [vmem:[#allocation3 + $0x68] sm:$0xff] %v1475
        %s1479 = scalar_lea.vmem [#allocation4], 3584
        %v1480 = vld [vmem:[%s1479] sm:$0xff]
        %v1481 = vld [vmem:[%s1479 + $0x8] sm:$0xff]
        %v1482 = vld [vmem:[%s1479 + $0x10] sm:$0xff]
        %v1483 = vld [vmem:[%s1479 + $0x18] sm:$0xff]
        %v1484 = vld [vmem:[%s1479 + $0x20] sm:$0xff]
        %v1485 = vld [vmem:[%s1479 + $0x28] sm:$0xff]
        %v1486 = vld [vmem:[%s1479 + $0x30] sm:$0xff]
        %v1487 = vld [vmem:[%s1479 + $0x38] sm:$0xff]
        %v1488 = vld [vmem:[%s1479 + $0x40] sm:$0xff]
        %v1489 = vld [vmem:[%s1479 + $0x48] sm:$0xff]
        %v1490 = vld [vmem:[%s1479 + $0x50] sm:$0xff]
        %v1491 = vld [vmem:[%s1479 + $0x58] sm:$0xff]
        %v1492 = vld [vmem:[%s1479 + $0x60] sm:$0xff]
        %v1493 = vld [vmem:[%s1479 + $0x68] sm:$0xff]
        %v1494 = vld [vmem:[%s1479 + $0x70] sm:$0xff]
        %v1495 = vld [vmem:[%s1479 + $0x78] sm:$0xff]
        %v1496 = vld [vmem:[%s1479 + $0x80] sm:$0xff]
        %v1497 = vld [vmem:[%s1479 + $0x88] sm:$0xff]
        %v1498 = vld [vmem:[%s1479 + $0x90] sm:$0xff]
        %v1499 = vld [vmem:[%s1479 + $0x98] sm:$0xff]
        %v1500 = vld [vmem:[%s1479 + $0xa0] sm:$0xff]
        %v1501 = vld [vmem:[%s1479 + $0xa8] sm:$0xff]
        %v1502 = vld [vmem:[%s1479 + $0xb0] sm:$0xff]
        %v1503 = vld [vmem:[%s1479 + $0xb8] sm:$0xff]
        %v1504 = vld [vmem:[%s1479 + $0xc0] sm:$0xff]
        %v1505 = vld [vmem:[%s1479 + $0xc8] sm:$0xff]
        %v1506 = vld [vmem:[%s1479 + $0xd0] sm:$0xff]
        %v1507 = vld [vmem:[%s1479 + $0xd8] sm:$0xff]
        %v1508 = vld [vmem:[%s1479 + $0xe0] sm:$0xff]
        %v1509 = vld [vmem:[%s1479 + $0xe8] sm:$0xff]
        %v1510 = vld [vmem:[%s1479 + $0xf0] sm:$0xff]
        %v1511 = vld [vmem:[%s1479 + $0xf8] sm:$0xff]
        %v1512 = vld [vmem:[%s1479 + $0x100] sm:$0xff]
        %v1513 = vld [vmem:[%s1479 + $0x108] sm:$0xff]
        %v1514 = vld [vmem:[%s1479 + $0x110] sm:$0xff]
        %v1515 = vld [vmem:[%s1479 + $0x118] sm:$0xff]
        %v1516 = vld [vmem:[%s1479 + $0x120] sm:$0xff]
        %v1517 = vld [vmem:[%s1479 + $0x128] sm:$0xff]
        %v1518 = vld [vmem:[%s1479 + $0x130] sm:$0xff]
        %v1519 = vld [vmem:[%s1479 + $0x138] sm:$0xff]
        %v1520 = vld [vmem:[%s1479 + $0x140] sm:$0xff]
        %v1521 = vld [vmem:[%s1479 + $0x148] sm:$0xff]
        %v1522 = vld [vmem:[%s1479 + $0x150] sm:$0xff]
        %v1523 = vld [vmem:[%s1479 + $0x158] sm:$0xff]
        %v1524 = vld [vmem:[%s1479 + $0x160] sm:$0xff]
        %v1525 = vld [vmem:[%s1479 + $0x168] sm:$0xff]
        %v1526 = vld [vmem:[%s1479 + $0x170] sm:$0xff]
        %v1527 = vld [vmem:[%s1479 + $0x178] sm:$0xff]
        %v1528 = vld [vmem:[%s1479 + $0x180] sm:$0xff]
        %v1529 = vld [vmem:[%s1479 + $0x188] sm:$0xff]
        %v1530 = vld [vmem:[%s1479 + $0x190] sm:$0xff]
        %v1531 = vld [vmem:[%s1479 + $0x198] sm:$0xff]
        %v1532 = vld [vmem:[%s1479 + $0x1a0] sm:$0xff]
        %v1533 = vld [vmem:[%s1479 + $0x1a8] sm:$0xff]
        %v1534 = vld [vmem:[%s1479 + $0x1b0] sm:$0xff]
        %v1535 = vld [vmem:[%s1479 + $0x1b8] sm:$0xff]
        %v1536 = vld [vmem:[%s1479 + $0x1c0] sm:$0xff]
        %v1537 = vld [vmem:[%s1479 + $0x1c8] sm:$0xff]
        %v1538 = vld [vmem:[%s1479 + $0x1d0] sm:$0xff]
        %v1539 = vld [vmem:[%s1479 + $0x1d8] sm:$0xff]
        %v1540 = vld [vmem:[%s1479 + $0x1e0] sm:$0xff]
        %v1541 = vld [vmem:[%s1479 + $0x1e8] sm:$0xff]
        %v1542 = vld [vmem:[%s1479 + $0x1f0] sm:$0xff]
        %v1543 = vld [vmem:[%s1479 + $0x1f8] sm:$0xff]
        %1544 = vmatprep.subr.mxu0 %v1481
        %1545 = vmatpush1.msra.mxu0 %v1480
        %1546 = vmatprep.subr.mxu0 %v1483
        %1547 = vmatpush1.msra.mxu0 %v1482
        %1548 = vmatprep.subr.mxu0 %v1485
        %1549 = vmatpush1.msra.mxu0 %v1484
        %1550 = vmatprep.subr.mxu0 %v1487
        %1551 = vmatpush1.msra.mxu0 %v1486
        %1552 = vmatprep.subr.mxu0 %v1489
        %1553 = vmatpush1.msra.mxu0 %v1488
        %1554 = vmatprep.subr.mxu0 %v1491
        %1555 = vmatpush1.msra.mxu0 %v1490
        %1556 = vmatprep.subr.mxu0 %v1493
        %1557 = vmatpush1.msra.mxu0 %v1492
        %1558 = vmatprep.subr.mxu0 %v1495
        %1559 = vmatpush1.msra.mxu0 %v1494
        %1560 = vmatprep.subr.mxu0 %v1497
        %1561 = vmatpush1.msra.mxu0 %v1496
        %1562 = vmatprep.subr.mxu0 %v1499
        %1563 = vmatpush1.msra.mxu0 %v1498
        %1564 = vmatprep.subr.mxu0 %v1501
        %1565 = vmatpush1.msra.mxu0 %v1500
        %1566 = vmatprep.subr.mxu0 %v1503
        %1567 = vmatpush1.msra.mxu0 %v1502
        %1568 = vmatprep.subr.mxu0 %v1505
        %1569 = vmatpush1.msra.mxu0 %v1504
        %1570 = vmatprep.subr.mxu0 %v1507
        %1571 = vmatpush1.msra.mxu0 %v1506
        %1572 = vmatprep.subr.mxu0 %v1509
        %1573 = vmatpush1.msra.mxu0 %v1508
        %1574 = vmatprep.subr.mxu0 %v1511
        %1575 = vmatpush1.msra.mxu0 %v1510
        %1576 = vmatprep.subr.mxu0 %v1513
        %1577 = vmatpush1.msra.mxu0 %v1512
        %1578 = vmatprep.subr.mxu0 %v1515
        %1579 = vmatpush1.msra.mxu0 %v1514
        %1580 = vmatprep.subr.mxu0 %v1517
        %1581 = vmatpush1.msra.mxu0 %v1516
        %1582 = vmatprep.subr.mxu0 %v1519
        %1583 = vmatpush1.msra.mxu0 %v1518
        %1584 = vmatprep.subr.mxu0 %v1521
        %1585 = vmatpush1.msra.mxu0 %v1520
        %1586 = vmatprep.subr.mxu0 %v1523
        %1587 = vmatpush1.msra.mxu0 %v1522
        %1588 = vmatprep.subr.mxu0 %v1525
        %1589 = vmatpush1.msra.mxu0 %v1524
        %1590 = vmatprep.subr.mxu0 %v1527
        %1591 = vmatpush1.msra.mxu0 %v1526
        %1592 = vmatprep.subr.mxu0 %v1529
        %1593 = vmatpush1.msra.mxu0 %v1528
        %1594 = vmatprep.subr.mxu0 %v1531
        %1595 = vmatpush1.msra.mxu0 %v1530
        %1596 = vmatprep.subr.mxu0 %v1533
        %1597 = vmatpush1.msra.mxu0 %v1532
        %1598 = vmatprep.subr.mxu0 %v1535
        %1599 = vmatpush1.msra.mxu0 %v1534
        %1600 = vmatprep.subr.mxu0 %v1537
        %1601 = vmatpush1.msra.mxu0 %v1536
        %1602 = vmatprep.subr.mxu0 %v1539
        %1603 = vmatpush1.msra.mxu0 %v1538
        %1604 = vmatprep.subr.mxu0 %v1541
        %1605 = vmatpush1.msra.mxu0 %v1540
        %1606 = vmatprep.subr.mxu0 %v1543
        %1607 = vmatpush1.msra.mxu0 %v1542
        %1608 = vmatprep.mubr.f32.mxu0 %v513
        %1609 = vmatmul.mubr.f32.gmra.mrb[0].mxu0 %v512
        %v1610 = vpop.f32.mrb[0].mxu0
        %v1611 = vadd.f32 0.0, %v1610
        %v1612 = vpop.f32.mrb[0].mxu0
        %v1613 = vadd.f32 0.0, %v1612
        %1614 = vdwg.mxu0
        %1615 = vst [vmem:[#allocation3 + $0x70] sm:$0xff] %v1611
        %1616 = vst [vmem:[#allocation3 + $0x78] sm:$0xff] %v1613
        %s1617 = scalar_lea.vmem [#allocation4], 4096
        %v1618 = vld [vmem:[%s1617] sm:$0xff]
        %v1619 = vld [vmem:[%s1617 + $0x8] sm:$0xff]
        %v1620 = vld [vmem:[%s1617 + $0x10] sm:$0xff]
        %v1621 = vld [vmem:[%s1617 + $0x18] sm:$0xff]
        %v1622 = vld [vmem:[%s1617 + $0x20] sm:$0xff]
        %v1623 = vld [vmem:[%s1617 + $0x28] sm:$0xff]
        %v1624 = vld [vmem:[%s1617 + $0x30] sm:$0xff]
        %v1625 = vld [vmem:[%s1617 + $0x38] sm:$0xff]
        %v1626 = vld [vmem:[%s1617 + $0x40] sm:$0xff]
        %v1627 = vld [vmem:[%s1617 + $0x48] sm:$0xff]
        %v1628 = vld [vmem:[%s1617 + $0x50] sm:$0xff]
        %v1629 = vld [vmem:[%s1617 + $0x58] sm:$0xff]
        %v1630 = vld [vmem:[%s1617 + $0x60] sm:$0xff]
        %v1631 = vld [vmem:[%s1617 + $0x68] sm:$0xff]
        %v1632 = vld [vmem:[%s1617 + $0x70] sm:$0xff]
        %v1633 = vld [vmem:[%s1617 + $0x78] sm:$0xff]
        %v1634 = vld [vmem:[%s1617 + $0x80] sm:$0xff]
        %v1635 = vld [vmem:[%s1617 + $0x88] sm:$0xff]
        %v1636 = vld [vmem:[%s1617 + $0x90] sm:$0xff]
        %v1637 = vld [vmem:[%s1617 + $0x98] sm:$0xff]
        %v1638 = vld [vmem:[%s1617 + $0xa0] sm:$0xff]
        %v1639 = vld [vmem:[%s1617 + $0xa8] sm:$0xff]
        %v1640 = vld [vmem:[%s1617 + $0xb0] sm:$0xff]
        %v1641 = vld [vmem:[%s1617 + $0xb8] sm:$0xff]
        %v1642 = vld [vmem:[%s1617 + $0xc0] sm:$0xff]
        %v1643 = vld [vmem:[%s1617 + $0xc8] sm:$0xff]
        %v1644 = vld [vmem:[%s1617 + $0xd0] sm:$0xff]
        %v1645 = vld [vmem:[%s1617 + $0xd8] sm:$0xff]
        %v1646 = vld [vmem:[%s1617 + $0xe0] sm:$0xff]
        %v1647 = vld [vmem:[%s1617 + $0xe8] sm:$0xff]
        %v1648 = vld [vmem:[%s1617 + $0xf0] sm:$0xff]
        %v1649 = vld [vmem:[%s1617 + $0xf8] sm:$0xff]
        %v1650 = vld [vmem:[%s1617 + $0x100] sm:$0xff]
        %v1651 = vld [vmem:[%s1617 + $0x108] sm:$0xff]
        %v1652 = vld [vmem:[%s1617 + $0x110] sm:$0xff]
        %v1653 = vld [vmem:[%s1617 + $0x118] sm:$0xff]
        %v1654 = vld [vmem:[%s1617 + $0x120] sm:$0xff]
        %v1655 = vld [vmem:[%s1617 + $0x128] sm:$0xff]
        %v1656 = vld [vmem:[%s1617 + $0x130] sm:$0xff]
        %v1657 = vld [vmem:[%s1617 + $0x138] sm:$0xff]
        %v1658 = vld [vmem:[%s1617 + $0x140] sm:$0xff]
        %v1659 = vld [vmem:[%s1617 + $0x148] sm:$0xff]
        %v1660 = vld [vmem:[%s1617 + $0x150] sm:$0xff]
        %v1661 = vld [vmem:[%s1617 + $0x158] sm:$0xff]
        %v1662 = vld [vmem:[%s1617 + $0x160] sm:$0xff]
        %v1663 = vld [vmem:[%s1617 + $0x168] sm:$0xff]
        %v1664 = vld [vmem:[%s1617 + $0x170] sm:$0xff]
        %v1665 = vld [vmem:[%s1617 + $0x178] sm:$0xff]
        %v1666 = vld [vmem:[%s1617 + $0x180] sm:$0xff]
        %v1667 = vld [vmem:[%s1617 + $0x188] sm:$0xff]
        %v1668 = vld [vmem:[%s1617 + $0x190] sm:$0xff]
        %v1669 = vld [vmem:[%s1617 + $0x198] sm:$0xff]
        %v1670 = vld [vmem:[%s1617 + $0x1a0] sm:$0xff]
        %v1671 = vld [vmem:[%s1617 + $0x1a8] sm:$0xff]
        %v1672 = vld [vmem:[%s1617 + $0x1b0] sm:$0xff]
        %v1673 = vld [vmem:[%s1617 + $0x1b8] sm:$0xff]
        %v1674 = vld [vmem:[%s1617 + $0x1c0] sm:$0xff]
        %v1675 = vld [vmem:[%s1617 + $0x1c8] sm:$0xff]
        %v1676 = vld [vmem:[%s1617 + $0x1d0] sm:$0xff]
        %v1677 = vld [vmem:[%s1617 + $0x1d8] sm:$0xff]
        %v1678 = vld [vmem:[%s1617 + $0x1e0] sm:$0xff]
        %v1679 = vld [vmem:[%s1617 + $0x1e8] sm:$0xff]
        %v1680 = vld [vmem:[%s1617 + $0x1f0] sm:$0xff]
        %v1681 = vld [vmem:[%s1617 + $0x1f8] sm:$0xff]
        %1682 = vmatprep.subr.mxu0 %v1619
        %1683 = vmatpush1.msra.mxu0 %v1618
        %1684 = vmatprep.subr.mxu0 %v1621
        %1685 = vmatpush1.msra.mxu0 %v1620
        %1686 = vmatprep.subr.mxu0 %v1623
        %1687 = vmatpush1.msra.mxu0 %v1622
        %1688 = vmatprep.subr.mxu0 %v1625
        %1689 = vmatpush1.msra.mxu0 %v1624
        %1690 = vmatprep.subr.mxu0 %v1627
        %1691 = vmatpush1.msra.mxu0 %v1626
        %1692 = vmatprep.subr.mxu0 %v1629
        %1693 = vmatpush1.msra.mxu0 %v1628
        %1694 = vmatprep.subr.mxu0 %v1631
        %1695 = vmatpush1.msra.mxu0 %v1630
        %1696 = vmatprep.subr.mxu0 %v1633
        %1697 = vmatpush1.msra.mxu0 %v1632
        %1698 = vmatprep.subr.mxu0 %v1635
        %1699 = vmatpush1.msra.mxu0 %v1634
        %1700 = vmatprep.subr.mxu0 %v1637
        %1701 = vmatpush1.msra.mxu0 %v1636
        %1702 = vmatprep.subr.mxu0 %v1639
        %1703 = vmatpush1.msra.mxu0 %v1638
        %1704 = vmatprep.subr.mxu0 %v1641
        %1705 = vmatpush1.msra.mxu0 %v1640
        %1706 = vmatprep.subr.mxu0 %v1643
        %1707 = vmatpush1.msra.mxu0 %v1642
        %1708 = vmatprep.subr.mxu0 %v1645
        %1709 = vmatpush1.msra.mxu0 %v1644
        %1710 = vmatprep.subr.mxu0 %v1647
        %1711 = vmatpush1.msra.mxu0 %v1646
        %1712 = vmatprep.subr.mxu0 %v1649
        %1713 = vmatpush1.msra.mxu0 %v1648
        %1714 = vmatprep.subr.mxu0 %v1651
        %1715 = vmatpush1.msra.mxu0 %v1650
        %1716 = vmatprep.subr.mxu0 %v1653
        %1717 = vmatpush1.msra.mxu0 %v1652
        %1718 = vmatprep.subr.mxu0 %v1655
        %1719 = vmatpush1.msra.mxu0 %v1654
        %1720 = vmatprep.subr.mxu0 %v1657
        %1721 = vmatpush1.msra.mxu0 %v1656
        %1722 = vmatprep.subr.mxu0 %v1659
        %1723 = vmatpush1.msra.mxu0 %v1658
        %1724 = vmatprep.subr.mxu0 %v1661
        %1725 = vmatpush1.msra.mxu0 %v1660
        %1726 = vmatprep.subr.mxu0 %v1663
        %1727 = vmatpush1.msra.mxu0 %v1662
        %1728 = vmatprep.subr.mxu0 %v1665
        %1729 = vmatpush1.msra.mxu0 %v1664
        %1730 = vmatprep.subr.mxu0 %v1667
        %1731 = vmatpush1.msra.mxu0 %v1666
        %1732 = vmatprep.subr.mxu0 %v1669
        %1733 = vmatpush1.msra.mxu0 %v1668
        %1734 = vmatprep.subr.mxu0 %v1671
        %1735 = vmatpush1.msra.mxu0 %v1670
        %1736 = vmatprep.subr.mxu0 %v1673
        %1737 = vmatpush1.msra.mxu0 %v1672
        %1738 = vmatprep.subr.mxu0 %v1675
        %1739 = vmatpush1.msra.mxu0 %v1674
        %1740 = vmatprep.subr.mxu0 %v1677
        %1741 = vmatpush1.msra.mxu0 %v1676
        %1742 = vmatprep.subr.mxu0 %v1679
        %1743 = vmatpush1.msra.mxu0 %v1678
        %1744 = vmatprep.subr.mxu0 %v1681
        %1745 = vmatpush1.msra.mxu0 %v1680
        %1746 = vmatprep.mubr.f32.mxu0 %v513
        %1747 = vmatmul.mubr.f32.gmra.mrb[0].mxu0 %v512
        %v1748 = vpop.f32.mrb[0].mxu0
        %v1749 = vadd.f32 0.0, %v1748
        %v1750 = vpop.f32.mrb[0].mxu0
        %v1751 = vadd.f32 0.0, %v1750
        %1752 = vdwg.mxu0
        %1753 = vst [vmem:[#allocation3 + $0x80] sm:$0xff] %v1749
        %1754 = vst [vmem:[#allocation3 + $0x88] sm:$0xff] %v1751
        %v1755 = vld [vmem:[#allocation8] sm:$0xff]
        %v1756 = vld [vmem:[#allocation3] sm:$0xff]
        %v1757 = vld [vmem:[#allocation3 + $0x8] sm:$0xff]
        %v1758 = vld [vmem:[#allocation3 + $0x10] sm:$0xff]
        %v1759 = vld [vmem:[#allocation3 + $0x18] sm:$0xff]
        %v1760 = vld [vmem:[#allocation3 + $0x20] sm:$0xff]
        %v1761 = vld [vmem:[#allocation3 + $0x28] sm:$0xff]
        %v1762 = vld [vmem:[#allocation3 + $0x30] sm:$0xff]
        %v1763 = vld [vmem:[#allocation3 + $0x38] sm:$0xff]
        %v1764 = vld [vmem:[#allocation3 + $0x40] sm:$0xff]
        %v1765 = vld [vmem:[#allocation3 + $0x48] sm:$0xff]
        %v1766 = vld [vmem:[#allocation3 + $0x50] sm:$0xff]
        %v1767 = vld [vmem:[#allocation3 + $0x58] sm:$0xff]
        %v1768 = vld [vmem:[#allocation3 + $0x60] sm:$0xff]
        %v1769 = vld [vmem:[#allocation3 + $0x68] sm:$0xff]
        %v1770 = vld [vmem:[#allocation3 + $0x70] sm:$0xff]
        %v1771 = vld [vmem:[#allocation3 + $0x78] sm:$0xff]
        %v1772 = vld [vmem:[#allocation3 + $0x80] sm:$0xff]
        %v1773 = vld [vmem:[#allocation3 + $0x88] sm:$0xff]
        %v1774 = vld [vmem:[%s5] sm:$0xff]
        %1776 = vset.pattern.permute.xlu0 0
        %1777 = vperm.xlu0 %1776, %v1774
        %v1778 = vpop.permute.xlu0 %1777
        %vm1780 = vcmask 588800
        %v1782 = vsel %vm1780, %v1755, 0
        %1784 = vmatprep.subr.mxu0 %v1757
        %1785 = vmatpush1.msra.mxu0 %v1756
        %1786 = vmatprep.subr.mxu0 %v1759
        %1787 = vmatpush1.msra.mxu0 %v1758
        %1788 = vmatprep.subr.mxu0 %v1761
        %1789 = vmatpush1.msra.mxu0 %v1760
        %1790 = vmatprep.subr.mxu0 %v1763
        %1791 = vmatpush1.msra.mxu0 %v1762
        %1792 = vmatprep.subr.mxu0 %v1765
        %1793 = vmatpush1.msra.mxu0 %v1764
        %1794 = vmatprep.subr.mxu0 %v1767
        %1795 = vmatpush1.msra.mxu0 %v1766
        %1796 = vmatprep.subr.mxu0 %v1769
        %1797 = vmatpush1.msra.mxu0 %v1768
        %1798 = vmatprep.subr.mxu0 %v1771
        %1799 = vmatpush1.msra.mxu0 %v1770
        %1800 = vmatprep.subr.mxu0 %v1773
        %1801 = vmatpush1.msra.mxu0 %v1772
        %1802 = vmatprep.subr.mxu0 0.0
        %1803 = vmatpush1.msra.mxu0 0.0
        %1804 = vmatprep.subr.mxu0 0.0
        %1805 = vmatpush1.msra.mxu0 0.0
        %1806 = vmatprep.subr.mxu0 0.0
        %1807 = vmatpush1.msra.mxu0 0.0
        %1808 = vmatprep.subr.mxu0 0.0
        %1809 = vmatpush1.msra.mxu0 0.0
        %1810 = vmatprep.subr.mxu0 0.0
        %1811 = vmatpush1.msra.mxu0 0.0
        %1812 = vmatprep.subr.mxu0 0.0
        %1813 = vmatpush1.msra.mxu0 0.0
        %1814 = vmatprep.subr.mxu0 0.0
        %1815 = vmatpush1.msra.mxu0 0.0
        %1816 = vmatprep.subr.mxu0 0.0
        %1817 = vmatpush1.msra.mxu0 0.0
        %1818 = vmatprep.subr.mxu0 0.0
        %1819 = vmatpush1.msra.mxu0 0.0
        %1820 = vmatprep.subr.mxu0 0.0
        %1821 = vmatpush1.msra.mxu0 0.0
        %1822 = vmatprep.subr.mxu0 0.0
        %1823 = vmatpush1.msra.mxu0 0.0
        %1824 = vmatprep.subr.mxu0 0.0
        %1825 = vmatpush1.msra.mxu0 0.0
        %1826 = vmatprep.subr.mxu0 0.0
        %1827 = vmatpush1.msra.mxu0 0.0
        %1828 = vmatprep.subr.mxu0 0.0
        %1829 = vmatpush1.msra.mxu0 0.0
        %1830 = vmatprep.subr.mxu0 0.0
        %1831 = vmatpush1.msra.mxu0 0.0
        %1832 = vmatprep.subr.mxu0 0.0
        %1833 = vmatpush1.msra.mxu0 0.0
        %1834 = vmatprep.subr.mxu0 0.0
        %1835 = vmatpush1.msra.mxu0 0.0
        %1836 = vmatprep.subr.mxu0 0.0
        %1837 = vmatpush1.msra.mxu0 0.0
        %1838 = vmatprep.subr.mxu0 0.0
        %1839 = vmatpush1.msra.mxu0 0.0
        %1840 = vmatprep.subr.mxu0 0.0
        %1841 = vmatpush1.msra.mxu0 0.0
        %1842 = vmatprep.subr.mxu0 0.0
        %1843 = vmatpush1.msra.mxu0 0.0
        %1844 = vmatprep.subr.mxu0 0.0
        %1845 = vmatpush1.msra.mxu0 0.0
        %1846 = vmatprep.subr.mxu0 0.0
        %1847 = vmatpush1.msra.mxu0 0.0
        %1848 = vmatprep.mubr.f32.mxu0 0.0
        %1849 = vmatmul.mubr.f32.gmra.mrb[0].mxu0 %v1782
        %v1850 = vpop.f32.mrb[0].mxu0
        %v1851 = vadd.f32 %v1778, %v1850
        %v1852 = vpop.f32.mrb[0].mxu0
        %v1853 = vadd.f32 %v1778, %v1852
        %1854 = vdwg.mxu0
        %v1855 = vmax.f32 %v1851, 0.0
        %v1856 = vmax.f32 %v1853, 0.0
        %1857 = vst [vmem:[#allocation2] sm:$0xff] %v1855
        %1858 = vst [vmem:[#allocation2 + $0x8] sm:$0xff] %v1856
        %v1859 = vld [vmem:[#allocation2] sm:$0xff]
        %v1860 = vld [vmem:[#allocation2 + $0x8] sm:$0xff]
        %v1861 = vld [vmem:[#allocation2 + $0x10] sm:$0xff]
        %v1862 = vld [vmem:[#allocation2 + $0x18] sm:$0xff]
        %v1863 = vadd.f32 %v1859, %v1861
        %v1864 = vadd.f32 %v1860, %v1862
        %v1865 = vld [vmem:[#allocation4] sm:$0xff]
        %v1866 = vld [vmem:[#allocation4 + $0x8] sm:$0xff]
        %v1867 = vld [vmem:[#allocation4 + $0x10] sm:$0xff]
        %v1868 = vld [vmem:[#allocation4 + $0x18] sm:$0xff]
        %v1869 = vld [vmem:[#allocation4 + $0x20] sm:$0xff]
        %v1870 = vld [vmem:[#allocation4 + $0x28] sm:$0xff]
        %v1871 = vld [vmem:[#allocation4 + $0x30] sm:$0xff]
        %v1872 = vld [vmem:[#allocation4 + $0x38] sm:$0xff]
        %v1873 = vld [vmem:[#allocation4 + $0x40] sm:$0xff]
        %v1874 = vld [vmem:[#allocation4 + $0x48] sm:$0xff]
        %v1875 = vld [vmem:[#allocation4 + $0x50] sm:$0xff]
        %v1876 = vld [vmem:[#allocation4 + $0x58] sm:$0xff]
        %v1877 = vld [vmem:[#allocation4 + $0x60] sm:$0xff]
        %v1878 = vld [vmem:[#allocation4 + $0x68] sm:$0xff]
        %v1879 = vld [vmem:[#allocation4 + $0x70] sm:$0xff]
        %v1880 = vld [vmem:[#allocation4 + $0x78] sm:$0xff]
        %v1881 = vld [vmem:[#allocation4 + $0x80] sm:$0xff]
        %v1882 = vld [vmem:[#allocation4 + $0x88] sm:$0xff]
        %v1883 = vld [vmem:[#allocation4 + $0x90] sm:$0xff]
        %v1884 = vld [vmem:[#allocation4 + $0x98] sm:$0xff]
        %v1885 = vld [vmem:[#allocation4 + $0xa0] sm:$0xff]
        %v1886 = vld [vmem:[#allocation4 + $0xa8] sm:$0xff]
        %v1887 = vld [vmem:[#allocation4 + $0xb0] sm:$0xff]
        %v1888 = vld [vmem:[#allocation4 + $0xb8] sm:$0xff]
        %v1889 = vld [vmem:[#allocation4 + $0xc0] sm:$0xff]
        %v1890 = vld [vmem:[#allocation4 + $0xc8] sm:$0xff]
        %v1891 = vld [vmem:[#allocation4 + $0xd0] sm:$0xff]
        %v1892 = vld [vmem:[#allocation4 + $0xd8] sm:$0xff]
        %v1893 = vld [vmem:[#allocation4 + $0xe0] sm:$0xff]
        %v1894 = vld [vmem:[#allocation4 + $0xe8] sm:$0xff]
        %v1895 = vld [vmem:[#allocation4 + $0xf0] sm:$0xff]
        %v1896 = vld [vmem:[#allocation4 + $0xf8] sm:$0xff]
        %v1897 = vld [vmem:[#allocation4 + $0x100] sm:$0xff]
        %v1898 = vld [vmem:[#allocation4 + $0x108] sm:$0xff]
        %v1899 = vld [vmem:[#allocation4 + $0x110] sm:$0xff]
        %v1900 = vld [vmem:[#allocation4 + $0x118] sm:$0xff]
        %v1901 = vld [vmem:[#allocation4 + $0x120] sm:$0xff]
        %v1902 = vld [vmem:[#allocation4 + $0x128] sm:$0xff]
        %v1903 = vld [vmem:[#allocation4 + $0x130] sm:$0xff]
        %v1904 = vld [vmem:[#allocation4 + $0x138] sm:$0xff]
        %v1905 = vld [vmem:[#allocation4 + $0x140] sm:$0xff]
        %v1906 = vld [vmem:[#allocation4 + $0x148] sm:$0xff]
        %v1907 = vld [vmem:[#allocation4 + $0x150] sm:$0xff]
        %v1908 = vld [vmem:[#allocation4 + $0x158] sm:$0xff]
        %v1909 = vld [vmem:[#allocation4 + $0x160] sm:$0xff]
        %v1910 = vld [vmem:[#allocation4 + $0x168] sm:$0xff]
        %v1911 = vld [vmem:[#allocation4 + $0x170] sm:$0xff]
        %v1912 = vld [vmem:[#allocation4 + $0x178] sm:$0xff]
        %v1913 = vld [vmem:[#allocation4 + $0x180] sm:$0xff]
        %v1914 = vld [vmem:[#allocation4 + $0x188] sm:$0xff]
        %v1915 = vld [vmem:[#allocation4 + $0x190] sm:$0xff]
        %v1916 = vld [vmem:[#allocation4 + $0x198] sm:$0xff]
        %v1917 = vld [vmem:[#allocation4 + $0x1a0] sm:$0xff]
        %v1918 = vld [vmem:[#allocation4 + $0x1a8] sm:$0xff]
        %v1919 = vld [vmem:[#allocation4 + $0x1b0] sm:$0xff]
        %v1920 = vld [vmem:[#allocation4 + $0x1b8] sm:$0xff]
        %v1921 = vld [vmem:[#allocation4 + $0x1c0] sm:$0xff]
        %v1922 = vld [vmem:[#allocation4 + $0x1c8] sm:$0xff]
        %v1923 = vld [vmem:[#allocation4 + $0x1d0] sm:$0xff]
        %v1924 = vld [vmem:[#allocation4 + $0x1d8] sm:$0xff]
        %v1925 = vld [vmem:[#allocation4 + $0x1e0] sm:$0xff]
        %v1926 = vld [vmem:[#allocation4 + $0x1e8] sm:$0xff]
        %v1927 = vld [vmem:[#allocation4 + $0x1f0] sm:$0xff]
        %v1928 = vld [vmem:[#allocation4 + $0x1f8] sm:$0xff]
        %1929 = vmatprep.subr.mxu0 %v1866
        %1930 = vmatpush1.msra.mxu0 %v1865
        %1931 = vmatprep.subr.mxu0 %v1868
        %1932 = vmatpush1.msra.mxu0 %v1867
        %1933 = vmatprep.subr.mxu0 %v1870
        %1934 = vmatpush1.msra.mxu0 %v1869
        %1935 = vmatprep.subr.mxu0 %v1872
        %1936 = vmatpush1.msra.mxu0 %v1871
        %1937 = vmatprep.subr.mxu0 %v1874
        %1938 = vmatpush1.msra.mxu0 %v1873
        %1939 = vmatprep.subr.mxu0 %v1876
        %1940 = vmatpush1.msra.mxu0 %v1875
        %1941 = vmatprep.subr.mxu0 %v1878
        %1942 = vmatpush1.msra.mxu0 %v1877
        %1943 = vmatprep.subr.mxu0 %v1880
        %1944 = vmatpush1.msra.mxu0 %v1879
        %1945 = vmatprep.subr.mxu0 %v1882
        %1946 = vmatpush1.msra.mxu0 %v1881
        %1947 = vmatprep.subr.mxu0 %v1884
        %1948 = vmatpush1.msra.mxu0 %v1883
        %1949 = vmatprep.subr.mxu0 %v1886
        %1950 = vmatpush1.msra.mxu0 %v1885
        %1951 = vmatprep.subr.mxu0 %v1888
        %1952 = vmatpush1.msra.mxu0 %v1887
        %1953 = vmatprep.subr.mxu0 %v1890
        %1954 = vmatpush1.msra.mxu0 %v1889
        %1955 = vmatprep.subr.mxu0 %v1892
        %1956 = vmatpush1.msra.mxu0 %v1891
        %1957 = vmatprep.subr.mxu0 %v1894
        %1958 = vmatpush1.msra.mxu0 %v1893
        %1959 = vmatprep.subr.mxu0 %v1896
        %1960 = vmatpush1.msra.mxu0 %v1895
        %1961 = vmatprep.subr.mxu0 %v1898
        %1962 = vmatpush1.msra.mxu0 %v1897
        %1963 = vmatprep.subr.mxu0 %v1900
        %1964 = vmatpush1.msra.mxu0 %v1899
        %1965 = vmatprep.subr.mxu0 %v1902
        %1966 = vmatpush1.msra.mxu0 %v1901
        %1967 = vmatprep.subr.mxu0 %v1904
        %1968 = vmatpush1.msra.mxu0 %v1903
        %1969 = vmatprep.subr.mxu0 %v1906
        %1970 = vmatpush1.msra.mxu0 %v1905
        %1971 = vmatprep.subr.mxu0 %v1908
        %1972 = vmatpush1.msra.mxu0 %v1907
        %1973 = vmatprep.subr.mxu0 %v1910
        %1974 = vmatpush1.msra.mxu0 %v1909
        %1975 = vmatprep.subr.mxu0 %v1912
        %1976 = vmatpush1.msra.mxu0 %v1911
        %1977 = vmatprep.subr.mxu0 %v1914
        %1978 = vmatpush1.msra.mxu0 %v1913
        %1979 = vmatprep.subr.mxu0 %v1916
        %1980 = vmatpush1.msra.mxu0 %v1915
        %1981 = vmatprep.subr.mxu0 %v1918
        %1982 = vmatpush1.msra.mxu0 %v1917
        %1983 = vmatprep.subr.mxu0 %v1920
        %1984 = vmatpush1.msra.mxu0 %v1919
        %1985 = vmatprep.subr.mxu0 %v1922
        %1986 = vmatpush1.msra.mxu0 %v1921
        %1987 = vmatprep.subr.mxu0 %v1924
        %1988 = vmatpush1.msra.mxu0 %v1923
        %1989 = vmatprep.subr.mxu0 %v1926
        %1990 = vmatpush1.msra.mxu0 %v1925
        %1991 = vmatprep.subr.mxu0 %v1928
        %1992 = vmatpush1.msra.mxu0 %v1927
        %1993 = vmatprep.mubr.f32.mxu0 %v1864
        %1994 = vmatmul.mubr.f32.gmra.mrb[0].mxu0 %v1863
        %v1995 = vpop.f32.mrb[0].mxu0
        %v1996 = vadd.f32 0.0, %v1995
        %v1997 = vpop.f32.mrb[0].mxu0
        %v1998 = vadd.f32 0.0, %v1997
        %1999 = vdwg.mxu0
        %2000 = vst [vmem:[#allocation3] sm:$0xff] %v1996
        %2001 = vst [vmem:[#allocation3 + $0x8] sm:$0xff] %v1998
        %v2002 = vld [vmem:[%s651] sm:$0xff]
        %v2003 = vld [vmem:[%s651 + $0x8] sm:$0xff]
        %v2004 = vld [vmem:[%s651 + $0x10] sm:$0xff]
        %v2005 = vld [vmem:[%s651 + $0x18] sm:$0xff]
        %v2006 = vld [vmem:[%s651 + $0x20] sm:$0xff]
        %v2007 = vld [vmem:[%s651 + $0x28] sm:$0xff]
        %v2008 = vld [vmem:[%s651 + $0x30] sm:$0xff]
        %v2009 = vld [vmem:[%s651 + $0x38] sm:$0xff]
        %v2010 = vld [vmem:[%s651 + $0x40] sm:$0xff]
        %v2011 = vld [vmem:[%s651 + $0x48] sm:$0xff]
        %v2012 = vld [vmem:[%s651 + $0x50] sm:$0xff]
        %v2013 = vld [vmem:[%s651 + $0x58] sm:$0xff]
        %v2014 = vld [vmem:[%s651 + $0x60] sm:$0xff]
        %v2015 = vld [vmem:[%s651 + $0x68] sm:$0xff]
        %v2016 = vld [vmem:[%s651 + $0x70] sm:$0xff]
        %v2017 = vld [vmem:[%s651 + $0x78] sm:$0xff]
        %v2018 = vld [vmem:[%s651 + $0x80] sm:$0xff]
        %v2019 = vld [vmem:[%s651 + $0x88] sm:$0xff]
        %v2020 = vld [vmem:[%s651 + $0x90] sm:$0xff]
        %v2021 = vld [vmem:[%s651 + $0x98] sm:$0xff]
        %v2022 = vld [vmem:[%s651 + $0xa0] sm:$0xff]
        %v2023 = vld [vmem:[%s651 + $0xa8] sm:$0xff]
        %v2024 = vld [vmem:[%s651 + $0xb0] sm:$0xff]
        %v2025 = vld [vmem:[%s651 + $0xb8] sm:$0xff]
        %v2026 = vld [vmem:[%s651 + $0xc0] sm:$0xff]
        %v2027 = vld [vmem:[%s651 + $0xc8] sm:$0xff]
        %v2028 = vld [vmem:[%s651 + $0xd0] sm:$0xff]
        %v2029 = vld [vmem:[%s651 + $0xd8] sm:$0xff]
        %v2030 = vld [vmem:[%s651 + $0xe0] sm:$0xff]
        %v2031 = vld [vmem:[%s651 + $0xe8] sm:$0xff]
        %v2032 = vld [vmem:[%s651 + $0xf0] sm:$0xff]
        %v2033 = vld [vmem:[%s651 + $0xf8] sm:$0xff]
        %v2034 = vld [vmem:[%s651 + $0x100] sm:$0xff]
        %v2035 = vld [vmem:[%s651 + $0x108] sm:$0xff]
        %v2036 = vld [vmem:[%s651 + $0x110] sm:$0xff]
        %v2037 = vld [vmem:[%s651 + $0x118] sm:$0xff]
        %v2038 = vld [vmem:[%s651 + $0x120] sm:$0xff]
        %v2039 = vld [vmem:[%s651 + $0x128] sm:$0xff]
        %v2040 = vld [vmem:[%s651 + $0x130] sm:$0xff]
        %v2041 = vld [vmem:[%s651 + $0x138] sm:$0xff]
        %v2042 = vld [vmem:[%s651 + $0x140] sm:$0xff]
        %v2043 = vld [vmem:[%s651 + $0x148] sm:$0xff]
        %v2044 = vld [vmem:[%s651 + $0x150] sm:$0xff]
        %v2045 = vld [vmem:[%s651 + $0x158] sm:$0xff]
        %v2046 = vld [vmem:[%s651 + $0x160] sm:$0xff]
        %v2047 = vld [vmem:[%s651 + $0x168] sm:$0xff]
        %v2048 = vld [vmem:[%s651 + $0x170] sm:$0xff]
        %v2049 = vld [vmem:[%s651 + $0x178] sm:$0xff]
        %v2050 = vld [vmem:[%s651 + $0x180] sm:$0xff]
        %v2051 = vld [vmem:[%s651 + $0x188] sm:$0xff]
        %v2052 = vld [vmem:[%s651 + $0x190] sm:$0xff]
        %v2053 = vld [vmem:[%s651 + $0x198] sm:$0xff]
        %v2054 = vld [vmem:[%s651 + $0x1a0] sm:$0xff]
        %v2055 = vld [vmem:[%s651 + $0x1a8] sm:$0xff]
        %v2056 = vld [vmem:[%s651 + $0x1b0] sm:$0xff]
        %v2057 = vld [vmem:[%s651 + $0x1b8] sm:$0xff]
        %v2058 = vld [vmem:[%s651 + $0x1c0] sm:$0xff]
        %v2059 = vld [vmem:[%s651 + $0x1c8] sm:$0xff]
        %v2060 = vld [vmem:[%s651 + $0x1d0] sm:$0xff]
        %v2061 = vld [vmem:[%s651 + $0x1d8] sm:$0xff]
        %v2062 = vld [vmem:[%s651 + $0x1e0] sm:$0xff]
        %v2063 = vld [vmem:[%s651 + $0x1e8] sm:$0xff]
        %v2064 = vld [vmem:[%s651 + $0x1f0] sm:$0xff]
        %v2065 = vld [vmem:[%s651 + $0x1f8] sm:$0xff]
        %2066 = vmatprep.subr.mxu0 %v2003
        %2067 = vmatpush1.msra.mxu0 %v2002
        %2068 = vmatprep.subr.mxu0 %v2005
        %2069 = vmatpush1.msra.mxu0 %v2004
        %2070 = vmatprep.subr.mxu0 %v2007
        %2071 = vmatpush1.msra.mxu0 %v2006
        %2072 = vmatprep.subr.mxu0 %v2009
        %2073 = vmatpush1.msra.mxu0 %v2008
        %2074 = vmatprep.subr.mxu0 %v2011
        %2075 = vmatpush1.msra.mxu0 %v2010
        %2076 = vmatprep.subr.mxu0 %v2013
        %2077 = vmatpush1.msra.mxu0 %v2012
        %2078 = vmatprep.subr.mxu0 %v2015
        %2079 = vmatpush1.msra.mxu0 %v2014
        %2080 = vmatprep.subr.mxu0 %v2017
        %2081 = vmatpush1.msra.mxu0 %v2016
        %2082 = vmatprep.subr.mxu0 %v2019
        %2083 = vmatpush1.msra.mxu0 %v2018
        %2084 = vmatprep.subr.mxu0 %v2021
        %2085 = vmatpush1.msra.mxu0 %v2020
        %2086 = vmatprep.subr.mxu0 %v2023
        %2087 = vmatpush1.msra.mxu0 %v2022
        %2088 = vmatprep.subr.mxu0 %v2025
        %2089 = vmatpush1.msra.mxu0 %v2024
        %2090 = vmatprep.subr.mxu0 %v2027
        %2091 = vmatpush1.msra.mxu0 %v2026
        %2092 = vmatprep.subr.mxu0 %v2029
        %2093 = vmatpush1.msra.mxu0 %v2028
        %2094 = vmatprep.subr.mxu0 %v2031
        %2095 = vmatpush1.msra.mxu0 %v2030
        %2096 = vmatprep.subr.mxu0 %v2033
        %2097 = vmatpush1.msra.mxu0 %v2032
        %2098 = vmatprep.subr.mxu0 %v2035
        %2099 = vmatpush1.msra.mxu0 %v2034
        %2100 = vmatprep.subr.mxu0 %v2037
        %2101 = vmatpush1.msra.mxu0 %v2036
        %2102 = vmatprep.subr.mxu0 %v2039
        %2103 = vmatpush1.msra.mxu0 %v2038
        %2104 = vmatprep.subr.mxu0 %v2041
        %2105 = vmatpush1.msra.mxu0 %v2040
        %2106 = vmatprep.subr.mxu0 %v2043
        %2107 = vmatpush1.msra.mxu0 %v2042
        %2108 = vmatprep.subr.mxu0 %v2045
        %2109 = vmatpush1.msra.mxu0 %v2044
        %2110 = vmatprep.subr.mxu0 %v2047
        %2111 = vmatpush1.msra.mxu0 %v2046
        %2112 = vmatprep.subr.mxu0 %v2049
        %2113 = vmatpush1.msra.mxu0 %v2048
        %2114 = vmatprep.subr.mxu0 %v2051
        %2115 = vmatpush1.msra.mxu0 %v2050
        %2116 = vmatprep.subr.mxu0 %v2053
        %2117 = vmatpush1.msra.mxu0 %v2052
        %2118 = vmatprep.subr.mxu0 %v2055
        %2119 = vmatpush1.msra.mxu0 %v2054
        %2120 = vmatprep.subr.mxu0 %v2057
        %2121 = vmatpush1.msra.mxu0 %v2056
        %2122 = vmatprep.subr.mxu0 %v2059
        %2123 = vmatpush1.msra.mxu0 %v2058
        %2124 = vmatprep.subr.mxu0 %v2061
        %2125 = vmatpush1.msra.mxu0 %v2060
        %2126 = vmatprep.subr.mxu0 %v2063
        %2127 = vmatpush1.msra.mxu0 %v2062
        %2128 = vmatprep.subr.mxu0 %v2065
        %2129 = vmatpush1.msra.mxu0 %v2064
        %2130 = vmatprep.mubr.f32.mxu0 %v1864
        %2131 = vmatmul.mubr.f32.gmra.mrb[0].mxu0 %v1863
        %v2132 = vpop.f32.mrb[0].mxu0
        %v2133 = vadd.f32 0.0, %v2132
        %v2134 = vpop.f32.mrb[0].mxu0
        %v2135 = vadd.f32 0.0, %v2134
        %2136 = vdwg.mxu0
        %2137 = vst [vmem:[#allocation3 + $0x10] sm:$0xff] %v2133
        %2138 = vst [vmem:[#allocation3 + $0x18] sm:$0xff] %v2135
        %v2139 = vld [vmem:[%s789] sm:$0xff]
        %v2140 = vld [vmem:[%s789 + $0x8] sm:$0xff]
        %v2141 = vld [vmem:[%s789 + $0x10] sm:$0xff]
        %v2142 = vld [vmem:[%s789 + $0x18] sm:$0xff]
        %v2143 = vld [vmem:[%s789 + $0x20] sm:$0xff]
        %v2144 = vld [vmem:[%s789 + $0x28] sm:$0xff]
        %v2145 = vld [vmem:[%s789 + $0x30] sm:$0xff]
        %v2146 = vld [vmem:[%s789 + $0x38] sm:$0xff]
        %v2147 = vld [vmem:[%s789 + $0x40] sm:$0xff]
        %v2148 = vld [vmem:[%s789 + $0x48] sm:$0xff]
        %v2149 = vld [vmem:[%s789 + $0x50] sm:$0xff]
        %v2150 = vld [vmem:[%s789 + $0x58] sm:$0xff]
        %v2151 = vld [vmem:[%s789 + $0x60] sm:$0xff]
        %v2152 = vld [vmem:[%s789 + $0x68] sm:$0xff]
        %v2153 = vld [vmem:[%s789 + $0x70] sm:$0xff]
        %v2154 = vld [vmem:[%s789 + $0x78] sm:$0xff]
        %v2155 = vld [vmem:[%s789 + $0x80] sm:$0xff]
        %v2156 = vld [vmem:[%s789 + $0x88] sm:$0xff]
        %v2157 = vld [vmem:[%s789 + $0x90] sm:$0xff]
        %v2158 = vld [vmem:[%s789 + $0x98] sm:$0xff]
        %v2159 = vld [vmem:[%s789 + $0xa0] sm:$0xff]
        %v2160 = vld [vmem:[%s789 + $0xa8] sm:$0xff]
        %v2161 = vld [vmem:[%s789 + $0xb0] sm:$0xff]
        %v2162 = vld [vmem:[%s789 + $0xb8] sm:$0xff]
        %v2163 = vld [vmem:[%s789 + $0xc0] sm:$0xff]
        %v2164 = vld [vmem:[%s789 + $0xc8] sm:$0xff]
        %v2165 = vld [vmem:[%s789 + $0xd0] sm:$0xff]
        %v2166 = vld [vmem:[%s789 + $0xd8] sm:$0xff]
        %v2167 = vld [vmem:[%s789 + $0xe0] sm:$0xff]
        %v2168 = vld [vmem:[%s789 + $0xe8] sm:$0xff]
        %v2169 = vld [vmem:[%s789 + $0xf0] sm:$0xff]
        %v2170 = vld [vmem:[%s789 + $0xf8] sm:$0xff]
        %v2171 = vld [vmem:[%s789 + $0x100] sm:$0xff]
        %v2172 = vld [vmem:[%s789 + $0x108] sm:$0xff]
        %v2173 = vld [vmem:[%s789 + $0x110] sm:$0xff]
        %v2174 = vld [vmem:[%s789 + $0x118] sm:$0xff]
        %v2175 = vld [vmem:[%s789 + $0x120] sm:$0xff]
        %v2176 = vld [vmem:[%s789 + $0x128] sm:$0xff]
        %v2177 = vld [vmem:[%s789 + $0x130] sm:$0xff]
        %v2178 = vld [vmem:[%s789 + $0x138] sm:$0xff]
        %v2179 = vld [vmem:[%s789 + $0x140] sm:$0xff]
        %v2180 = vld [vmem:[%s789 + $0x148] sm:$0xff]
        %v2181 = vld [vmem:[%s789 + $0x150] sm:$0xff]
        %v2182 = vld [vmem:[%s789 + $0x158] sm:$0xff]
        %v2183 = vld [vmem:[%s789 + $0x160] sm:$0xff]
        %v2184 = vld [vmem:[%s789 + $0x168] sm:$0xff]
        %v2185 = vld [vmem:[%s789 + $0x170] sm:$0xff]
        %v2186 = vld [vmem:[%s789 + $0x178] sm:$0xff]
        %v2187 = vld [vmem:[%s789 + $0x180] sm:$0xff]
        %v2188 = vld [vmem:[%s789 + $0x188] sm:$0xff]
        %v2189 = vld [vmem:[%s789 + $0x190] sm:$0xff]
        %v2190 = vld [vmem:[%s789 + $0x198] sm:$0xff]
        %v2191 = vld [vmem:[%s789 + $0x1a0] sm:$0xff]
        %v2192 = vld [vmem:[%s789 + $0x1a8] sm:$0xff]
        %v2193 = vld [vmem:[%s789 + $0x1b0] sm:$0xff]
        %v2194 = vld [vmem:[%s789 + $0x1b8] sm:$0xff]
        %v2195 = vld [vmem:[%s789 + $0x1c0] sm:$0xff]
        %v2196 = vld [vmem:[%s789 + $0x1c8] sm:$0xff]
        %v2197 = vld [vmem:[%s789 + $0x1d0] sm:$0xff]
        %v2198 = vld [vmem:[%s789 + $0x1d8] sm:$0xff]
        %v2199 = vld [vmem:[%s789 + $0x1e0] sm:$0xff]
        %v2200 = vld [vmem:[%s789 + $0x1e8] sm:$0xff]
        %v2201 = vld [vmem:[%s789 + $0x1f0] sm:$0xff]
        %v2202 = vld [vmem:[%s789 + $0x1f8] sm:$0xff]
        %2203 = vmatprep.subr.mxu0 %v2140
        %2204 = vmatpush1.msra.mxu0 %v2139
        %2205 = vmatprep.subr.mxu0 %v2142
        %2206 = vmatpush1.msra.mxu0 %v2141
        %2207 = vmatprep.subr.mxu0 %v2144
        %2208 = vmatpush1.msra.mxu0 %v2143
        %2209 = vmatprep.subr.mxu0 %v2146
        %2210 = vmatpush1.msra.mxu0 %v2145
        %2211 = vmatprep.subr.mxu0 %v2148
        %2212 = vmatpush1.msra.mxu0 %v2147
        %2213 = vmatprep.subr.mxu0 %v2150
        %2214 = vmatpush1.msra.mxu0 %v2149
        %2215 = vmatprep.subr.mxu0 %v2152
        %2216 = vmatpush1.msra.mxu0 %v2151
        %2217 = vmatprep.subr.mxu0 %v2154
        %2218 = vmatpush1.msra.mxu0 %v2153
        %2219 = vmatprep.subr.mxu0 %v2156
        %2220 = vmatpush1.msra.mxu0 %v2155
        %2221 = vmatprep.subr.mxu0 %v2158
        %2222 = vmatpush1.msra.mxu0 %v2157
        %2223 = vmatprep.subr.mxu0 %v2160
        %2224 = vmatpush1.msra.mxu0 %v2159
        %2225 = vmatprep.subr.mxu0 %v2162
        %2226 = vmatpush1.msra.mxu0 %v2161
        %2227 = vmatprep.subr.mxu0 %v2164
        %2228 = vmatpush1.msra.mxu0 %v2163
        %2229 = vmatprep.subr.mxu0 %v2166
        %2230 = vmatpush1.msra.mxu0 %v2165
        %2231 = vmatprep.subr.mxu0 %v2168
        %2232 = vmatpush1.msra.mxu0 %v2167
        %2233 = vmatprep.subr.mxu0 %v2170
        %2234 = vmatpush1.msra.mxu0 %v2169
        %2235 = vmatprep.subr.mxu0 %v2172
        %2236 = vmatpush1.msra.mxu0 %v2171
        %2237 = vmatprep.subr.mxu0 %v2174
        %2238 = vmatpush1.msra.mxu0 %v2173
        %2239 = vmatprep.subr.mxu0 %v2176
        %2240 = vmatpush1.msra.mxu0 %v2175
        %2241 = vmatprep.subr.mxu0 %v2178
        %2242 = vmatpush1.msra.mxu0 %v2177
        %2243 = vmatprep.subr.mxu0 %v2180
        %2244 = vmatpush1.msra.mxu0 %v2179
        %2245 = vmatprep.subr.mxu0 %v2182
        %2246 = vmatpush1.msra.mxu0 %v2181
        %2247 = vmatprep.subr.mxu0 %v2184
        %2248 = vmatpush1.msra.mxu0 %v2183
        %2249 = vmatprep.subr.mxu0 %v2186
        %2250 = vmatpush1.msra.mxu0 %v2185
        %2251 = vmatprep.subr.mxu0 %v2188
        %2252 = vmatpush1.msra.mxu0 %v2187
        %2253 = vmatprep.subr.mxu0 %v2190
        %2254 = vmatpush1.msra.mxu0 %v2189
        %2255 = vmatprep.subr.mxu0 %v2192
        %2256 = vmatpush1.msra.mxu0 %v2191
        %2257 = vmatprep.subr.mxu0 %v2194
        %2258 = vmatpush1.msra.mxu0 %v2193
        %2259 = vmatprep.subr.mxu0 %v2196
        %2260 = vmatpush1.msra.mxu0 %v2195
        %2261 = vmatprep.subr.mxu0 %v2198
        %2262 = vmatpush1.msra.mxu0 %v2197
        %2263 = vmatprep.subr.mxu0 %v2200
        %2264 = vmatpush1.msra.mxu0 %v2199
        %2265 = vmatprep.subr.mxu0 %v2202
        %2266 = vmatpush1.msra.mxu0 %v2201
        %2267 = vmatprep.mubr.f32.mxu0 %v1864
        %2268 = vmatmul.mubr.f32.gmra.mrb[0].mxu0 %v1863
        %v2269 = vpop.f32.mrb[0].mxu0
        %v2270 = vadd.f32 0.0, %v2269
        %v2271 = vpop.f32.mrb[0].mxu0
        %v2272 = vadd.f32 0.0, %v2271
        %2273 = vdwg.mxu0
        %2274 = vst [vmem:[#allocation3 + $0x20] sm:$0xff] %v2270
        %2275 = vst [vmem:[#allocation3 + $0x28] sm:$0xff] %v2272
        %v2276 = vld [vmem:[%s927] sm:$0xff]
        %v2277 = vld [vmem:[%s927 + $0x8] sm:$0xff]
        %v2278 = vld [vmem:[%s927 + $0x10] sm:$0xff]
        %v2279 = vld [vmem:[%s927 + $0x18] sm:$0xff]
        %v2280 = vld [vmem:[%s927 + $0x20] sm:$0xff]
        %v2281 = vld [vmem:[%s927 + $0x28] sm:$0xff]
        %v2282 = vld [vmem:[%s927 + $0x30] sm:$0xff]
        %v2283 = vld [vmem:[%s927 + $0x38] sm:$0xff]
        %v2284 = vld [vmem:[%s927 + $0x40] sm:$0xff]
        %v2285 = vld [vmem:[%s927 + $0x48] sm:$0xff]
        %v2286 = vld [vmem:[%s927 + $0x50] sm:$0xff]
        %v2287 = vld [vmem:[%s927 + $0x58] sm:$0xff]
        %v2288 = vld [vmem:[%s927 + $0x60] sm:$0xff]
        %v2289 = vld [vmem:[%s927 + $0x68] sm:$0xff]
        %v2290 = vld [vmem:[%s927 + $0x70] sm:$0xff]
        %v2291 = vld [vmem:[%s927 + $0x78] sm:$0xff]
        %v2292 = vld [vmem:[%s927 + $0x80] sm:$0xff]
        %v2293 = vld [vmem:[%s927 + $0x88] sm:$0xff]
        %v2294 = vld [vmem:[%s927 + $0x90] sm:$0xff]
        %v2295 = vld [vmem:[%s927 + $0x98] sm:$0xff]
        %v2296 = vld [vmem:[%s927 + $0xa0] sm:$0xff]
        %v2297 = vld [vmem:[%s927 + $0xa8] sm:$0xff]
        %v2298 = vld [vmem:[%s927 + $0xb0] sm:$0xff]
        %v2299 = vld [vmem:[%s927 + $0xb8] sm:$0xff]
        %v2300 = vld [vmem:[%s927 + $0xc0] sm:$0xff]
        %v2301 = vld [vmem:[%s927 + $0xc8] sm:$0xff]
        %v2302 = vld [vmem:[%s927 + $0xd0] sm:$0xff]
        %v2303 = vld [vmem:[%s927 + $0xd8] sm:$0xff]
        %v2304 = vld [vmem:[%s927 + $0xe0] sm:$0xff]
        %v2305 = vld [vmem:[%s927 + $0xe8] sm:$0xff]
        %v2306 = vld [vmem:[%s927 + $0xf0] sm:$0xff]
        %v2307 = vld [vmem:[%s927 + $0xf8] sm:$0xff]
        %v2308 = vld [vmem:[%s927 + $0x100] sm:$0xff]
        %v2309 = vld [vmem:[%s927 + $0x108] sm:$0xff]
        %v2310 = vld [vmem:[%s927 + $0x110] sm:$0xff]
        %v2311 = vld [vmem:[%s927 + $0x118] sm:$0xff]
        %v2312 = vld [vmem:[%s927 + $0x120] sm:$0xff]
        %v2313 = vld [vmem:[%s927 + $0x128] sm:$0xff]
        %v2314 = vld [vmem:[%s927 + $0x130] sm:$0xff]
        %v2315 = vld [vmem:[%s927 + $0x138] sm:$0xff]
        %v2316 = vld [vmem:[%s927 + $0x140] sm:$0xff]
        %v2317 = vld [vmem:[%s927 + $0x148] sm:$0xff]
        %v2318 = vld [vmem:[%s927 + $0x150] sm:$0xff]
        %v2319 = vld [vmem:[%s927 + $0x158] sm:$0xff]
        %v2320 = vld [vmem:[%s927 + $0x160] sm:$0xff]
        %v2321 = vld [vmem:[%s927 + $0x168] sm:$0xff]
        %v2322 = vld [vmem:[%s927 + $0x170] sm:$0xff]
        %v2323 = vld [vmem:[%s927 + $0x178] sm:$0xff]
        %v2324 = vld [vmem:[%s927 + $0x180] sm:$0xff]
        %v2325 = vld [vmem:[%s927 + $0x188] sm:$0xff]
        %v2326 = vld [vmem:[%s927 + $0x190] sm:$0xff]
        %v2327 = vld [vmem:[%s927 + $0x198] sm:$0xff]
        %v2328 = vld [vmem:[%s927 + $0x1a0] sm:$0xff]
        %v2329 = vld [vmem:[%s927 + $0x1a8] sm:$0xff]
        %v2330 = vld [vmem:[%s927 + $0x1b0] sm:$0xff]
        %v2331 = vld [vmem:[%s927 + $0x1b8] sm:$0xff]
        %v2332 = vld [vmem:[%s927 + $0x1c0] sm:$0xff]
        %v2333 = vld [vmem:[%s927 + $0x1c8] sm:$0xff]
        %v2334 = vld [vmem:[%s927 + $0x1d0] sm:$0xff]
        %v2335 = vld [vmem:[%s927 + $0x1d8] sm:$0xff]
        %v2336 = vld [vmem:[%s927 + $0x1e0] sm:$0xff]
        %v2337 = vld [vmem:[%s927 + $0x1e8] sm:$0xff]
        %v2338 = vld [vmem:[%s927 + $0x1f0] sm:$0xff]
        %v2339 = vld [vmem:[%s927 + $0x1f8] sm:$0xff]
        %2340 = vmatprep.subr.mxu0 %v2277
        %2341 = vmatpush1.msra.mxu0 %v2276
        %2342 = vmatprep.subr.mxu0 %v2279
        %2343 = vmatpush1.msra.mxu0 %v2278
        %2344 = vmatprep.subr.mxu0 %v2281
        %2345 = vmatpush1.msra.mxu0 %v2280
        %2346 = vmatprep.subr.mxu0 %v2283
        %2347 = vmatpush1.msra.mxu0 %v2282
        %2348 = vmatprep.subr.mxu0 %v2285
        %2349 = vmatpush1.msra.mxu0 %v2284
        %2350 = vmatprep.subr.mxu0 %v2287
        %2351 = vmatpush1.msra.mxu0 %v2286
        %2352 = vmatprep.subr.mxu0 %v2289
        %2353 = vmatpush1.msra.mxu0 %v2288
        %2354 = vmatprep.subr.mxu0 %v2291
        %2355 = vmatpush1.msra.mxu0 %v2290
        %2356 = vmatprep.subr.mxu0 %v2293
        %2357 = vmatpush1.msra.mxu0 %v2292
        %2358 = vmatprep.subr.mxu0 %v2295
        %2359 = vmatpush1.msra.mxu0 %v2294
        %2360 = vmatprep.subr.mxu0 %v2297
        %2361 = vmatpush1.msra.mxu0 %v2296
        %2362 = vmatprep.subr.mxu0 %v2299
        %2363 = vmatpush1.msra.mxu0 %v2298
        %2364 = vmatprep.subr.mxu0 %v2301
        %2365 = vmatpush1.msra.mxu0 %v2300
        %2366 = vmatprep.subr.mxu0 %v2303
        %2367 = vmatpush1.msra.mxu0 %v2302
        %2368 = vmatprep.subr.mxu0 %v2305
        %2369 = vmatpush1.msra.mxu0 %v2304
        %2370 = vmatprep.subr.mxu0 %v2307
        %2371 = vmatpush1.msra.mxu0 %v2306
        %2372 = vmatprep.subr.mxu0 %v2309
        %2373 = vmatpush1.msra.mxu0 %v2308
        %2374 = vmatprep.subr.mxu0 %v2311
        %2375 = vmatpush1.msra.mxu0 %v2310
        %2376 = vmatprep.subr.mxu0 %v2313
        %2377 = vmatpush1.msra.mxu0 %v2312
        %2378 = vmatprep.subr.mxu0 %v2315
        %2379 = vmatpush1.msra.mxu0 %v2314
        %2380 = vmatprep.subr.mxu0 %v2317
        %2381 = vmatpush1.msra.mxu0 %v2316
        %2382 = vmatprep.subr.mxu0 %v2319
        %2383 = vmatpush1.msra.mxu0 %v2318
        %2384 = vmatprep.subr.mxu0 %v2321
        %2385 = vmatpush1.msra.mxu0 %v2320
        %2386 = vmatprep.subr.mxu0 %v2323
        %2387 = vmatpush1.msra.mxu0 %v2322
        %2388 = vmatprep.subr.mxu0 %v2325
        %2389 = vmatpush1.msra.mxu0 %v2324
        %2390 = vmatprep.subr.mxu0 %v2327
        %2391 = vmatpush1.msra.mxu0 %v2326
        %2392 = vmatprep.subr.mxu0 %v2329
        %2393 = vmatpush1.msra.mxu0 %v2328
        %2394 = vmatprep.subr.mxu0 %v2331
        %2395 = vmatpush1.msra.mxu0 %v2330
        %2396 = vmatprep.subr.mxu0 %v2333
        %2397 = vmatpush1.msra.mxu0 %v2332
        %2398 = vmatprep.subr.mxu0 %v2335
        %2399 = vmatpush1.msra.mxu0 %v2334
        %2400 = vmatprep.subr.mxu0 %v2337
        %2401 = vmatpush1.msra.mxu0 %v2336
        %2402 = vmatprep.subr.mxu0 %v2339
        %2403 = vmatpush1.msra.mxu0 %v2338
        %2404 = vmatprep.mubr.f32.mxu0 %v1864
        %2405 = vmatmul.mubr.f32.gmra.mrb[0].mxu0 %v1863
        %v2406 = vpop.f32.mrb[0].mxu0
        %v2407 = vadd.f32 0.0, %v2406
        %v2408 = vpop.f32.mrb[0].mxu0
        %v2409 = vadd.f32 0.0, %v2408
        %2410 = vdwg.mxu0
        %2411 = vst [vmem:[#allocation3 + $0x30] sm:$0xff] %v2407
        %2412 = vst [vmem:[#allocation3 + $0x38] sm:$0xff] %v2409
        %v2413 = vld [vmem:[%s1065] sm:$0xff]
        %v2414 = vld [vmem:[%s1065 + $0x8] sm:$0xff]
        %v2415 = vld [vmem:[%s1065 + $0x10] sm:$0xff]
        %v2416 = vld [vmem:[%s1065 + $0x18] sm:$0xff]
        %v2417 = vld [vmem:[%s1065 + $0x20] sm:$0xff]
        %v2418 = vld [vmem:[%s1065 + $0x28] sm:$0xff]
        %v2419 = vld [vmem:[%s1065 + $0x30] sm:$0xff]
        %v2420 = vld [vmem:[%s1065 + $0x38] sm:$0xff]
        %v2421 = vld [vmem:[%s1065 + $0x40] sm:$0xff]
        %v2422 = vld [vmem:[%s1065 + $0x48] sm:$0xff]
        %v2423 = vld [vmem:[%s1065 + $0x50] sm:$0xff]
        %v2424 = vld [vmem:[%s1065 + $0x58] sm:$0xff]
        %v2425 = vld [vmem:[%s1065 + $0x60] sm:$0xff]
        %v2426 = vld [vmem:[%s1065 + $0x68] sm:$0xff]
        %v2427 = vld [vmem:[%s1065 + $0x70] sm:$0xff]
        %v2428 = vld [vmem:[%s1065 + $0x78] sm:$0xff]
        %v2429 = vld [vmem:[%s1065 + $0x80] sm:$0xff]
        %v2430 = vld [vmem:[%s1065 + $0x88] sm:$0xff]
        %v2431 = vld [vmem:[%s1065 + $0x90] sm:$0xff]
        %v2432 = vld [vmem:[%s1065 + $0x98] sm:$0xff]
        %v2433 = vld [vmem:[%s1065 + $0xa0] sm:$0xff]
        %v2434 = vld [vmem:[%s1065 + $0xa8] sm:$0xff]
        %v2435 = vld [vmem:[%s1065 + $0xb0] sm:$0xff]
        %v2436 = vld [vmem:[%s1065 + $0xb8] sm:$0xff]
        %v2437 = vld [vmem:[%s1065 + $0xc0] sm:$0xff]
        %v2438 = vld [vmem:[%s1065 + $0xc8] sm:$0xff]
        %v2439 = vld [vmem:[%s1065 + $0xd0] sm:$0xff]
        %v2440 = vld [vmem:[%s1065 + $0xd8] sm:$0xff]
        %v2441 = vld [vmem:[%s1065 + $0xe0] sm:$0xff]
        %v2442 = vld [vmem:[%s1065 + $0xe8] sm:$0xff]
        %v2443 = vld [vmem:[%s1065 + $0xf0] sm:$0xff]
        %v2444 = vld [vmem:[%s1065 + $0xf8] sm:$0xff]
        %v2445 = vld [vmem:[%s1065 + $0x100] sm:$0xff]
        %v2446 = vld [vmem:[%s1065 + $0x108] sm:$0xff]
        %v2447 = vld [vmem:[%s1065 + $0x110] sm:$0xff]
        %v2448 = vld [vmem:[%s1065 + $0x118] sm:$0xff]
        %v2449 = vld [vmem:[%s1065 + $0x120] sm:$0xff]
        %v2450 = vld [vmem:[%s1065 + $0x128] sm:$0xff]
        %v2451 = vld [vmem:[%s1065 + $0x130] sm:$0xff]
        %v2452 = vld [vmem:[%s1065 + $0x138] sm:$0xff]
        %v2453 = vld [vmem:[%s1065 + $0x140] sm:$0xff]
        %v2454 = vld [vmem:[%s1065 + $0x148] sm:$0xff]
        %v2455 = vld [vmem:[%s1065 + $0x150] sm:$0xff]
        %v2456 = vld [vmem:[%s1065 + $0x158] sm:$0xff]
        %v2457 = vld [vmem:[%s1065 + $0x160] sm:$0xff]
        %v2458 = vld [vmem:[%s1065 + $0x168] sm:$0xff]
        %v2459 = vld [vmem:[%s1065 + $0x170] sm:$0xff]
        %v2460 = vld [vmem:[%s1065 + $0x178] sm:$0xff]
        %v2461 = vld [vmem:[%s1065 + $0x180] sm:$0xff]
        %v2462 = vld [vmem:[%s1065 + $0x188] sm:$0xff]
        %v2463 = vld [vmem:[%s1065 + $0x190] sm:$0xff]
        %v2464 = vld [vmem:[%s1065 + $0x198] sm:$0xff]
        %v2465 = vld [vmem:[%s1065 + $0x1a0] sm:$0xff]
        %v2466 = vld [vmem:[%s1065 + $0x1a8] sm:$0xff]
        %v2467 = vld [vmem:[%s1065 + $0x1b0] sm:$0xff]
        %v2468 = vld [vmem:[%s1065 + $0x1b8] sm:$0xff]
        %v2469 = vld [vmem:[%s1065 + $0x1c0] sm:$0xff]
        %v2470 = vld [vmem:[%s1065 + $0x1c8] sm:$0xff]
        %v2471 = vld [vmem:[%s1065 + $0x1d0] sm:$0xff]
        %v2472 = vld [vmem:[%s1065 + $0x1d8] sm:$0xff]
        %v2473 = vld [vmem:[%s1065 + $0x1e0] sm:$0xff]
        %v2474 = vld [vmem:[%s1065 + $0x1e8] sm:$0xff]
        %v2475 = vld [vmem:[%s1065 + $0x1f0] sm:$0xff]
        %v2476 = vld [vmem:[%s1065 + $0x1f8] sm:$0xff]
        %2477 = vmatprep.subr.mxu0 %v2414
        %2478 = vmatpush1.msra.mxu0 %v2413
        %2479 = vmatprep.subr.mxu0 %v2416
        %2480 = vmatpush1.msra.mxu0 %v2415
        %2481 = vmatprep.subr.mxu0 %v2418
        %2482 = vmatpush1.msra.mxu0 %v2417
        %2483 = vmatprep.subr.mxu0 %v2420
        %2484 = vmatpush1.msra.mxu0 %v2419
        %2485 = vmatprep.subr.mxu0 %v2422
        %2486 = vmatpush1.msra.mxu0 %v2421
        %2487 = vmatprep.subr.mxu0 %v2424
        %2488 = vmatpush1.msra.mxu0 %v2423
        %2489 = vmatprep.subr.mxu0 %v2426
        %2490 = vmatpush1.msra.mxu0 %v2425
        %2491 = vmatprep.subr.mxu0 %v2428
        %2492 = vmatpush1.msra.mxu0 %v2427
        %2493 = vmatprep.subr.mxu0 %v2430
        %2494 = vmatpush1.msra.mxu0 %v2429
        %2495 = vmatprep.subr.mxu0 %v2432
        %2496 = vmatpush1.msra.mxu0 %v2431
        %2497 = vmatprep.subr.mxu0 %v2434
        %2498 = vmatpush1.msra.mxu0 %v2433
        %2499 = vmatprep.subr.mxu0 %v2436
        %2500 = vmatpush1.msra.mxu0 %v2435
        %2501 = vmatprep.subr.mxu0 %v2438
        %2502 = vmatpush1.msra.mxu0 %v2437
        %2503 = vmatprep.subr.mxu0 %v2440
        %2504 = vmatpush1.msra.mxu0 %v2439
        %2505 = vmatprep.subr.mxu0 %v2442
        %2506 = vmatpush1.msra.mxu0 %v2441
        %2507 = vmatprep.subr.mxu0 %v2444
        %2508 = vmatpush1.msra.mxu0 %v2443
        %2509 = vmatprep.subr.mxu0 %v2446
        %2510 = vmatpush1.msra.mxu0 %v2445
        %2511 = vmatprep.subr.mxu0 %v2448
        %2512 = vmatpush1.msra.mxu0 %v2447
        %2513 = vmatprep.subr.mxu0 %v2450
        %2514 = vmatpush1.msra.mxu0 %v2449
        %2515 = vmatprep.subr.mxu0 %v2452
        %2516 = vmatpush1.msra.mxu0 %v2451
        %2517 = vmatprep.subr.mxu0 %v2454
        %2518 = vmatpush1.msra.mxu0 %v2453
        %2519 = vmatprep.subr.mxu0 %v2456
        %2520 = vmatpush1.msra.mxu0 %v2455
        %2521 = vmatprep.subr.mxu0 %v2458
        %2522 = vmatpush1.msra.mxu0 %v2457
        %2523 = vmatprep.subr.mxu0 %v2460
        %2524 = vmatpush1.msra.mxu0 %v2459
        %2525 = vmatprep.subr.mxu0 %v2462
        %2526 = vmatpush1.msra.mxu0 %v2461
        %2527 = vmatprep.subr.mxu0 %v2464
        %2528 = vmatpush1.msra.mxu0 %v2463
        %2529 = vmatprep.subr.mxu0 %v2466
        %2530 = vmatpush1.msra.mxu0 %v2465
        %2531 = vmatprep.subr.mxu0 %v2468
        %2532 = vmatpush1.msra.mxu0 %v2467
        %2533 = vmatprep.subr.mxu0 %v2470
        %2534 = vmatpush1.msra.mxu0 %v2469
        %2535 = vmatprep.subr.mxu0 %v2472
        %2536 = vmatpush1.msra.mxu0 %v2471
        %2537 = vmatprep.subr.mxu0 %v2474
        %2538 = vmatpush1.msra.mxu0 %v2473
        %2539 = vmatprep.subr.mxu0 %v2476
        %2540 = vmatpush1.msra.mxu0 %v2475
        %2541 = vmatprep.mubr.f32.mxu0 %v1864
        %2542 = vmatmul.mubr.f32.gmra.mrb[0].mxu0 %v1863
        %v2543 = vpop.f32.mrb[0].mxu0
        %v2544 = vadd.f32 0.0, %v2543
        %v2545 = vpop.f32.mrb[0].mxu0
        %v2546 = vadd.f32 0.0, %v2545
        %2547 = vdwg.mxu0
        %2548 = vst [vmem:[#allocation3 + $0x40] sm:$0xff] %v2544
        %2549 = vst [vmem:[#allocation3 + $0x48] sm:$0xff] %v2546
        %v2550 = vld [vmem:[%s1203] sm:$0xff]
        %v2551 = vld [vmem:[%s1203 + $0x8] sm:$0xff]
        %v2552 = vld [vmem:[%s1203 + $0x10] sm:$0xff]
        %v2553 = vld [vmem:[%s1203 + $0x18] sm:$0xff]
        %v2554 = vld [vmem:[%s1203 + $0x20] sm:$0xff]
        %v2555 = vld [vmem:[%s1203 + $0x28] sm:$0xff]
        %v2556 = vld [vmem:[%s1203 + $0x30] sm:$0xff]
        %v2557 = vld [vmem:[%s1203 + $0x38] sm:$0xff]
        %v2558 = vld [vmem:[%s1203 + $0x40] sm:$0xff]
        %v2559 = vld [vmem:[%s1203 + $0x48] sm:$0xff]
        %v2560 = vld [vmem:[%s1203 + $0x50] sm:$0xff]
        %v2561 = vld [vmem:[%s1203 + $0x58] sm:$0xff]
        %v2562 = vld [vmem:[%s1203 + $0x60] sm:$0xff]
        %v2563 = vld [vmem:[%s1203 + $0x68] sm:$0xff]
        %v2564 = vld [vmem:[%s1203 + $0x70] sm:$0xff]
        %v2565 = vld [vmem:[%s1203 + $0x78] sm:$0xff]
        %v2566 = vld [vmem:[%s1203 + $0x80] sm:$0xff]
        %v2567 = vld [vmem:[%s1203 + $0x88] sm:$0xff]
        %v2568 = vld [vmem:[%s1203 + $0x90] sm:$0xff]
        %v2569 = vld [vmem:[%s1203 + $0x98] sm:$0xff]
        %v2570 = vld [vmem:[%s1203 + $0xa0] sm:$0xff]
        %v2571 = vld [vmem:[%s1203 + $0xa8] sm:$0xff]
        %v2572 = vld [vmem:[%s1203 + $0xb0] sm:$0xff]
        %v2573 = vld [vmem:[%s1203 + $0xb8] sm:$0xff]
        %v2574 = vld [vmem:[%s1203 + $0xc0] sm:$0xff]
        %v2575 = vld [vmem:[%s1203 + $0xc8] sm:$0xff]
        %v2576 = vld [vmem:[%s1203 + $0xd0] sm:$0xff]
        %v2577 = vld [vmem:[%s1203 + $0xd8] sm:$0xff]
        %v2578 = vld [vmem:[%s1203 + $0xe0] sm:$0xff]
        %v2579 = vld [vmem:[%s1203 + $0xe8] sm:$0xff]
        %v2580 = vld [vmem:[%s1203 + $0xf0] sm:$0xff]
        %v2581 = vld [vmem:[%s1203 + $0xf8] sm:$0xff]
        %v2582 = vld [vmem:[%s1203 + $0x100] sm:$0xff]
        %v2583 = vld [vmem:[%s1203 + $0x108] sm:$0xff]
        %v2584 = vld [vmem:[%s1203 + $0x110] sm:$0xff]
        %v2585 = vld [vmem:[%s1203 + $0x118] sm:$0xff]
        %v2586 = vld [vmem:[%s1203 + $0x120] sm:$0xff]
        %v2587 = vld [vmem:[%s1203 + $0x128] sm:$0xff]
        %v2588 = vld [vmem:[%s1203 + $0x130] sm:$0xff]
        %v2589 = vld [vmem:[%s1203 + $0x138] sm:$0xff]
        %v2590 = vld [vmem:[%s1203 + $0x140] sm:$0xff]
        %v2591 = vld [vmem:[%s1203 + $0x148] sm:$0xff]
        %v2592 = vld [vmem:[%s1203 + $0x150] sm:$0xff]
        %v2593 = vld [vmem:[%s1203 + $0x158] sm:$0xff]
        %v2594 = vld [vmem:[%s1203 + $0x160] sm:$0xff]
        %v2595 = vld [vmem:[%s1203 + $0x168] sm:$0xff]
        %v2596 = vld [vmem:[%s1203 + $0x170] sm:$0xff]
        %v2597 = vld [vmem:[%s1203 + $0x178] sm:$0xff]
        %v2598 = vld [vmem:[%s1203 + $0x180] sm:$0xff]
        %v2599 = vld [vmem:[%s1203 + $0x188] sm:$0xff]
        %v2600 = vld [vmem:[%s1203 + $0x190] sm:$0xff]
        %v2601 = vld [vmem:[%s1203 + $0x198] sm:$0xff]
        %v2602 = vld [vmem:[%s1203 + $0x1a0] sm:$0xff]
        %v2603 = vld [vmem:[%s1203 + $0x1a8] sm:$0xff]
        %v2604 = vld [vmem:[%s1203 + $0x1b0] sm:$0xff]
        %v2605 = vld [vmem:[%s1203 + $0x1b8] sm:$0xff]
        %v2606 = vld [vmem:[%s1203 + $0x1c0] sm:$0xff]
        %v2607 = vld [vmem:[%s1203 + $0x1c8] sm:$0xff]
        %v2608 = vld [vmem:[%s1203 + $0x1d0] sm:$0xff]
        %v2609 = vld [vmem:[%s1203 + $0x1d8] sm:$0xff]
        %v2610 = vld [vmem:[%s1203 + $0x1e0] sm:$0xff]
        %v2611 = vld [vmem:[%s1203 + $0x1e8] sm:$0xff]
        %v2612 = vld [vmem:[%s1203 + $0x1f0] sm:$0xff]
        %v2613 = vld [vmem:[%s1203 + $0x1f8] sm:$0xff]
        %2614 = vmatprep.subr.mxu0 %v2551
        %2615 = vmatpush1.msra.mxu0 %v2550
        %2616 = vmatprep.subr.mxu0 %v2553
        %2617 = vmatpush1.msra.mxu0 %v2552
        %2618 = vmatprep.subr.mxu0 %v2555
        %2619 = vmatpush1.msra.mxu0 %v2554
        %2620 = vmatprep.subr.mxu0 %v2557
        %2621 = vmatpush1.msra.mxu0 %v2556
        %2622 = vmatprep.subr.mxu0 %v2559
        %2623 = vmatpush1.msra.mxu0 %v2558
        %2624 = vmatprep.subr.mxu0 %v2561
        %2625 = vmatpush1.msra.mxu0 %v2560
        %2626 = vmatprep.subr.mxu0 %v2563
        %2627 = vmatpush1.msra.mxu0 %v2562
        %2628 = vmatprep.subr.mxu0 %v2565
        %2629 = vmatpush1.msra.mxu0 %v2564
        %2630 = vmatprep.subr.mxu0 %v2567
        %2631 = vmatpush1.msra.mxu0 %v2566
        %2632 = vmatprep.subr.mxu0 %v2569
        %2633 = vmatpush1.msra.mxu0 %v2568
        %2634 = vmatprep.subr.mxu0 %v2571
        %2635 = vmatpush1.msra.mxu0 %v2570
        %2636 = vmatprep.subr.mxu0 %v2573
        %2637 = vmatpush1.msra.mxu0 %v2572
        %2638 = vmatprep.subr.mxu0 %v2575
        %2639 = vmatpush1.msra.mxu0 %v2574
        %2640 = vmatprep.subr.mxu0 %v2577
        %2641 = vmatpush1.msra.mxu0 %v2576
        %2642 = vmatprep.subr.mxu0 %v2579
        %2643 = vmatpush1.msra.mxu0 %v2578
        %2644 = vmatprep.subr.mxu0 %v2581
        %2645 = vmatpush1.msra.mxu0 %v2580
        %2646 = vmatprep.subr.mxu0 %v2583
        %2647 = vmatpush1.msra.mxu0 %v2582
        %2648 = vmatprep.subr.mxu0 %v2585
        %2649 = vmatpush1.msra.mxu0 %v2584
        %2650 = vmatprep.subr.mxu0 %v2587
        %2651 = vmatpush1.msra.mxu0 %v2586
        %2652 = vmatprep.subr.mxu0 %v2589
        %2653 = vmatpush1.msra.mxu0 %v2588
        %2654 = vmatprep.subr.mxu0 %v2591
        %2655 = vmatpush1.msra.mxu0 %v2590
        %2656 = vmatprep.subr.mxu0 %v2593
        %2657 = vmatpush1.msra.mxu0 %v2592
        %2658 = vmatprep.subr.mxu0 %v2595
        %2659 = vmatpush1.msra.mxu0 %v2594
        %2660 = vmatprep.subr.mxu0 %v2597
        %2661 = vmatpush1.msra.mxu0 %v2596
        %2662 = vmatprep.subr.mxu0 %v2599
        %2663 = vmatpush1.msra.mxu0 %v2598
        %2664 = vmatprep.subr.mxu0 %v2601
        %2665 = vmatpush1.msra.mxu0 %v2600
        %2666 = vmatprep.subr.mxu0 %v2603
        %2667 = vmatpush1.msra.mxu0 %v2602
        %2668 = vmatprep.subr.mxu0 %v2605
        %2669 = vmatpush1.msra.mxu0 %v2604
        %2670 = vmatprep.subr.mxu0 %v2607
        %2671 = vmatpush1.msra.mxu0 %v2606
        %2672 = vmatprep.subr.mxu0 %v2609
        %2673 = vmatpush1.msra.mxu0 %v2608
        %2674 = vmatprep.subr.mxu0 %v2611
        %2675 = vmatpush1.msra.mxu0 %v2610
        %2676 = vmatprep.subr.mxu0 %v2613
        %2677 = vmatpush1.msra.mxu0 %v2612
        %2678 = vmatprep.mubr.f32.mxu0 %v1864
        %2679 = vmatmul.mubr.f32.gmra.mrb[0].mxu0 %v1863
        %v2680 = vpop.f32.mrb[0].mxu0
        %v2681 = vadd.f32 0.0, %v2680
        %v2682 = vpop.f32.mrb[0].mxu0
        %v2683 = vadd.f32 0.0, %v2682
        %2684 = vdwg.mxu0
        %2685 = vst [vmem:[#allocation3 + $0x50] sm:$0xff] %v2681
        %2686 = vst [vmem:[#allocation3 + $0x58] sm:$0xff] %v2683
        %v2687 = vld [vmem:[%s1341] sm:$0xff]
        %v2688 = vld [vmem:[%s1341 + $0x8] sm:$0xff]
        %v2689 = vld [vmem:[%s1341 + $0x10] sm:$0xff]
        %v2690 = vld [vmem:[%s1341 + $0x18] sm:$0xff]
        %v2691 = vld [vmem:[%s1341 + $0x20] sm:$0xff]
        %v2692 = vld [vmem:[%s1341 + $0x28] sm:$0xff]
        %v2693 = vld [vmem:[%s1341 + $0x30] sm:$0xff]
        %v2694 = vld [vmem:[%s1341 + $0x38] sm:$0xff]
        %v2695 = vld [vmem:[%s1341 + $0x40] sm:$0xff]
        %v2696 = vld [vmem:[%s1341 + $0x48] sm:$0xff]
        %v2697 = vld [vmem:[%s1341 + $0x50] sm:$0xff]
        %v2698 = vld [vmem:[%s1341 + $0x58] sm:$0xff]
        %v2699 = vld [vmem:[%s1341 + $0x60] sm:$0xff]
        %v2700 = vld [vmem:[%s1341 + $0x68] sm:$0xff]
        %v2701 = vld [vmem:[%s1341 + $0x70] sm:$0xff]
        %v2702 = vld [vmem:[%s1341 + $0x78] sm:$0xff]
        %v2703 = vld [vmem:[%s1341 + $0x80] sm:$0xff]
        %v2704 = vld [vmem:[%s1341 + $0x88] sm:$0xff]
        %v2705 = vld [vmem:[%s1341 + $0x90] sm:$0xff]
        %v2706 = vld [vmem:[%s1341 + $0x98] sm:$0xff]
        %v2707 = vld [vmem:[%s1341 + $0xa0] sm:$0xff]
        %v2708 = vld [vmem:[%s1341 + $0xa8] sm:$0xff]
        %v2709 = vld [vmem:[%s1341 + $0xb0] sm:$0xff]
        %v2710 = vld [vmem:[%s1341 + $0xb8] sm:$0xff]
        %v2711 = vld [vmem:[%s1341 + $0xc0] sm:$0xff]
        %v2712 = vld [vmem:[%s1341 + $0xc8] sm:$0xff]
        %v2713 = vld [vmem:[%s1341 + $0xd0] sm:$0xff]
        %v2714 = vld [vmem:[%s1341 + $0xd8] sm:$0xff]
        %v2715 = vld [vmem:[%s1341 + $0xe0] sm:$0xff]
        %v2716 = vld [vmem:[%s1341 + $0xe8] sm:$0xff]
        %v2717 = vld [vmem:[%s1341 + $0xf0] sm:$0xff]
        %v2718 = vld [vmem:[%s1341 + $0xf8] sm:$0xff]
        %v2719 = vld [vmem:[%s1341 + $0x100] sm:$0xff]
        %v2720 = vld [vmem:[%s1341 + $0x108] sm:$0xff]
        %v2721 = vld [vmem:[%s1341 + $0x110] sm:$0xff]
        %v2722 = vld [vmem:[%s1341 + $0x118] sm:$0xff]
        %v2723 = vld [vmem:[%s1341 + $0x120] sm:$0xff]
        %v2724 = vld [vmem:[%s1341 + $0x128] sm:$0xff]
        %v2725 = vld [vmem:[%s1341 + $0x130] sm:$0xff]
        %v2726 = vld [vmem:[%s1341 + $0x138] sm:$0xff]
        %v2727 = vld [vmem:[%s1341 + $0x140] sm:$0xff]
        %v2728 = vld [vmem:[%s1341 + $0x148] sm:$0xff]
        %v2729 = vld [vmem:[%s1341 + $0x150] sm:$0xff]
        %v2730 = vld [vmem:[%s1341 + $0x158] sm:$0xff]
        %v2731 = vld [vmem:[%s1341 + $0x160] sm:$0xff]
        %v2732 = vld [vmem:[%s1341 + $0x168] sm:$0xff]
        %v2733 = vld [vmem:[%s1341 + $0x170] sm:$0xff]
        %v2734 = vld [vmem:[%s1341 + $0x178] sm:$0xff]
        %v2735 = vld [vmem:[%s1341 + $0x180] sm:$0xff]
        %v2736 = vld [vmem:[%s1341 + $0x188] sm:$0xff]
        %v2737 = vld [vmem:[%s1341 + $0x190] sm:$0xff]
        %v2738 = vld [vmem:[%s1341 + $0x198] sm:$0xff]
        %v2739 = vld [vmem:[%s1341 + $0x1a0] sm:$0xff]
        %v2740 = vld [vmem:[%s1341 + $0x1a8] sm:$0xff]
        %v2741 = vld [vmem:[%s1341 + $0x1b0] sm:$0xff]
        %v2742 = vld [vmem:[%s1341 + $0x1b8] sm:$0xff]
        %v2743 = vld [vmem:[%s1341 + $0x1c0] sm:$0xff]
        %v2744 = vld [vmem:[%s1341 + $0x1c8] sm:$0xff]
        %v2745 = vld [vmem:[%s1341 + $0x1d0] sm:$0xff]
        %v2746 = vld [vmem:[%s1341 + $0x1d8] sm:$0xff]
        %v2747 = vld [vmem:[%s1341 + $0x1e0] sm:$0xff]
        %v2748 = vld [vmem:[%s1341 + $0x1e8] sm:$0xff]
        %v2749 = vld [vmem:[%s1341 + $0x1f0] sm:$0xff]
        %v2750 = vld [vmem:[%s1341 + $0x1f8] sm:$0xff]
        %2751 = vmatprep.subr.mxu0 %v2688
        %2752 = vmatpush1.msra.mxu0 %v2687
        %2753 = vmatprep.subr.mxu0 %v2690
        %2754 = vmatpush1.msra.mxu0 %v2689
        %2755 = vmatprep.subr.mxu0 %v2692
        %2756 = vmatpush1.msra.mxu0 %v2691
        %2757 = vmatprep.subr.mxu0 %v2694
        %2758 = vmatpush1.msra.mxu0 %v2693
        %2759 = vmatprep.subr.mxu0 %v2696
        %2760 = vmatpush1.msra.mxu0 %v2695
        %2761 = vmatprep.subr.mxu0 %v2698
        %2762 = vmatpush1.msra.mxu0 %v2697
        %2763 = vmatprep.subr.mxu0 %v2700
        %2764 = vmatpush1.msra.mxu0 %v2699
        %2765 = vmatprep.subr.mxu0 %v2702
        %2766 = vmatpush1.msra.mxu0 %v2701
        %2767 = vmatprep.subr.mxu0 %v2704
        %2768 = vmatpush1.msra.mxu0 %v2703
        %2769 = vmatprep.subr.mxu0 %v2706
        %2770 = vmatpush1.msra.mxu0 %v2705
        %2771 = vmatprep.subr.mxu0 %v2708
        %2772 = vmatpush1.msra.mxu0 %v2707
        %2773 = vmatprep.subr.mxu0 %v2710
        %2774 = vmatpush1.msra.mxu0 %v2709
        %2775 = vmatprep.subr.mxu0 %v2712
        %2776 = vmatpush1.msra.mxu0 %v2711
        %2777 = vmatprep.subr.mxu0 %v2714
        %2778 = vmatpush1.msra.mxu0 %v2713
        %2779 = vmatprep.subr.mxu0 %v2716
        %2780 = vmatpush1.msra.mxu0 %v2715
        %2781 = vmatprep.subr.mxu0 %v2718
        %2782 = vmatpush1.msra.mxu0 %v2717
        %2783 = vmatprep.subr.mxu0 %v2720
        %2784 = vmatpush1.msra.mxu0 %v2719
        %2785 = vmatprep.subr.mxu0 %v2722
        %2786 = vmatpush1.msra.mxu0 %v2721
        %2787 = vmatprep.subr.mxu0 %v2724
        %2788 = vmatpush1.msra.mxu0 %v2723
        %2789 = vmatprep.subr.mxu0 %v2726
        %2790 = vmatpush1.msra.mxu0 %v2725
        %2791 = vmatprep.subr.mxu0 %v2728
        %2792 = vmatpush1.msra.mxu0 %v2727
        %2793 = vmatprep.subr.mxu0 %v2730
        %2794 = vmatpush1.msra.mxu0 %v2729
        %2795 = vmatprep.subr.mxu0 %v2732
        %2796 = vmatpush1.msra.mxu0 %v2731
        %2797 = vmatprep.subr.mxu0 %v2734
        %2798 = vmatpush1.msra.mxu0 %v2733
        %2799 = vmatprep.subr.mxu0 %v2736
        %2800 = vmatpush1.msra.mxu0 %v2735
        %2801 = vmatprep.subr.mxu0 %v2738
        %2802 = vmatpush1.msra.mxu0 %v2737
        %2803 = vmatprep.subr.mxu0 %v2740
        %2804 = vmatpush1.msra.mxu0 %v2739
        %2805 = vmatprep.subr.mxu0 %v2742
        %2806 = vmatpush1.msra.mxu0 %v2741
        %2807 = vmatprep.subr.mxu0 %v2744
        %2808 = vmatpush1.msra.mxu0 %v2743
        %2809 = vmatprep.subr.mxu0 %v2746
        %2810 = vmatpush1.msra.mxu0 %v2745
        %2811 = vmatprep.subr.mxu0 %v2748
        %2812 = vmatpush1.msra.mxu0 %v2747
        %2813 = vmatprep.subr.mxu0 %v2750
        %2814 = vmatpush1.msra.mxu0 %v2749
        %2815 = vmatprep.mubr.f32.mxu0 %v1864
        %2816 = vmatmul.mubr.f32.gmra.mrb[0].mxu0 %v1863
        %v2817 = vpop.f32.mrb[0].mxu0
        %v2818 = vadd.f32 0.0, %v2817
        %v2819 = vpop.f32.mrb[0].mxu0
        %v2820 = vadd.f32 0.0, %v2819
        %2821 = vdwg.mxu0
        %2822 = vst [vmem:[#allocation3 + $0x60] sm:$0xff] %v2818
        %2823 = vst [vmem:[#allocation3 + $0x68] sm:$0xff] %v2820
        %v2824 = vld [vmem:[%s1479] sm:$0xff]
        %v2825 = vld [vmem:[%s1479 + $0x8] sm:$0xff]
        %v2826 = vld [vmem:[%s1479 + $0x10] sm:$0xff]
        %v2827 = vld [vmem:[%s1479 + $0x18] sm:$0xff]
        %v2828 = vld [vmem:[%s1479 + $0x20] sm:$0xff]
        %v2829 = vld [vmem:[%s1479 + $0x28] sm:$0xff]
        %v2830 = vld [vmem:[%s1479 + $0x30] sm:$0xff]
        %v2831 = vld [vmem:[%s1479 + $0x38] sm:$0xff]
        %v2832 = vld [vmem:[%s1479 + $0x40] sm:$0xff]
        %v2833 = vld [vmem:[%s1479 + $0x48] sm:$0xff]
        %v2834 = vld [vmem:[%s1479 + $0x50] sm:$0xff]
        %v2835 = vld [vmem:[%s1479 + $0x58] sm:$0xff]
        %v2836 = vld [vmem:[%s1479 + $0x60] sm:$0xff]
        %v2837 = vld [vmem:[%s1479 + $0x68] sm:$0xff]
        %v2838 = vld [vmem:[%s1479 + $0x70] sm:$0xff]
        %v2839 = vld [vmem:[%s1479 + $0x78] sm:$0xff]
        %v2840 = vld [vmem:[%s1479 + $0x80] sm:$0xff]
        %v2841 = vld [vmem:[%s1479 + $0x88] sm:$0xff]
        %v2842 = vld [vmem:[%s1479 + $0x90] sm:$0xff]
        %v2843 = vld [vmem:[%s1479 + $0x98] sm:$0xff]
        %v2844 = vld [vmem:[%s1479 + $0xa0] sm:$0xff]
        %v2845 = vld [vmem:[%s1479 + $0xa8] sm:$0xff]
        %v2846 = vld [vmem:[%s1479 + $0xb0] sm:$0xff]
        %v2847 = vld [vmem:[%s1479 + $0xb8] sm:$0xff]
        %v2848 = vld [vmem:[%s1479 + $0xc0] sm:$0xff]
        %v2849 = vld [vmem:[%s1479 + $0xc8] sm:$0xff]
        %v2850 = vld [vmem:[%s1479 + $0xd0] sm:$0xff]
        %v2851 = vld [vmem:[%s1479 + $0xd8] sm:$0xff]
        %v2852 = vld [vmem:[%s1479 + $0xe0] sm:$0xff]
        %v2853 = vld [vmem:[%s1479 + $0xe8] sm:$0xff]
        %v2854 = vld [vmem:[%s1479 + $0xf0] sm:$0xff]
        %v2855 = vld [vmem:[%s1479 + $0xf8] sm:$0xff]
        %v2856 = vld [vmem:[%s1479 + $0x100] sm:$0xff]
        %v2857 = vld [vmem:[%s1479 + $0x108] sm:$0xff]
        %v2858 = vld [vmem:[%s1479 + $0x110] sm:$0xff]
        %v2859 = vld [vmem:[%s1479 + $0x118] sm:$0xff]
        %v2860 = vld [vmem:[%s1479 + $0x120] sm:$0xff]
        %v2861 = vld [vmem:[%s1479 + $0x128] sm:$0xff]
        %v2862 = vld [vmem:[%s1479 + $0x130] sm:$0xff]
        %v2863 = vld [vmem:[%s1479 + $0x138] sm:$0xff]
        %v2864 = vld [vmem:[%s1479 + $0x140] sm:$0xff]
        %v2865 = vld [vmem:[%s1479 + $0x148] sm:$0xff]
        %v2866 = vld [vmem:[%s1479 + $0x150] sm:$0xff]
        %v2867 = vld [vmem:[%s1479 + $0x158] sm:$0xff]
        %v2868 = vld [vmem:[%s1479 + $0x160] sm:$0xff]
        %v2869 = vld [vmem:[%s1479 + $0x168] sm:$0xff]
        %v2870 = vld [vmem:[%s1479 + $0x170] sm:$0xff]
        %v2871 = vld [vmem:[%s1479 + $0x178] sm:$0xff]
        %v2872 = vld [vmem:[%s1479 + $0x180] sm:$0xff]
        %v2873 = vld [vmem:[%s1479 + $0x188] sm:$0xff]
        %v2874 = vld [vmem:[%s1479 + $0x190] sm:$0xff]
        %v2875 = vld [vmem:[%s1479 + $0x198] sm:$0xff]
        %v2876 = vld [vmem:[%s1479 + $0x1a0] sm:$0xff]
        %v2877 = vld [vmem:[%s1479 + $0x1a8] sm:$0xff]
        %v2878 = vld [vmem:[%s1479 + $0x1b0] sm:$0xff]
        %v2879 = vld [vmem:[%s1479 + $0x1b8] sm:$0xff]
        %v2880 = vld [vmem:[%s1479 + $0x1c0] sm:$0xff]
        %v2881 = vld [vmem:[%s1479 + $0x1c8] sm:$0xff]
        %v2882 = vld [vmem:[%s1479 + $0x1d0] sm:$0xff]
        %v2883 = vld [vmem:[%s1479 + $0x1d8] sm:$0xff]
        %v2884 = vld [vmem:[%s1479 + $0x1e0] sm:$0xff]
        %v2885 = vld [vmem:[%s1479 + $0x1e8] sm:$0xff]
        %v2886 = vld [vmem:[%s1479 + $0x1f0] sm:$0xff]
        %v2887 = vld [vmem:[%s1479 + $0x1f8] sm:$0xff]
        %2888 = vmatprep.subr.mxu0 %v2825
        %2889 = vmatpush1.msra.mxu0 %v2824
        %2890 = vmatprep.subr.mxu0 %v2827
        %2891 = vmatpush1.msra.mxu0 %v2826
        %2892 = vmatprep.subr.mxu0 %v2829
        %2893 = vmatpush1.msra.mxu0 %v2828
        %2894 = vmatprep.subr.mxu0 %v2831
        %2895 = vmatpush1.msra.mxu0 %v2830
        %2896 = vmatprep.subr.mxu0 %v2833
        %2897 = vmatpush1.msra.mxu0 %v2832
        %2898 = vmatprep.subr.mxu0 %v2835
        %2899 = vmatpush1.msra.mxu0 %v2834
        %2900 = vmatprep.subr.mxu0 %v2837
        %2901 = vmatpush1.msra.mxu0 %v2836
        %2902 = vmatprep.subr.mxu0 %v2839
        %2903 = vmatpush1.msra.mxu0 %v2838
        %2904 = vmatprep.subr.mxu0 %v2841
        %2905 = vmatpush1.msra.mxu0 %v2840
        %2906 = vmatprep.subr.mxu0 %v2843
        %2907 = vmatpush1.msra.mxu0 %v2842
        %2908 = vmatprep.subr.mxu0 %v2845
        %2909 = vmatpush1.msra.mxu0 %v2844
        %2910 = vmatprep.subr.mxu0 %v2847
        %2911 = vmatpush1.msra.mxu0 %v2846
        %2912 = vmatprep.subr.mxu0 %v2849
        %2913 = vmatpush1.msra.mxu0 %v2848
        %2914 = vmatprep.subr.mxu0 %v2851
        %2915 = vmatpush1.msra.mxu0 %v2850
        %2916 = vmatprep.subr.mxu0 %v2853
        %2917 = vmatpush1.msra.mxu0 %v2852
        %2918 = vmatprep.subr.mxu0 %v2855
        %2919 = vmatpush1.msra.mxu0 %v2854
        %2920 = vmatprep.subr.mxu0 %v2857
        %2921 = vmatpush1.msra.mxu0 %v2856
        %2922 = vmatprep.subr.mxu0 %v2859
        %2923 = vmatpush1.msra.mxu0 %v2858
        %2924 = vmatprep.subr.mxu0 %v2861
        %2925 = vmatpush1.msra.mxu0 %v2860
        %2926 = vmatprep.subr.mxu0 %v2863
        %2927 = vmatpush1.msra.mxu0 %v2862
        %2928 = vmatprep.subr.mxu0 %v2865
        %2929 = vmatpush1.msra.mxu0 %v2864
        %2930 = vmatprep.subr.mxu0 %v2867
        %2931 = vmatpush1.msra.mxu0 %v2866
        %2932 = vmatprep.subr.mxu0 %v2869
        %2933 = vmatpush1.msra.mxu0 %v2868
        %2934 = vmatprep.subr.mxu0 %v2871
        %2935 = vmatpush1.msra.mxu0 %v2870
        %2936 = vmatprep.subr.mxu0 %v2873
        %2937 = vmatpush1.msra.mxu0 %v2872
        %2938 = vmatprep.subr.mxu0 %v2875
        %2939 = vmatpush1.msra.mxu0 %v2874
        %2940 = vmatprep.subr.mxu0 %v2877
        %2941 = vmatpush1.msra.mxu0 %v2876
        %2942 = vmatprep.subr.mxu0 %v2879
        %2943 = vmatpush1.msra.mxu0 %v2878
        %2944 = vmatprep.subr.mxu0 %v2881
        %2945 = vmatpush1.msra.mxu0 %v2880
        %2946 = vmatprep.subr.mxu0 %v2883
        %2947 = vmatpush1.msra.mxu0 %v2882
        %2948 = vmatprep.subr.mxu0 %v2885
        %2949 = vmatpush1.msra.mxu0 %v2884
        %2950 = vmatprep.subr.mxu0 %v2887
        %2951 = vmatpush1.msra.mxu0 %v2886
        %2952 = vmatprep.mubr.f32.mxu0 %v1864
        %2953 = vmatmul.mubr.f32.gmra.mrb[0].mxu0 %v1863
        %v2954 = vpop.f32.mrb[0].mxu0
        %v2955 = vadd.f32 0.0, %v2954
        %v2956 = vpop.f32.mrb[0].mxu0
        %v2957 = vadd.f32 0.0, %v2956
        %2958 = vdwg.mxu0
        %2959 = vst [vmem:[#allocation3 + $0x70] sm:$0xff] %v2955
        %2960 = vst [vmem:[#allocation3 + $0x78] sm:$0xff] %v2957
        %v2961 = vld [vmem:[%s1617] sm:$0xff]
        %v2962 = vld [vmem:[%s1617 + $0x8] sm:$0xff]
        %v2963 = vld [vmem:[%s1617 + $0x10] sm:$0xff]
        %v2964 = vld [vmem:[%s1617 + $0x18] sm:$0xff]
        %v2965 = vld [vmem:[%s1617 + $0x20] sm:$0xff]
        %v2966 = vld [vmem:[%s1617 + $0x28] sm:$0xff]
        %v2967 = vld [vmem:[%s1617 + $0x30] sm:$0xff]
        %v2968 = vld [vmem:[%s1617 + $0x38] sm:$0xff]
        %v2969 = vld [vmem:[%s1617 + $0x40] sm:$0xff]
        %v2970 = vld [vmem:[%s1617 + $0x48] sm:$0xff]
        %v2971 = vld [vmem:[%s1617 + $0x50] sm:$0xff]
        %v2972 = vld [vmem:[%s1617 + $0x58] sm:$0xff]
        %v2973 = vld [vmem:[%s1617 + $0x60] sm:$0xff]
        %v2974 = vld [vmem:[%s1617 + $0x68] sm:$0xff]
        %v2975 = vld [vmem:[%s1617 + $0x70] sm:$0xff]
        %v2976 = vld [vmem:[%s1617 + $0x78] sm:$0xff]
        %v2977 = vld [vmem:[%s1617 + $0x80] sm:$0xff]
        %v2978 = vld [vmem:[%s1617 + $0x88] sm:$0xff]
        %v2979 = vld [vmem:[%s1617 + $0x90] sm:$0xff]
        %v2980 = vld [vmem:[%s1617 + $0x98] sm:$0xff]
        %v2981 = vld [vmem:[%s1617 + $0xa0] sm:$0xff]
        %v2982 = vld [vmem:[%s1617 + $0xa8] sm:$0xff]
        %v2983 = vld [vmem:[%s1617 + $0xb0] sm:$0xff]
        %v2984 = vld [vmem:[%s1617 + $0xb8] sm:$0xff]
        %v2985 = vld [vmem:[%s1617 + $0xc0] sm:$0xff]
        %v2986 = vld [vmem:[%s1617 + $0xc8] sm:$0xff]
        %v2987 = vld [vmem:[%s1617 + $0xd0] sm:$0xff]
        %v2988 = vld [vmem:[%s1617 + $0xd8] sm:$0xff]
        %v2989 = vld [vmem:[%s1617 + $0xe0] sm:$0xff]
        %v2990 = vld [vmem:[%s1617 + $0xe8] sm:$0xff]
        %v2991 = vld [vmem:[%s1617 + $0xf0] sm:$0xff]
        %v2992 = vld [vmem:[%s1617 + $0xf8] sm:$0xff]
        %v2993 = vld [vmem:[%s1617 + $0x100] sm:$0xff]
        %v2994 = vld [vmem:[%s1617 + $0x108] sm:$0xff]
        %v2995 = vld [vmem:[%s1617 + $0x110] sm:$0xff]
        %v2996 = vld [vmem:[%s1617 + $0x118] sm:$0xff]
        %v2997 = vld [vmem:[%s1617 + $0x120] sm:$0xff]
        %v2998 = vld [vmem:[%s1617 + $0x128] sm:$0xff]
        %v2999 = vld [vmem:[%s1617 + $0x130] sm:$0xff]
        %v3000 = vld [vmem:[%s1617 + $0x138] sm:$0xff]
        %v3001 = vld [vmem:[%s1617 + $0x140] sm:$0xff]
        %v3002 = vld [vmem:[%s1617 + $0x148] sm:$0xff]
        %v3003 = vld [vmem:[%s1617 + $0x150] sm:$0xff]
        %v3004 = vld [vmem:[%s1617 + $0x158] sm:$0xff]
        %v3005 = vld [vmem:[%s1617 + $0x160] sm:$0xff]
        %v3006 = vld [vmem:[%s1617 + $0x168] sm:$0xff]
        %v3007 = vld [vmem:[%s1617 + $0x170] sm:$0xff]
        %v3008 = vld [vmem:[%s1617 + $0x178] sm:$0xff]
        %v3009 = vld [vmem:[%s1617 + $0x180] sm:$0xff]
        %v3010 = vld [vmem:[%s1617 + $0x188] sm:$0xff]
        %v3011 = vld [vmem:[%s1617 + $0x190] sm:$0xff]
        %v3012 = vld [vmem:[%s1617 + $0x198] sm:$0xff]
        %v3013 = vld [vmem:[%s1617 + $0x1a0] sm:$0xff]
        %v3014 = vld [vmem:[%s1617 + $0x1a8] sm:$0xff]
        %v3015 = vld [vmem:[%s1617 + $0x1b0] sm:$0xff]
        %v3016 = vld [vmem:[%s1617 + $0x1b8] sm:$0xff]
        %v3017 = vld [vmem:[%s1617 + $0x1c0] sm:$0xff]
        %v3018 = vld [vmem:[%s1617 + $0x1c8] sm:$0xff]
        %v3019 = vld [vmem:[%s1617 + $0x1d0] sm:$0xff]
        %v3020 = vld [vmem:[%s1617 + $0x1d8] sm:$0xff]
        %v3021 = vld [vmem:[%s1617 + $0x1e0] sm:$0xff]
        %v3022 = vld [vmem:[%s1617 + $0x1e8] sm:$0xff]
        %v3023 = vld [vmem:[%s1617 + $0x1f0] sm:$0xff]
        %v3024 = vld [vmem:[%s1617 + $0x1f8] sm:$0xff]
        %3025 = vmatprep.subr.mxu0 %v2962
        %3026 = vmatpush1.msra.mxu0 %v2961
        %3027 = vmatprep.subr.mxu0 %v2964
        %3028 = vmatpush1.msra.mxu0 %v2963
        %3029 = vmatprep.subr.mxu0 %v2966
        %3030 = vmatpush1.msra.mxu0 %v2965
        %3031 = vmatprep.subr.mxu0 %v2968
        %3032 = vmatpush1.msra.mxu0 %v2967
        %3033 = vmatprep.subr.mxu0 %v2970
        %3034 = vmatpush1.msra.mxu0 %v2969
        %3035 = vmatprep.subr.mxu0 %v2972
        %3036 = vmatpush1.msra.mxu0 %v2971
        %3037 = vmatprep.subr.mxu0 %v2974
        %3038 = vmatpush1.msra.mxu0 %v2973
        %3039 = vmatprep.subr.mxu0 %v2976
        %3040 = vmatpush1.msra.mxu0 %v2975
        %3041 = vmatprep.subr.mxu0 %v2978
        %3042 = vmatpush1.msra.mxu0 %v2977
        %3043 = vmatprep.subr.mxu0 %v2980
        %3044 = vmatpush1.msra.mxu0 %v2979
        %3045 = vmatprep.subr.mxu0 %v2982
        %3046 = vmatpush1.msra.mxu0 %v2981
        %3047 = vmatprep.subr.mxu0 %v2984
        %3048 = vmatpush1.msra.mxu0 %v2983
        %3049 = vmatprep.subr.mxu0 %v2986
        %3050 = vmatpush1.msra.mxu0 %v2985
        %3051 = vmatprep.subr.mxu0 %v2988
        %3052 = vmatpush1.msra.mxu0 %v2987
        %3053 = vmatprep.subr.mxu0 %v2990
        %3054 = vmatpush1.msra.mxu0 %v2989
        %3055 = vmatprep.subr.mxu0 %v2992
        %3056 = vmatpush1.msra.mxu0 %v2991
        %3057 = vmatprep.subr.mxu0 %v2994
        %3058 = vmatpush1.msra.mxu0 %v2993
        %3059 = vmatprep.subr.mxu0 %v2996
        %3060 = vmatpush1.msra.mxu0 %v2995
        %3061 = vmatprep.subr.mxu0 %v2998
        %3062 = vmatpush1.msra.mxu0 %v2997
        %3063 = vmatprep.subr.mxu0 %v3000
        %3064 = vmatpush1.msra.mxu0 %v2999
        %3065 = vmatprep.subr.mxu0 %v3002
        %3066 = vmatpush1.msra.mxu0 %v3001
        %3067 = vmatprep.subr.mxu0 %v3004
        %3068 = vmatpush1.msra.mxu0 %v3003
        %3069 = vmatprep.subr.mxu0 %v3006
        %3070 = vmatpush1.msra.mxu0 %v3005
        %3071 = vmatprep.subr.mxu0 %v3008
        %3072 = vmatpush1.msra.mxu0 %v3007
        %3073 = vmatprep.subr.mxu0 %v3010
        %3074 = vmatpush1.msra.mxu0 %v3009
        %3075 = vmatprep.subr.mxu0 %v3012
        %3076 = vmatpush1.msra.mxu0 %v3011
        %3077 = vmatprep.subr.mxu0 %v3014
        %3078 = vmatpush1.msra.mxu0 %v3013
        %3079 = vmatprep.subr.mxu0 %v3016
        %3080 = vmatpush1.msra.mxu0 %v3015
        %3081 = vmatprep.subr.mxu0 %v3018
        %3082 = vmatpush1.msra.mxu0 %v3017
        %3083 = vmatprep.subr.mxu0 %v3020
        %3084 = vmatpush1.msra.mxu0 %v3019
        %3085 = vmatprep.subr.mxu0 %v3022
        %3086 = vmatpush1.msra.mxu0 %v3021
        %3087 = vmatprep.subr.mxu0 %v3024
        %3088 = vmatpush1.msra.mxu0 %v3023
        %3089 = vmatprep.mubr.f32.mxu0 %v1864
        %3090 = vmatmul.mubr.f32.gmra.mrb[0].mxu0 %v1863
        %v3091 = vpop.f32.mrb[0].mxu0
        %v3092 = vadd.f32 0.0, %v3091
        %v3093 = vpop.f32.mrb[0].mxu0
        %v3094 = vadd.f32 0.0, %v3093
        %3095 = vdwg.mxu0
        %3096 = vst [vmem:[#allocation3 + $0x80] sm:$0xff] %v3092
        %3097 = vst [vmem:[#allocation3 + $0x88] sm:$0xff] %v3094
        %s3098 = scalar_lea.vmem [#allocation8], 8
        %v3099 = vld [vmem:[%s3098] sm:$0xff]
        %v3100 = vld [vmem:[#allocation3] sm:$0xff]
        %v3101 = vld [vmem:[#allocation3 + $0x8] sm:$0xff]
        %v3102 = vld [vmem:[#allocation3 + $0x10] sm:$0xff]
        %v3103 = vld [vmem:[#allocation3 + $0x18] sm:$0xff]
        %v3104 = vld [vmem:[#allocation3 + $0x20] sm:$0xff]
        %v3105 = vld [vmem:[#allocation3 + $0x28] sm:$0xff]
        %v3106 = vld [vmem:[#allocation3 + $0x30] sm:$0xff]
        %v3107 = vld [vmem:[#allocation3 + $0x38] sm:$0xff]
        %v3108 = vld [vmem:[#allocation3 + $0x40] sm:$0xff]
        %v3109 = vld [vmem:[#allocation3 + $0x48] sm:$0xff]
        %v3110 = vld [vmem:[#allocation3 + $0x50] sm:$0xff]
        %v3111 = vld [vmem:[#allocation3 + $0x58] sm:$0xff]
        %v3112 = vld [vmem:[#allocation3 + $0x60] sm:$0xff]
        %v3113 = vld [vmem:[#allocation3 + $0x68] sm:$0xff]
        %v3114 = vld [vmem:[#allocation3 + $0x70] sm:$0xff]
        %v3115 = vld [vmem:[#allocation3 + $0x78] sm:$0xff]
        %v3116 = vld [vmem:[#allocation3 + $0x80] sm:$0xff]
        %v3117 = vld [vmem:[#allocation3 + $0x88] sm:$0xff]
        %s3118 = scalar_lea.vmem %s5, 8
        %v3119 = vld [vmem:[%s3118] sm:$0xff]
        %3121 = vset.pattern.permute.xlu0 0
        %3122 = vperm.xlu0 %3121, %v3119
        %v3123 = vpop.permute.xlu0 %3122
        %v3126 = vsel %vm1780, %v3099, 0
        %3128 = vmatprep.subr.mxu0 %v3101
        %3129 = vmatpush1.msra.mxu0 %v3100
        %3130 = vmatprep.subr.mxu0 %v3103
        %3131 = vmatpush1.msra.mxu0 %v3102
        %3132 = vmatprep.subr.mxu0 %v3105
        %3133 = vmatpush1.msra.mxu0 %v3104
        %3134 = vmatprep.subr.mxu0 %v3107
        %3135 = vmatpush1.msra.mxu0 %v3106
        %3136 = vmatprep.subr.mxu0 %v3109
        %3137 = vmatpush1.msra.mxu0 %v3108
        %3138 = vmatprep.subr.mxu0 %v3111
        %3139 = vmatpush1.msra.mxu0 %v3110
        %3140 = vmatprep.subr.mxu0 %v3113
        %3141 = vmatpush1.msra.mxu0 %v3112
        %3142 = vmatprep.subr.mxu0 %v3115
        %3143 = vmatpush1.msra.mxu0 %v3114
        %3144 = vmatprep.subr.mxu0 %v3117
        %3145 = vmatpush1.msra.mxu0 %v3116
        %3146 = vmatprep.subr.mxu0 0.0
        %3147 = vmatpush1.msra.mxu0 0.0
        %3148 = vmatprep.subr.mxu0 0.0
        %3149 = vmatpush1.msra.mxu0 0.0
        %3150 = vmatprep.subr.mxu0 0.0
        %3151 = vmatpush1.msra.mxu0 0.0
        %3152 = vmatprep.subr.mxu0 0.0
        %3153 = vmatpush1.msra.mxu0 0.0
        %3154 = vmatprep.subr.mxu0 0.0
        %3155 = vmatpush1.msra.mxu0 0.0
        %3156 = vmatprep.subr.mxu0 0.0
        %3157 = vmatpush1.msra.mxu0 0.0
        %3158 = vmatprep.subr.mxu0 0.0
        %3159 = vmatpush1.msra.mxu0 0.0
        %3160 = vmatprep.subr.mxu0 0.0
        %3161 = vmatpush1.msra.mxu0 0.0
        %3162 = vmatprep.subr.mxu0 0.0
        %3163 = vmatpush1.msra.mxu0 0.0
        %3164 = vmatprep.subr.mxu0 0.0
        %3165 = vmatpush1.msra.mxu0 0.0
        %3166 = vmatprep.subr.mxu0 0.0
        %3167 = vmatpush1.msra.mxu0 0.0
        %3168 = vmatprep.subr.mxu0 0.0
        %3169 = vmatpush1.msra.mxu0 0.0
        %3170 = vmatprep.subr.mxu0 0.0
        %3171 = vmatpush1.msra.mxu0 0.0
        %3172 = vmatprep.subr.mxu0 0.0
        %3173 = vmatpush1.msra.mxu0 0.0
        %3174 = vmatprep.subr.mxu0 0.0
        %3175 = vmatpush1.msra.mxu0 0.0
        %3176 = vmatprep.subr.mxu0 0.0
        %3177 = vmatpush1.msra.mxu0 0.0
        %3178 = vmatprep.subr.mxu0 0.0
        %3179 = vmatpush1.msra.mxu0 0.0
        %3180 = vmatprep.subr.mxu0 0.0
        %3181 = vmatpush1.msra.mxu0 0.0
        %3182 = vmatprep.subr.mxu0 0.0
        %3183 = vmatpush1.msra.mxu0 0.0
        %3184 = vmatprep.subr.mxu0 0.0
        %3185 = vmatpush1.msra.mxu0 0.0
        %3186 = vmatprep.subr.mxu0 0.0
        %3187 = vmatpush1.msra.mxu0 0.0
        %3188 = vmatprep.subr.mxu0 0.0
        %3189 = vmatpush1.msra.mxu0 0.0
        %3190 = vmatprep.subr.mxu0 0.0
        %3191 = vmatpush1.msra.mxu0 0.0
        %3192 = vmatprep.mubr.f32.mxu0 0.0
        %3193 = vmatmul.mubr.f32.gmra.mrb[0].mxu0 %v3126
        %v3194 = vpop.f32.mrb[0].mxu0
        %v3195 = vadd.f32 %v3123, %v3194
        %v3196 = vpop.f32.mrb[0].mxu0
        %v3197 = vadd.f32 %v3123, %v3196
        %3198 = vdwg.mxu0
        %v3199 = vmax.f32 %v3195, 0.0
        %v3200 = vmax.f32 %v3197, 0.0
        %3201 = vst [vmem:[#allocation2 + $0x10] sm:$0xff] %v3199
        %3202 = vst [vmem:[#allocation2 + $0x18] sm:$0xff] %v3200
        %v3203 = vld [vmem:[#allocation2 + $0x10] sm:$0xff]
        %v3204 = vld [vmem:[#allocation2 + $0x18] sm:$0xff]
        %v3205 = vld [vmem:[#allocation2 + $0x20] sm:$0xff]
        %v3206 = vld [vmem:[#allocation2 + $0x28] sm:$0xff]
        %v3207 = vadd.f32 %v3203, %v3205
        %v3208 = vadd.f32 %v3204, %v3206
        %v3209 = vld [vmem:[#allocation4] sm:$0xff]
        %v3210 = vld [vmem:[#allocation4 + $0x8] sm:$0xff]
        %v3211 = vld [vmem:[#allocation4 + $0x10] sm:$0xff]
        %v3212 = vld [vmem:[#allocation4 + $0x18] sm:$0xff]
        %v3213 = vld [vmem:[#allocation4 + $0x20] sm:$0xff]
        %v3214 = vld [vmem:[#allocation4 + $0x28] sm:$0xff]
        %v3215 = vld [vmem:[#allocation4 + $0x30] sm:$0xff]
        %v3216 = vld [vmem:[#allocation4 + $0x38] sm:$0xff]
        %v3217 = vld [vmem:[#allocation4 + $0x40] sm:$0xff]
        %v3218 = vld [vmem:[#allocation4 + $0x48] sm:$0xff]
        %v3219 = vld [vmem:[#allocation4 + $0x50] sm:$0xff]
        %v3220 = vld [vmem:[#allocation4 + $0x58] sm:$0xff]
        %v3221 = vld [vmem:[#allocation4 + $0x60] sm:$0xff]
        %v3222 = vld [vmem:[#allocation4 + $0x68] sm:$0xff]
        %v3223 = vld [vmem:[#allocation4 + $0x70] sm:$0xff]
        %v3224 = vld [vmem:[#allocation4 + $0x78] sm:$0xff]
        %v3225 = vld [vmem:[#allocation4 + $0x80] sm:$0xff]
        %v3226 = vld [vmem:[#allocation4 + $0x88] sm:$0xff]
        %v3227 = vld [vmem:[#allocation4 + $0x90] sm:$0xff]
        %v3228 = vld [vmem:[#allocation4 + $0x98] sm:$0xff]
        %v3229 = vld [vmem:[#allocation4 + $0xa0] sm:$0xff]
        %v3230 = vld [vmem:[#allocation4 + $0xa8] sm:$0xff]
        %v3231 = vld [vmem:[#allocation4 + $0xb0] sm:$0xff]
        %v3232 = vld [vmem:[#allocation4 + $0xb8] sm:$0xff]
        %v3233 = vld [vmem:[#allocation4 + $0xc0] sm:$0xff]
        %v3234 = vld [vmem:[#allocation4 + $0xc8] sm:$0xff]
        %v3235 = vld [vmem:[#allocation4 + $0xd0] sm:$0xff]
        %v3236 = vld [vmem:[#allocation4 + $0xd8] sm:$0xff]
        %v3237 = vld [vmem:[#allocation4 + $0xe0] sm:$0xff]
        %v3238 = vld [vmem:[#allocation4 + $0xe8] sm:$0xff]
        %v3239 = vld [vmem:[#allocation4 + $0xf0] sm:$0xff]
        %v3240 = vld [vmem:[#allocation4 + $0xf8] sm:$0xff]
        %v3241 = vld [vmem:[#allocation4 + $0x100] sm:$0xff]
        %v3242 = vld [vmem:[#allocation4 + $0x108] sm:$0xff]
        %v3243 = vld [vmem:[#allocation4 + $0x110] sm:$0xff]
        %v3244 = vld [vmem:[#allocation4 + $0x118] sm:$0xff]
        %v3245 = vld [vmem:[#allocation4 + $0x120] sm:$0xff]
        %v3246 = vld [vmem:[#allocation4 + $0x128] sm:$0xff]
        %v3247 = vld [vmem:[#allocation4 + $0x130] sm:$0xff]
        %v3248 = vld [vmem:[#allocation4 + $0x138] sm:$0xff]
        %v3249 = vld [vmem:[#allocation4 + $0x140] sm:$0xff]
        %v3250 = vld [vmem:[#allocation4 + $0x148] sm:$0xff]
        %v3251 = vld [vmem:[#allocation4 + $0x150] sm:$0xff]
        %v3252 = vld [vmem:[#allocation4 + $0x158] sm:$0xff]
        %v3253 = vld [vmem:[#allocation4 + $0x160] sm:$0xff]
        %v3254 = vld [vmem:[#allocation4 + $0x168] sm:$0xff]
        %v3255 = vld [vmem:[#allocation4 + $0x170] sm:$0xff]
        %v3256 = vld [vmem:[#allocation4 + $0x178] sm:$0xff]
        %v3257 = vld [vmem:[#allocation4 + $0x180] sm:$0xff]
        %v3258 = vld [vmem:[#allocation4 + $0x188] sm:$0xff]
        %v3259 = vld [vmem:[#allocation4 + $0x190] sm:$0xff]
        %v3260 = vld [vmem:[#allocation4 + $0x198] sm:$0xff]
        %v3261 = vld [vmem:[#allocation4 + $0x1a0] sm:$0xff]
        %v3262 = vld [vmem:[#allocation4 + $0x1a8] sm:$0xff]
        %v3263 = vld [vmem:[#allocation4 + $0x1b0] sm:$0xff]
        %v3264 = vld [vmem:[#allocation4 + $0x1b8] sm:$0xff]
        %v3265 = vld [vmem:[#allocation4 + $0x1c0] sm:$0xff]
        %v3266 = vld [vmem:[#allocation4 + $0x1c8] sm:$0xff]
        %v3267 = vld [vmem:[#allocation4 + $0x1d0] sm:$0xff]
        %v3268 = vld [vmem:[#allocation4 + $0x1d8] sm:$0xff]
        %v3269 = vld [vmem:[#allocation4 + $0x1e0] sm:$0xff]
        %v3270 = vld [vmem:[#allocation4 + $0x1e8] sm:$0xff]
        %v3271 = vld [vmem:[#allocation4 + $0x1f0] sm:$0xff]
        %v3272 = vld [vmem:[#allocation4 + $0x1f8] sm:$0xff]
        %3273 = vmatprep.subr.mxu0 %v3210
        %3274 = vmatpush1.msra.mxu0 %v3209
        %3275 = vmatprep.subr.mxu0 %v3212
        %3276 = vmatpush1.msra.mxu0 %v3211
        %3277 = vmatprep.subr.mxu0 %v3214
        %3278 = vmatpush1.msra.mxu0 %v3213
        %3279 = vmatprep.subr.mxu0 %v3216
        %3280 = vmatpush1.msra.mxu0 %v3215
        %3281 = vmatprep.subr.mxu0 %v3218
        %3282 = vmatpush1.msra.mxu0 %v3217
        %3283 = vmatprep.subr.mxu0 %v3220
        %3284 = vmatpush1.msra.mxu0 %v3219
        %3285 = vmatprep.subr.mxu0 %v3222
        %3286 = vmatpush1.msra.mxu0 %v3221
        %3287 = vmatprep.subr.mxu0 %v3224
        %3288 = vmatpush1.msra.mxu0 %v3223
        %3289 = vmatprep.subr.mxu0 %v3226
        %3290 = vmatpush1.msra.mxu0 %v3225
        %3291 = vmatprep.subr.mxu0 %v3228
        %3292 = vmatpush1.msra.mxu0 %v3227
        %3293 = vmatprep.subr.mxu0 %v3230
        %3294 = vmatpush1.msra.mxu0 %v3229
        %3295 = vmatprep.subr.mxu0 %v3232
        %3296 = vmatpush1.msra.mxu0 %v3231
        %3297 = vmatprep.subr.mxu0 %v3234
        %3298 = vmatpush1.msra.mxu0 %v3233
        %3299 = vmatprep.subr.mxu0 %v3236
        %3300 = vmatpush1.msra.mxu0 %v3235
        %3301 = vmatprep.subr.mxu0 %v3238
        %3302 = vmatpush1.msra.mxu0 %v3237
        %3303 = vmatprep.subr.mxu0 %v3240
        %3304 = vmatpush1.msra.mxu0 %v3239
        %3305 = vmatprep.subr.mxu0 %v3242
        %3306 = vmatpush1.msra.mxu0 %v3241
        %3307 = vmatprep.subr.mxu0 %v3244
        %3308 = vmatpush1.msra.mxu0 %v3243
        %3309 = vmatprep.subr.mxu0 %v3246
        %3310 = vmatpush1.msra.mxu0 %v3245
        %3311 = vmatprep.subr.mxu0 %v3248
        %3312 = vmatpush1.msra.mxu0 %v3247
        %3313 = vmatprep.subr.mxu0 %v3250
        %3314 = vmatpush1.msra.mxu0 %v3249
        %3315 = vmatprep.subr.mxu0 %v3252
        %3316 = vmatpush1.msra.mxu0 %v3251
        %3317 = vmatprep.subr.mxu0 %v3254
        %3318 = vmatpush1.msra.mxu0 %v3253
        %3319 = vmatprep.subr.mxu0 %v3256
        %3320 = vmatpush1.msra.mxu0 %v3255
        %3321 = vmatprep.subr.mxu0 %v3258
        %3322 = vmatpush1.msra.mxu0 %v3257
        %3323 = vmatprep.subr.mxu0 %v3260
        %3324 = vmatpush1.msra.mxu0 %v3259
        %3325 = vmatprep.subr.mxu0 %v3262
        %3326 = vmatpush1.msra.mxu0 %v3261
        %3327 = vmatprep.subr.mxu0 %v3264
        %3328 = vmatpush1.msra.mxu0 %v3263
        %3329 = vmatprep.subr.mxu0 %v3266
        %3330 = vmatpush1.msra.mxu0 %v3265
        %3331 = vmatprep.subr.mxu0 %v3268
        %3332 = vmatpush1.msra.mxu0 %v3267
        %3333 = vmatprep.subr.mxu0 %v3270
        %3334 = vmatpush1.msra.mxu0 %v3269
        %3335 = vmatprep.subr.mxu0 %v3272
        %3336 = vmatpush1.msra.mxu0 %v3271
        %3337 = vmatprep.mubr.f32.mxu0 %v3208
        %3338 = vmatmul.mubr.f32.gmra.mrb[0].mxu0 %v3207
        %v3339 = vpop.f32.mrb[0].mxu0
        %v3340 = vadd.f32 0.0, %v3339
        %v3341 = vpop.f32.mrb[0].mxu0
        %v3342 = vadd.f32 0.0, %v3341
        %3343 = vdwg.mxu0
        %3344 = vst [vmem:[#allocation3] sm:$0xff] %v3340
        %3345 = vst [vmem:[#allocation3 + $0x8] sm:$0xff] %v3342
        %v3346 = vld [vmem:[%s651] sm:$0xff]
        %v3347 = vld [vmem:[%s651 + $0x8] sm:$0xff]
        %v3348 = vld [vmem:[%s651 + $0x10] sm:$0xff]
        %v3349 = vld [vmem:[%s651 + $0x18] sm:$0xff]
        %v3350 = vld [vmem:[%s651 + $0x20] sm:$0xff]
        %v3351 = vld [vmem:[%s651 + $0x28] sm:$0xff]
        %v3352 = vld [vmem:[%s651 + $0x30] sm:$0xff]
        %v3353 = vld [vmem:[%s651 + $0x38] sm:$0xff]
        %v3354 = vld [vmem:[%s651 + $0x40] sm:$0xff]
        %v3355 = vld [vmem:[%s651 + $0x48] sm:$0xff]
        %v3356 = vld [vmem:[%s651 + $0x50] sm:$0xff]
        %v3357 = vld [vmem:[%s651 + $0x58] sm:$0xff]
        %v3358 = vld [vmem:[%s651 + $0x60] sm:$0xff]
        %v3359 = vld [vmem:[%s651 + $0x68] sm:$0xff]
        %v3360 = vld [vmem:[%s651 + $0x70] sm:$0xff]
        %v3361 = vld [vmem:[%s651 + $0x78] sm:$0xff]
        %v3362 = vld [vmem:[%s651 + $0x80] sm:$0xff]
        %v3363 = vld [vmem:[%s651 + $0x88] sm:$0xff]
        %v3364 = vld [vmem:[%s651 + $0x90] sm:$0xff]
        %v3365 = vld [vmem:[%s651 + $0x98] sm:$0xff]
        %v3366 = vld [vmem:[%s651 + $0xa0] sm:$0xff]
        %v3367 = vld [vmem:[%s651 + $0xa8] sm:$0xff]
        %v3368 = vld [vmem:[%s651 + $0xb0] sm:$0xff]
        %v3369 = vld [vmem:[%s651 + $0xb8] sm:$0xff]
        %v3370 = vld [vmem:[%s651 + $0xc0] sm:$0xff]
        %v3371 = vld [vmem:[%s651 + $0xc8] sm:$0xff]
        %v3372 = vld [vmem:[%s651 + $0xd0] sm:$0xff]
        %v3373 = vld [vmem:[%s651 + $0xd8] sm:$0xff]
        %v3374 = vld [vmem:[%s651 + $0xe0] sm:$0xff]
        %v3375 = vld [vmem:[%s651 + $0xe8] sm:$0xff]
        %v3376 = vld [vmem:[%s651 + $0xf0] sm:$0xff]
        %v3377 = vld [vmem:[%s651 + $0xf8] sm:$0xff]
        %v3378 = vld [vmem:[%s651 + $0x100] sm:$0xff]
        %v3379 = vld [vmem:[%s651 + $0x108] sm:$0xff]
        %v3380 = vld [vmem:[%s651 + $0x110] sm:$0xff]
        %v3381 = vld [vmem:[%s651 + $0x118] sm:$0xff]
        %v3382 = vld [vmem:[%s651 + $0x120] sm:$0xff]
        %v3383 = vld [vmem:[%s651 + $0x128] sm:$0xff]
        %v3384 = vld [vmem:[%s651 + $0x130] sm:$0xff]
        %v3385 = vld [vmem:[%s651 + $0x138] sm:$0xff]
        %v3386 = vld [vmem:[%s651 + $0x140] sm:$0xff]
        %v3387 = vld [vmem:[%s651 + $0x148] sm:$0xff]
        %v3388 = vld [vmem:[%s651 + $0x150] sm:$0xff]
        %v3389 = vld [vmem:[%s651 + $0x158] sm:$0xff]
        %v3390 = vld [vmem:[%s651 + $0x160] sm:$0xff]
        %v3391 = vld [vmem:[%s651 + $0x168] sm:$0xff]
        %v3392 = vld [vmem:[%s651 + $0x170] sm:$0xff]
        %v3393 = vld [vmem:[%s651 + $0x178] sm:$0xff]
        %v3394 = vld [vmem:[%s651 + $0x180] sm:$0xff]
        %v3395 = vld [vmem:[%s651 + $0x188] sm:$0xff]
        %v3396 = vld [vmem:[%s651 + $0x190] sm:$0xff]
        %v3397 = vld [vmem:[%s651 + $0x198] sm:$0xff]
        %v3398 = vld [vmem:[%s651 + $0x1a0] sm:$0xff]
        %v3399 = vld [vmem:[%s651 + $0x1a8] sm:$0xff]
        %v3400 = vld [vmem:[%s651 + $0x1b0] sm:$0xff]
        %v3401 = vld [vmem:[%s651 + $0x1b8] sm:$0xff]
        %v3402 = vld [vmem:[%s651 + $0x1c0] sm:$0xff]
        %v3403 = vld [vmem:[%s651 + $0x1c8] sm:$0xff]
        %v3404 = vld [vmem:[%s651 + $0x1d0] sm:$0xff]
        %v3405 = vld [vmem:[%s651 + $0x1d8] sm:$0xff]
        %v3406 = vld [vmem:[%s651 + $0x1e0] sm:$0xff]
        %v3407 = vld [vmem:[%s651 + $0x1e8] sm:$0xff]
        %v3408 = vld [vmem:[%s651 + $0x1f0] sm:$0xff]
        %v3409 = vld [vmem:[%s651 + $0x1f8] sm:$0xff]
        %3410 = vmatprep.subr.mxu0 %v3347
        %3411 = vmatpush1.msra.mxu0 %v3346
        %3412 = vmatprep.subr.mxu0 %v3349
        %3413 = vmatpush1.msra.mxu0 %v3348
        %3414 = vmatprep.subr.mxu0 %v3351
        %3415 = vmatpush1.msra.mxu0 %v3350
        %3416 = vmatprep.subr.mxu0 %v3353
        %3417 = vmatpush1.msra.mxu0 %v3352
        %3418 = vmatprep.subr.mxu0 %v3355
        %3419 = vmatpush1.msra.mxu0 %v3354
        %3420 = vmatprep.subr.mxu0 %v3357
        %3421 = vmatpush1.msra.mxu0 %v3356
        %3422 = vmatprep.subr.mxu0 %v3359
        %3423 = vmatpush1.msra.mxu0 %v3358
        %3424 = vmatprep.subr.mxu0 %v3361
        %3425 = vmatpush1.msra.mxu0 %v3360
        %3426 = vmatprep.subr.mxu0 %v3363
        %3427 = vmatpush1.msra.mxu0 %v3362
        %3428 = vmatprep.subr.mxu0 %v3365
        %3429 = vmatpush1.msra.mxu0 %v3364
        %3430 = vmatprep.subr.mxu0 %v3367
        %3431 = vmatpush1.msra.mxu0 %v3366
        %3432 = vmatprep.subr.mxu0 %v3369
        %3433 = vmatpush1.msra.mxu0 %v3368
        %3434 = vmatprep.subr.mxu0 %v3371
        %3435 = vmatpush1.msra.mxu0 %v3370
        %3436 = vmatprep.subr.mxu0 %v3373
        %3437 = vmatpush1.msra.mxu0 %v3372
        %3438 = vmatprep.subr.mxu0 %v3375
        %3439 = vmatpush1.msra.mxu0 %v3374
        %3440 = vmatprep.subr.mxu0 %v3377
        %3441 = vmatpush1.msra.mxu0 %v3376
        %3442 = vmatprep.subr.mxu0 %v3379
        %3443 = vmatpush1.msra.mxu0 %v3378
        %3444 = vmatprep.subr.mxu0 %v3381
        %3445 = vmatpush1.msra.mxu0 %v3380
        %3446 = vmatprep.subr.mxu0 %v3383
        %3447 = vmatpush1.msra.mxu0 %v3382
        %3448 = vmatprep.subr.mxu0 %v3385
        %3449 = vmatpush1.msra.mxu0 %v3384
        %3450 = vmatprep.subr.mxu0 %v3387
        %3451 = vmatpush1.msra.mxu0 %v3386
        %3452 = vmatprep.subr.mxu0 %v3389
        %3453 = vmatpush1.msra.mxu0 %v3388
        %3454 = vmatprep.subr.mxu0 %v3391
        %3455 = vmatpush1.msra.mxu0 %v3390
        %3456 = vmatprep.subr.mxu0 %v3393
        %3457 = vmatpush1.msra.mxu0 %v3392
        %3458 = vmatprep.subr.mxu0 %v3395
        %3459 = vmatpush1.msra.mxu0 %v3394
        %3460 = vmatprep.subr.mxu0 %v3397
        %3461 = vmatpush1.msra.mxu0 %v3396
        %3462 = vmatprep.subr.mxu0 %v3399
        %3463 = vmatpush1.msra.mxu0 %v3398
        %3464 = vmatprep.subr.mxu0 %v3401
        %3465 = vmatpush1.msra.mxu0 %v3400
        %3466 = vmatprep.subr.mxu0 %v3403
        %3467 = vmatpush1.msra.mxu0 %v3402
        %3468 = vmatprep.subr.mxu0 %v3405
        %3469 = vmatpush1.msra.mxu0 %v3404
        %3470 = vmatprep.subr.mxu0 %v3407
        %3471 = vmatpush1.msra.mxu0 %v3406
        %3472 = vmatprep.subr.mxu0 %v3409
        %3473 = vmatpush1.msra.mxu0 %v3408
        %3474 = vmatprep.mubr.f32.mxu0 %v3208
        %3475 = vmatmul.mubr.f32.gmra.mrb[0].mxu0 %v3207
        %v3476 = vpop.f32.mrb[0].mxu0
        %v3477 = vadd.f32 0.0, %v3476
        %v3478 = vpop.f32.mrb[0].mxu0
        %v3479 = vadd.f32 0.0, %v3478
        %3480 = vdwg.mxu0
        %3481 = vst [vmem:[#allocation3 + $0x10] sm:$0xff] %v3477
        %3482 = vst [vmem:[#allocation3 + $0x18] sm:$0xff] %v3479
        %v3483 = vld [vmem:[%s789] sm:$0xff]
        %v3484 = vld [vmem:[%s789 + $0x8] sm:$0xff]
        %v3485 = vld [vmem:[%s789 + $0x10] sm:$0xff]
        %v3486 = vld [vmem:[%s789 + $0x18] sm:$0xff]
        %v3487 = vld [vmem:[%s789 + $0x20] sm:$0xff]
        %v3488 = vld [vmem:[%s789 + $0x28] sm:$0xff]
        %v3489 = vld [vmem:[%s789 + $0x30] sm:$0xff]
        %v3490 = vld [vmem:[%s789 + $0x38] sm:$0xff]
        %v3491 = vld [vmem:[%s789 + $0x40] sm:$0xff]
        %v3492 = vld [vmem:[%s789 + $0x48] sm:$0xff]
        %v3493 = vld [vmem:[%s789 + $0x50] sm:$0xff]
        %v3494 = vld [vmem:[%s789 + $0x58] sm:$0xff]
        %v3495 = vld [vmem:[%s789 + $0x60] sm:$0xff]
        %v3496 = vld [vmem:[%s789 + $0x68] sm:$0xff]
        %v3497 = vld [vmem:[%s789 + $0x70] sm:$0xff]
        %v3498 = vld [vmem:[%s789 + $0x78] sm:$0xff]
        %v3499 = vld [vmem:[%s789 + $0x80] sm:$0xff]
        %v3500 = vld [vmem:[%s789 + $0x88] sm:$0xff]
        %v3501 = vld [vmem:[%s789 + $0x90] sm:$0xff]
        %v3502 = vld [vmem:[%s789 + $0x98] sm:$0xff]
        %v3503 = vld [vmem:[%s789 + $0xa0] sm:$0xff]
        %v3504 = vld [vmem:[%s789 + $0xa8] sm:$0xff]
        %v3505 = vld [vmem:[%s789 + $0xb0] sm:$0xff]
        %v3506 = vld [vmem:[%s789 + $0xb8] sm:$0xff]
        %v3507 = vld [vmem:[%s789 + $0xc0] sm:$0xff]
        %v3508 = vld [vmem:[%s789 + $0xc8] sm:$0xff]
        %v3509 = vld [vmem:[%s789 + $0xd0] sm:$0xff]
        %v3510 = vld [vmem:[%s789 + $0xd8] sm:$0xff]
        %v3511 = vld [vmem:[%s789 + $0xe0] sm:$0xff]
        %v3512 = vld [vmem:[%s789 + $0xe8] sm:$0xff]
        %v3513 = vld [vmem:[%s789 + $0xf0] sm:$0xff]
        %v3514 = vld [vmem:[%s789 + $0xf8] sm:$0xff]
        %v3515 = vld [vmem:[%s789 + $0x100] sm:$0xff]
        %v3516 = vld [vmem:[%s789 + $0x108] sm:$0xff]
        %v3517 = vld [vmem:[%s789 + $0x110] sm:$0xff]
        %v3518 = vld [vmem:[%s789 + $0x118] sm:$0xff]
        %v3519 = vld [vmem:[%s789 + $0x120] sm:$0xff]
        %v3520 = vld [vmem:[%s789 + $0x128] sm:$0xff]
        %v3521 = vld [vmem:[%s789 + $0x130] sm:$0xff]
        %v3522 = vld [vmem:[%s789 + $0x138] sm:$0xff]
        %v3523 = vld [vmem:[%s789 + $0x140] sm:$0xff]
        %v3524 = vld [vmem:[%s789 + $0x148] sm:$0xff]
        %v3525 = vld [vmem:[%s789 + $0x150] sm:$0xff]
        %v3526 = vld [vmem:[%s789 + $0x158] sm:$0xff]
        %v3527 = vld [vmem:[%s789 + $0x160] sm:$0xff]
        %v3528 = vld [vmem:[%s789 + $0x168] sm:$0xff]
        %v3529 = vld [vmem:[%s789 + $0x170] sm:$0xff]
        %v3530 = vld [vmem:[%s789 + $0x178] sm:$0xff]
        %v3531 = vld [vmem:[%s789 + $0x180] sm:$0xff]
        %v3532 = vld [vmem:[%s789 + $0x188] sm:$0xff]
        %v3533 = vld [vmem:[%s789 + $0x190] sm:$0xff]
        %v3534 = vld [vmem:[%s789 + $0x198] sm:$0xff]
        %v3535 = vld [vmem:[%s789 + $0x1a0] sm:$0xff]
        %v3536 = vld [vmem:[%s789 + $0x1a8] sm:$0xff]
        %v3537 = vld [vmem:[%s789 + $0x1b0] sm:$0xff]
        %v3538 = vld [vmem:[%s789 + $0x1b8] sm:$0xff]
        %v3539 = vld [vmem:[%s789 + $0x1c0] sm:$0xff]
        %v3540 = vld [vmem:[%s789 + $0x1c8] sm:$0xff]
        %v3541 = vld [vmem:[%s789 + $0x1d0] sm:$0xff]
        %v3542 = vld [vmem:[%s789 + $0x1d8] sm:$0xff]
        %v3543 = vld [vmem:[%s789 + $0x1e0] sm:$0xff]
        %v3544 = vld [vmem:[%s789 + $0x1e8] sm:$0xff]
        %v3545 = vld [vmem:[%s789 + $0x1f0] sm:$0xff]
        %v3546 = vld [vmem:[%s789 + $0x1f8] sm:$0xff]
        %3547 = vmatprep.subr.mxu0 %v3484
        %3548 = vmatpush1.msra.mxu0 %v3483
        %3549 = vmatprep.subr.mxu0 %v3486
        %3550 = vmatpush1.msra.mxu0 %v3485
        %3551 = vmatprep.subr.mxu0 %v3488
        %3552 = vmatpush1.msra.mxu0 %v3487
        %3553 = vmatprep.subr.mxu0 %v3490
        %3554 = vmatpush1.msra.mxu0 %v3489
        %3555 = vmatprep.subr.mxu0 %v3492
        %3556 = vmatpush1.msra.mxu0 %v3491
        %3557 = vmatprep.subr.mxu0 %v3494
        %3558 = vmatpush1.msra.mxu0 %v3493
        %3559 = vmatprep.subr.mxu0 %v3496
        %3560 = vmatpush1.msra.mxu0 %v3495
        %3561 = vmatprep.subr.mxu0 %v3498
        %3562 = vmatpush1.msra.mxu0 %v3497
        %3563 = vmatprep.subr.mxu0 %v3500
        %3564 = vmatpush1.msra.mxu0 %v3499
        %3565 = vmatprep.subr.mxu0 %v3502
        %3566 = vmatpush1.msra.mxu0 %v3501
        %3567 = vmatprep.subr.mxu0 %v3504
        %3568 = vmatpush1.msra.mxu0 %v3503
        %3569 = vmatprep.subr.mxu0 %v3506
        %3570 = vmatpush1.msra.mxu0 %v3505
        %3571 = vmatprep.subr.mxu0 %v3508
        %3572 = vmatpush1.msra.mxu0 %v3507
        %3573 = vmatprep.subr.mxu0 %v3510
        %3574 = vmatpush1.msra.mxu0 %v3509
        %3575 = vmatprep.subr.mxu0 %v3512
        %3576 = vmatpush1.msra.mxu0 %v3511
        %3577 = vmatprep.subr.mxu0 %v3514
        %3578 = vmatpush1.msra.mxu0 %v3513
        %3579 = vmatprep.subr.mxu0 %v3516
        %3580 = vmatpush1.msra.mxu0 %v3515
        %3581 = vmatprep.subr.mxu0 %v3518
        %3582 = vmatpush1.msra.mxu0 %v3517
        %3583 = vmatprep.subr.mxu0 %v3520
        %3584 = vmatpush1.msra.mxu0 %v3519
        %3585 = vmatprep.subr.mxu0 %v3522
        %3586 = vmatpush1.msra.mxu0 %v3521
        %3587 = vmatprep.subr.mxu0 %v3524
        %3588 = vmatpush1.msra.mxu0 %v3523
        %3589 = vmatprep.subr.mxu0 %v3526
        %3590 = vmatpush1.msra.mxu0 %v3525
        %3591 = vmatprep.subr.mxu0 %v3528
        %3592 = vmatpush1.msra.mxu0 %v3527
        %3593 = vmatprep.subr.mxu0 %v3530
        %3594 = vmatpush1.msra.mxu0 %v3529
        %3595 = vmatprep.subr.mxu0 %v3532
        %3596 = vmatpush1.msra.mxu0 %v3531
        %3597 = vmatprep.subr.mxu0 %v3534
        %3598 = vmatpush1.msra.mxu0 %v3533
        %3599 = vmatprep.subr.mxu0 %v3536
        %3600 = vmatpush1.msra.mxu0 %v3535
        %3601 = vmatprep.subr.mxu0 %v3538
        %3602 = vmatpush1.msra.mxu0 %v3537
        %3603 = vmatprep.subr.mxu0 %v3540
        %3604 = vmatpush1.msra.mxu0 %v3539
        %3605 = vmatprep.subr.mxu0 %v3542
        %3606 = vmatpush1.msra.mxu0 %v3541
        %3607 = vmatprep.subr.mxu0 %v3544
        %3608 = vmatpush1.msra.mxu0 %v3543
        %3609 = vmatprep.subr.mxu0 %v3546
        %3610 = vmatpush1.msra.mxu0 %v3545
        %3611 = vmatprep.mubr.f32.mxu0 %v3208
        %3612 = vmatmul.mubr.f32.gmra.mrb[0].mxu0 %v3207
        %v3613 = vpop.f32.mrb[0].mxu0
        %v3614 = vadd.f32 0.0, %v3613
        %v3615 = vpop.f32.mrb[0].mxu0
        %v3616 = vadd.f32 0.0, %v3615
        %3617 = vdwg.mxu0
        %3618 = vst [vmem:[#allocation3 + $0x20] sm:$0xff] %v3614
        %3619 = vst [vmem:[#allocation3 + $0x28] sm:$0xff] %v3616
        %v3620 = vld [vmem:[%s927] sm:$0xff]
        %v3621 = vld [vmem:[%s927 + $0x8] sm:$0xff]
        %v3622 = vld [vmem:[%s927 + $0x10] sm:$0xff]
        %v3623 = vld [vmem:[%s927 + $0x18] sm:$0xff]
        %v3624 = vld [vmem:[%s927 + $0x20] sm:$0xff]
        %v3625 = vld [vmem:[%s927 + $0x28] sm:$0xff]
        %v3626 = vld [vmem:[%s927 + $0x30] sm:$0xff]
        %v3627 = vld [vmem:[%s927 + $0x38] sm:$0xff]
        %v3628 = vld [vmem:[%s927 + $0x40] sm:$0xff]
        %v3629 = vld [vmem:[%s927 + $0x48] sm:$0xff]
        %v3630 = vld [vmem:[%s927 + $0x50] sm:$0xff]
        %v3631 = vld [vmem:[%s927 + $0x58] sm:$0xff]
        %v3632 = vld [vmem:[%s927 + $0x60] sm:$0xff]
        %v3633 = vld [vmem:[%s927 + $0x68] sm:$0xff]
        %v3634 = vld [vmem:[%s927 + $0x70] sm:$0xff]
        %v3635 = vld [vmem:[%s927 + $0x78] sm:$0xff]
        %v3636 = vld [vmem:[%s927 + $0x80] sm:$0xff]
        %v3637 = vld [vmem:[%s927 + $0x88] sm:$0xff]
        %v3638 = vld [vmem:[%s927 + $0x90] sm:$0xff]
        %v3639 = vld [vmem:[%s927 + $0x98] sm:$0xff]
        %v3640 = vld [vmem:[%s927 + $0xa0] sm:$0xff]
        %v3641 = vld [vmem:[%s927 + $0xa8] sm:$0xff]
        %v3642 = vld [vmem:[%s927 + $0xb0] sm:$0xff]
        %v3643 = vld [vmem:[%s927 + $0xb8] sm:$0xff]
        %v3644 = vld [vmem:[%s927 + $0xc0] sm:$0xff]
        %v3645 = vld [vmem:[%s927 + $0xc8] sm:$0xff]
        %v3646 = vld [vmem:[%s927 + $0xd0] sm:$0xff]
        %v3647 = vld [vmem:[%s927 + $0xd8] sm:$0xff]
        %v3648 = vld [vmem:[%s927 + $0xe0] sm:$0xff]
        %v3649 = vld [vmem:[%s927 + $0xe8] sm:$0xff]
        %v3650 = vld [vmem:[%s927 + $0xf0] sm:$0xff]
        %v3651 = vld [vmem:[%s927 + $0xf8] sm:$0xff]
        %v3652 = vld [vmem:[%s927 + $0x100] sm:$0xff]
        %v3653 = vld [vmem:[%s927 + $0x108] sm:$0xff]
        %v3654 = vld [vmem:[%s927 + $0x110] sm:$0xff]
        %v3655 = vld [vmem:[%s927 + $0x118] sm:$0xff]
        %v3656 = vld [vmem:[%s927 + $0x120] sm:$0xff]
        %v3657 = vld [vmem:[%s927 + $0x128] sm:$0xff]
        %v3658 = vld [vmem:[%s927 + $0x130] sm:$0xff]
        %v3659 = vld [vmem:[%s927 + $0x138] sm:$0xff]
        %v3660 = vld [vmem:[%s927 + $0x140] sm:$0xff]
        %v3661 = vld [vmem:[%s927 + $0x148] sm:$0xff]
        %v3662 = vld [vmem:[%s927 + $0x150] sm:$0xff]
        %v3663 = vld [vmem:[%s927 + $0x158] sm:$0xff]
        %v3664 = vld [vmem:[%s927 + $0x160] sm:$0xff]
        %v3665 = vld [vmem:[%s927 + $0x168] sm:$0xff]
        %v3666 = vld [vmem:[%s927 + $0x170] sm:$0xff]
        %v3667 = vld [vmem:[%s927 + $0x178] sm:$0xff]
        %v3668 = vld [vmem:[%s927 + $0x180] sm:$0xff]
        %v3669 = vld [vmem:[%s927 + $0x188] sm:$0xff]
        %v3670 = vld [vmem:[%s927 + $0x190] sm:$0xff]
        %v3671 = vld [vmem:[%s927 + $0x198] sm:$0xff]
        %v3672 = vld [vmem:[%s927 + $0x1a0] sm:$0xff]
        %v3673 = vld [vmem:[%s927 + $0x1a8] sm:$0xff]
        %v3674 = vld [vmem:[%s927 + $0x1b0] sm:$0xff]
        %v3675 = vld [vmem:[%s927 + $0x1b8] sm:$0xff]
        %v3676 = vld [vmem:[%s927 + $0x1c0] sm:$0xff]
        %v3677 = vld [vmem:[%s927 + $0x1c8] sm:$0xff]
        %v3678 = vld [vmem:[%s927 + $0x1d0] sm:$0xff]
        %v3679 = vld [vmem:[%s927 + $0x1d8] sm:$0xff]
        %v3680 = vld [vmem:[%s927 + $0x1e0] sm:$0xff]
        %v3681 = vld [vmem:[%s927 + $0x1e8] sm:$0xff]
        %v3682 = vld [vmem:[%s927 + $0x1f0] sm:$0xff]
        %v3683 = vld [vmem:[%s927 + $0x1f8] sm:$0xff]
        %3684 = vmatprep.subr.mxu0 %v3621
        %3685 = vmatpush1.msra.mxu0 %v3620
        %3686 = vmatprep.subr.mxu0 %v3623
        %3687 = vmatpush1.msra.mxu0 %v3622
        %3688 = vmatprep.subr.mxu0 %v3625
        %3689 = vmatpush1.msra.mxu0 %v3624
        %3690 = vmatprep.subr.mxu0 %v3627
        %3691 = vmatpush1.msra.mxu0 %v3626
        %3692 = vmatprep.subr.mxu0 %v3629
        %3693 = vmatpush1.msra.mxu0 %v3628
        %3694 = vmatprep.subr.mxu0 %v3631
        %3695 = vmatpush1.msra.mxu0 %v3630
        %3696 = vmatprep.subr.mxu0 %v3633
        %3697 = vmatpush1.msra.mxu0 %v3632
        %3698 = vmatprep.subr.mxu0 %v3635
        %3699 = vmatpush1.msra.mxu0 %v3634
        %3700 = vmatprep.subr.mxu0 %v3637
        %3701 = vmatpush1.msra.mxu0 %v3636
        %3702 = vmatprep.subr.mxu0 %v3639
        %3703 = vmatpush1.msra.mxu0 %v3638
        %3704 = vmatprep.subr.mxu0 %v3641
        %3705 = vmatpush1.msra.mxu0 %v3640
        %3706 = vmatprep.subr.mxu0 %v3643
        %3707 = vmatpush1.msra.mxu0 %v3642
        %3708 = vmatprep.subr.mxu0 %v3645
        %3709 = vmatpush1.msra.mxu0 %v3644
        %3710 = vmatprep.subr.mxu0 %v3647
        %3711 = vmatpush1.msra.mxu0 %v3646
        %3712 = vmatprep.subr.mxu0 %v3649
        %3713 = vmatpush1.msra.mxu0 %v3648
        %3714 = vmatprep.subr.mxu0 %v3651
        %3715 = vmatpush1.msra.mxu0 %v3650
        %3716 = vmatprep.subr.mxu0 %v3653
        %3717 = vmatpush1.msra.mxu0 %v3652
        %3718 = vmatprep.subr.mxu0 %v3655
        %3719 = vmatpush1.msra.mxu0 %v3654
        %3720 = vmatprep.subr.mxu0 %v3657
        %3721 = vmatpush1.msra.mxu0 %v3656
        %3722 = vmatprep.subr.mxu0 %v3659
        %3723 = vmatpush1.msra.mxu0 %v3658
        %3724 = vmatprep.subr.mxu0 %v3661
        %3725 = vmatpush1.msra.mxu0 %v3660
        %3726 = vmatprep.subr.mxu0 %v3663
        %3727 = vmatpush1.msra.mxu0 %v3662
        %3728 = vmatprep.subr.mxu0 %v3665
        %3729 = vmatpush1.msra.mxu0 %v3664
        %3730 = vmatprep.subr.mxu0 %v3667
        %3731 = vmatpush1.msra.mxu0 %v3666
        %3732 = vmatprep.subr.mxu0 %v3669
        %3733 = vmatpush1.msra.mxu0 %v3668
        %3734 = vmatprep.subr.mxu0 %v3671
        %3735 = vmatpush1.msra.mxu0 %v3670
        %3736 = vmatprep.subr.mxu0 %v3673
        %3737 = vmatpush1.msra.mxu0 %v3672
        %3738 = vmatprep.subr.mxu0 %v3675
        %3739 = vmatpush1.msra.mxu0 %v3674
        %3740 = vmatprep.subr.mxu0 %v3677
        %3741 = vmatpush1.msra.mxu0 %v3676
        %3742 = vmatprep.subr.mxu0 %v3679
        %3743 = vmatpush1.msra.mxu0 %v3678
        %3744 = vmatprep.subr.mxu0 %v3681
        %3745 = vmatpush1.msra.mxu0 %v3680
        %3746 = vmatprep.subr.mxu0 %v3683
        %3747 = vmatpush1.msra.mxu0 %v3682
        %3748 = vmatprep.mubr.f32.mxu0 %v3208
        %3749 = vmatmul.mubr.f32.gmra.mrb[0].mxu0 %v3207
        %v3750 = vpop.f32.mrb[0].mxu0
        %v3751 = vadd.f32 0.0, %v3750
        %v3752 = vpop.f32.mrb[0].mxu0
        %v3753 = vadd.f32 0.0, %v3752
        %3754 = vdwg.mxu0
        %3755 = vst [vmem:[#allocation3 + $0x30] sm:$0xff] %v3751
        %3756 = vst [vmem:[#allocation3 + $0x38] sm:$0xff] %v3753
        %v3757 = vld [vmem:[%s1065] sm:$0xff]
        %v3758 = vld [vmem:[%s1065 + $0x8] sm:$0xff]
        %v3759 = vld [vmem:[%s1065 + $0x10] sm:$0xff]
        %v3760 = vld [vmem:[%s1065 + $0x18] sm:$0xff]
        %v3761 = vld [vmem:[%s1065 + $0x20] sm:$0xff]
        %v3762 = vld [vmem:[%s1065 + $0x28] sm:$0xff]
        %v3763 = vld [vmem:[%s1065 + $0x30] sm:$0xff]
        %v3764 = vld [vmem:[%s1065 + $0x38] sm:$0xff]
        %v3765 = vld [vmem:[%s1065 + $0x40] sm:$0xff]
        %v3766 = vld [vmem:[%s1065 + $0x48] sm:$0xff]
        %v3767 = vld [vmem:[%s1065 + $0x50] sm:$0xff]
        %v3768 = vld [vmem:[%s1065 + $0x58] sm:$0xff]
        %v3769 = vld [vmem:[%s1065 + $0x60] sm:$0xff]
        %v3770 = vld [vmem:[%s1065 + $0x68] sm:$0xff]
        %v3771 = vld [vmem:[%s1065 + $0x70] sm:$0xff]
        %v3772 = vld [vmem:[%s1065 + $0x78] sm:$0xff]
        %v3773 = vld [vmem:[%s1065 + $0x80] sm:$0xff]
        %v3774 = vld [vmem:[%s1065 + $0x88] sm:$0xff]
        %v3775 = vld [vmem:[%s1065 + $0x90] sm:$0xff]
        %v3776 = vld [vmem:[%s1065 + $0x98] sm:$0xff]
        %v3777 = vld [vmem:[%s1065 + $0xa0] sm:$0xff]
        %v3778 = vld [vmem:[%s1065 + $0xa8] sm:$0xff]
        %v3779 = vld [vmem:[%s1065 + $0xb0] sm:$0xff]
        %v3780 = vld [vmem:[%s1065 + $0xb8] sm:$0xff]
        %v3781 = vld [vmem:[%s1065 + $0xc0] sm:$0xff]
        %v3782 = vld [vmem:[%s1065 + $0xc8] sm:$0xff]
        %v3783 = vld [vmem:[%s1065 + $0xd0] sm:$0xff]
        %v3784 = vld [vmem:[%s1065 + $0xd8] sm:$0xff]
        %v3785 = vld [vmem:[%s1065 + $0xe0] sm:$0xff]
        %v3786 = vld [vmem:[%s1065 + $0xe8] sm:$0xff]
        %v3787 = vld [vmem:[%s1065 + $0xf0] sm:$0xff]
        %v3788 = vld [vmem:[%s1065 + $0xf8] sm:$0xff]
        %v3789 = vld [vmem:[%s1065 + $0x100] sm:$0xff]
        %v3790 = vld [vmem:[%s1065 + $0x108] sm:$0xff]
        %v3791 = vld [vmem:[%s1065 + $0x110] sm:$0xff]
        %v3792 = vld [vmem:[%s1065 + $0x118] sm:$0xff]
        %v3793 = vld [vmem:[%s1065 + $0x120] sm:$0xff]
        %v3794 = vld [vmem:[%s1065 + $0x128] sm:$0xff]
        %v3795 = vld [vmem:[%s1065 + $0x130] sm:$0xff]
        %v3796 = vld [vmem:[%s1065 + $0x138] sm:$0xff]
        %v3797 = vld [vmem:[%s1065 + $0x140] sm:$0xff]
        %v3798 = vld [vmem:[%s1065 + $0x148] sm:$0xff]
        %v3799 = vld [vmem:[%s1065 + $0x150] sm:$0xff]
        %v3800 = vld [vmem:[%s1065 + $0x158] sm:$0xff]
        %v3801 = vld [vmem:[%s1065 + $0x160] sm:$0xff]
        %v3802 = vld [vmem:[%s1065 + $0x168] sm:$0xff]
        %v3803 = vld [vmem:[%s1065 + $0x170] sm:$0xff]
        %v3804 = vld [vmem:[%s1065 + $0x178] sm:$0xff]
        %v3805 = vld [vmem:[%s1065 + $0x180] sm:$0xff]
        %v3806 = vld [vmem:[%s1065 + $0x188] sm:$0xff]
        %v3807 = vld [vmem:[%s1065 + $0x190] sm:$0xff]
        %v3808 = vld [vmem:[%s1065 + $0x198] sm:$0xff]
        %v3809 = vld [vmem:[%s1065 + $0x1a0] sm:$0xff]
        %v3810 = vld [vmem:[%s1065 + $0x1a8] sm:$0xff]
        %v3811 = vld [vmem:[%s1065 + $0x1b0] sm:$0xff]
        %v3812 = vld [vmem:[%s1065 + $0x1b8] sm:$0xff]
        %v3813 = vld [vmem:[%s1065 + $0x1c0] sm:$0xff]
        %v3814 = vld [vmem:[%s1065 + $0x1c8] sm:$0xff]
        %v3815 = vld [vmem:[%s1065 + $0x1d0] sm:$0xff]
        %v3816 = vld [vmem:[%s1065 + $0x1d8] sm:$0xff]
        %v3817 = vld [vmem:[%s1065 + $0x1e0] sm:$0xff]
        %v3818 = vld [vmem:[%s1065 + $0x1e8] sm:$0xff]
        %v3819 = vld [vmem:[%s1065 + $0x1f0] sm:$0xff]
        %v3820 = vld [vmem:[%s1065 + $0x1f8] sm:$0xff]
        %3821 = vmatprep.subr.mxu0 %v3758
        %3822 = vmatpush1.msra.mxu0 %v3757
        %3823 = vmatprep.subr.mxu0 %v3760
        %3824 = vmatpush1.msra.mxu0 %v3759
        %3825 = vmatprep.subr.mxu0 %v3762
        %3826 = vmatpush1.msra.mxu0 %v3761
        %3827 = vmatprep.subr.mxu0 %v3764
        %3828 = vmatpush1.msra.mxu0 %v3763
        %3829 = vmatprep.subr.mxu0 %v3766
        %3830 = vmatpush1.msra.mxu0 %v3765
        %3831 = vmatprep.subr.mxu0 %v3768
        %3832 = vmatpush1.msra.mxu0 %v3767
        %3833 = vmatprep.subr.mxu0 %v3770
        %3834 = vmatpush1.msra.mxu0 %v3769
        %3835 = vmatprep.subr.mxu0 %v3772
        %3836 = vmatpush1.msra.mxu0 %v3771
        %3837 = vmatprep.subr.mxu0 %v3774
        %3838 = vmatpush1.msra.mxu0 %v3773
        %3839 = vmatprep.subr.mxu0 %v3776
        %3840 = vmatpush1.msra.mxu0 %v3775
        %3841 = vmatprep.subr.mxu0 %v3778
        %3842 = vmatpush1.msra.mxu0 %v3777
        %3843 = vmatprep.subr.mxu0 %v3780
        %3844 = vmatpush1.msra.mxu0 %v3779
        %3845 = vmatprep.subr.mxu0 %v3782
        %3846 = vmatpush1.msra.mxu0 %v3781
        %3847 = vmatprep.subr.mxu0 %v3784
        %3848 = vmatpush1.msra.mxu0 %v3783
        %3849 = vmatprep.subr.mxu0 %v3786
        %3850 = vmatpush1.msra.mxu0 %v3785
        %3851 = vmatprep.subr.mxu0 %v3788
        %3852 = vmatpush1.msra.mxu0 %v3787
        %3853 = vmatprep.subr.mxu0 %v3790
        %3854 = vmatpush1.msra.mxu0 %v3789
        %3855 = vmatprep.subr.mxu0 %v3792
        %3856 = vmatpush1.msra.mxu0 %v3791
        %3857 = vmatprep.subr.mxu0 %v3794
        %3858 = vmatpush1.msra.mxu0 %v3793
        %3859 = vmatprep.subr.mxu0 %v3796
        %3860 = vmatpush1.msra.mxu0 %v3795
        %3861 = vmatprep.subr.mxu0 %v3798
        %3862 = vmatpush1.msra.mxu0 %v3797
        %3863 = vmatprep.subr.mxu0 %v3800
        %3864 = vmatpush1.msra.mxu0 %v3799
        %3865 = vmatprep.subr.mxu0 %v3802
        %3866 = vmatpush1.msra.mxu0 %v3801
        %3867 = vmatprep.subr.mxu0 %v3804
        %3868 = vmatpush1.msra.mxu0 %v3803
        %3869 = vmatprep.subr.mxu0 %v3806
        %3870 = vmatpush1.msra.mxu0 %v3805
        %3871 = vmatprep.subr.mxu0 %v3808
        %3872 = vmatpush1.msra.mxu0 %v3807
        %3873 = vmatprep.subr.mxu0 %v3810
        %3874 = vmatpush1.msra.mxu0 %v3809
        %3875 = vmatprep.subr.mxu0 %v3812
        %3876 = vmatpush1.msra.mxu0 %v3811
        %3877 = vmatprep.subr.mxu0 %v3814
        %3878 = vmatpush1.msra.mxu0 %v3813
        %3879 = vmatprep.subr.mxu0 %v3816
        %3880 = vmatpush1.msra.mxu0 %v3815
        %3881 = vmatprep.subr.mxu0 %v3818
        %3882 = vmatpush1.msra.mxu0 %v3817
        %3883 = vmatprep.subr.mxu0 %v3820
        %3884 = vmatpush1.msra.mxu0 %v3819
        %3885 = vmatprep.mubr.f32.mxu0 %v3208
        %3886 = vmatmul.mubr.f32.gmra.mrb[0].mxu0 %v3207
        %v3887 = vpop.f32.mrb[0].mxu0
        %v3888 = vadd.f32 0.0, %v3887
        %v3889 = vpop.f32.mrb[0].mxu0
        %v3890 = vadd.f32 0.0, %v3889
        %3891 = vdwg.mxu0
        %3892 = vst [vmem:[#allocation3 + $0x40] sm:$0xff] %v3888
        %3893 = vst [vmem:[#allocation3 + $0x48] sm:$0xff] %v3890
        %v3894 = vld [vmem:[%s1203] sm:$0xff]
        %v3895 = vld [vmem:[%s1203 + $0x8] sm:$0xff]
        %v3896 = vld [vmem:[%s1203 + $0x10] sm:$0xff]
        %v3897 = vld [vmem:[%s1203 + $0x18] sm:$0xff]
        %v3898 = vld [vmem:[%s1203 + $0x20] sm:$0xff]
        %v3899 = vld [vmem:[%s1203 + $0x28] sm:$0xff]
        %v3900 = vld [vmem:[%s1203 + $0x30] sm:$0xff]
        %v3901 = vld [vmem:[%s1203 + $0x38] sm:$0xff]
        %v3902 = vld [vmem:[%s1203 + $0x40] sm:$0xff]
        %v3903 = vld [vmem:[%s1203 + $0x48] sm:$0xff]
        %v3904 = vld [vmem:[%s1203 + $0x50] sm:$0xff]
        %v3905 = vld [vmem:[%s1203 + $0x58] sm:$0xff]
        %v3906 = vld [vmem:[%s1203 + $0x60] sm:$0xff]
        %v3907 = vld [vmem:[%s1203 + $0x68] sm:$0xff]
        %v3908 = vld [vmem:[%s1203 + $0x70] sm:$0xff]
        %v3909 = vld [vmem:[%s1203 + $0x78] sm:$0xff]
        %v3910 = vld [vmem:[%s1203 + $0x80] sm:$0xff]
        %v3911 = vld [vmem:[%s1203 + $0x88] sm:$0xff]
        %v3912 = vld [vmem:[%s1203 + $0x90] sm:$0xff]
        %v3913 = vld [vmem:[%s1203 + $0x98] sm:$0xff]
        %v3914 = vld [vmem:[%s1203 + $0xa0] sm:$0xff]
        %v3915 = vld [vmem:[%s1203 + $0xa8] sm:$0xff]
        %v3916 = vld [vmem:[%s1203 + $0xb0] sm:$0xff]
        %v3917 = vld [vmem:[%s1203 + $0xb8] sm:$0xff]
        %v3918 = vld [vmem:[%s1203 + $0xc0] sm:$0xff]
        %v3919 = vld [vmem:[%s1203 + $0xc8] sm:$0xff]
        %v3920 = vld [vmem:[%s1203 + $0xd0] sm:$0xff]
        %v3921 = vld [vmem:[%s1203 + $0xd8] sm:$0xff]
        %v3922 = vld [vmem:[%s1203 + $0xe0] sm:$0xff]
        %v3923 = vld [vmem:[%s1203 + $0xe8] sm:$0xff]
        %v3924 = vld [vmem:[%s1203 + $0xf0] sm:$0xff]
        %v3925 = vld [vmem:[%s1203 + $0xf8] sm:$0xff]
        %v3926 = vld [vmem:[%s1203 + $0x100] sm:$0xff]
        %v3927 = vld [vmem:[%s1203 + $0x108] sm:$0xff]
        %v3928 = vld [vmem:[%s1203 + $0x110] sm:$0xff]
        %v3929 = vld [vmem:[%s1203 + $0x118] sm:$0xff]
        %v3930 = vld [vmem:[%s1203 + $0x120] sm:$0xff]
        %v3931 = vld [vmem:[%s1203 + $0x128] sm:$0xff]
        %v3932 = vld [vmem:[%s1203 + $0x130] sm:$0xff]
        %v3933 = vld [vmem:[%s1203 + $0x138] sm:$0xff]
        %v3934 = vld [vmem:[%s1203 + $0x140] sm:$0xff]
        %v3935 = vld [vmem:[%s1203 + $0x148] sm:$0xff]
        %v3936 = vld [vmem:[%s1203 + $0x150] sm:$0xff]
        %v3937 = vld [vmem:[%s1203 + $0x158] sm:$0xff]
        %v3938 = vld [vmem:[%s1203 + $0x160] sm:$0xff]
        %v3939 = vld [vmem:[%s1203 + $0x168] sm:$0xff]
        %v3940 = vld [vmem:[%s1203 + $0x170] sm:$0xff]
        %v3941 = vld [vmem:[%s1203 + $0x178] sm:$0xff]
        %v3942 = vld [vmem:[%s1203 + $0x180] sm:$0xff]
        %v3943 = vld [vmem:[%s1203 + $0x188] sm:$0xff]
        %v3944 = vld [vmem:[%s1203 + $0x190] sm:$0xff]
        %v3945 = vld [vmem:[%s1203 + $0x198] sm:$0xff]
        %v3946 = vld [vmem:[%s1203 + $0x1a0] sm:$0xff]
        %v3947 = vld [vmem:[%s1203 + $0x1a8] sm:$0xff]
        %v3948 = vld [vmem:[%s1203 + $0x1b0] sm:$0xff]
        %v3949 = vld [vmem:[%s1203 + $0x1b8] sm:$0xff]
        %v3950 = vld [vmem:[%s1203 + $0x1c0] sm:$0xff]
        %v3951 = vld [vmem:[%s1203 + $0x1c8] sm:$0xff]
        %v3952 = vld [vmem:[%s1203 + $0x1d0] sm:$0xff]
        %v3953 = vld [vmem:[%s1203 + $0x1d8] sm:$0xff]
        %v3954 = vld [vmem:[%s1203 + $0x1e0] sm:$0xff]
        %v3955 = vld [vmem:[%s1203 + $0x1e8] sm:$0xff]
        %v3956 = vld [vmem:[%s1203 + $0x1f0] sm:$0xff]
        %v3957 = vld [vmem:[%s1203 + $0x1f8] sm:$0xff]
        %3958 = vmatprep.subr.mxu0 %v3895
        %3959 = vmatpush1.msra.mxu0 %v3894
        %3960 = vmatprep.subr.mxu0 %v3897
        %3961 = vmatpush1.msra.mxu0 %v3896
        %3962 = vmatprep.subr.mxu0 %v3899
        %3963 = vmatpush1.msra.mxu0 %v3898
        %3964 = vmatprep.subr.mxu0 %v3901
        %3965 = vmatpush1.msra.mxu0 %v3900
        %3966 = vmatprep.subr.mxu0 %v3903
        %3967 = vmatpush1.msra.mxu0 %v3902
        %3968 = vmatprep.subr.mxu0 %v3905
        %3969 = vmatpush1.msra.mxu0 %v3904
        %3970 = vmatprep.subr.mxu0 %v3907
        %3971 = vmatpush1.msra.mxu0 %v3906
        %3972 = vmatprep.subr.mxu0 %v3909
        %3973 = vmatpush1.msra.mxu0 %v3908
        %3974 = vmatprep.subr.mxu0 %v3911
        %3975 = vmatpush1.msra.mxu0 %v3910
        %3976 = vmatprep.subr.mxu0 %v3913
        %3977 = vmatpush1.msra.mxu0 %v3912
        %3978 = vmatprep.subr.mxu0 %v3915
        %3979 = vmatpush1.msra.mxu0 %v3914
        %3980 = vmatprep.subr.mxu0 %v3917
        %3981 = vmatpush1.msra.mxu0 %v3916
        %3982 = vmatprep.subr.mxu0 %v3919
        %3983 = vmatpush1.msra.mxu0 %v3918
        %3984 = vmatprep.subr.mxu0 %v3921
        %3985 = vmatpush1.msra.mxu0 %v3920
        %3986 = vmatprep.subr.mxu0 %v3923
        %3987 = vmatpush1.msra.mxu0 %v3922
        %3988 = vmatprep.subr.mxu0 %v3925
        %3989 = vmatpush1.msra.mxu0 %v3924
        %3990 = vmatprep.subr.mxu0 %v3927
        %3991 = vmatpush1.msra.mxu0 %v3926
        %3992 = vmatprep.subr.mxu0 %v3929
        %3993 = vmatpush1.msra.mxu0 %v3928
        %3994 = vmatprep.subr.mxu0 %v3931
        %3995 = vmatpush1.msra.mxu0 %v3930
        %3996 = vmatprep.subr.mxu0 %v3933
        %3997 = vmatpush1.msra.mxu0 %v3932
        %3998 = vmatprep.subr.mxu0 %v3935
        %3999 = vmatpush1.msra.mxu0 %v3934
        %4000 = vmatprep.subr.mxu0 %v3937
        %4001 = vmatpush1.msra.mxu0 %v3936
        %4002 = vmatprep.subr.mxu0 %v3939
        %4003 = vmatpush1.msra.mxu0 %v3938
        %4004 = vmatprep.subr.mxu0 %v3941
        %4005 = vmatpush1.msra.mxu0 %v3940
        %4006 = vmatprep.subr.mxu0 %v3943
        %4007 = vmatpush1.msra.mxu0 %v3942
        %4008 = vmatprep.subr.mxu0 %v3945
        %4009 = vmatpush1.msra.mxu0 %v3944
        %4010 = vmatprep.subr.mxu0 %v3947
        %4011 = vmatpush1.msra.mxu0 %v3946
        %4012 = vmatprep.subr.mxu0 %v3949
        %4013 = vmatpush1.msra.mxu0 %v3948
        %4014 = vmatprep.subr.mxu0 %v3951
        %4015 = vmatpush1.msra.mxu0 %v3950
        %4016 = vmatprep.subr.mxu0 %v3953
        %4017 = vmatpush1.msra.mxu0 %v3952
        %4018 = vmatprep.subr.mxu0 %v3955
        %4019 = vmatpush1.msra.mxu0 %v3954
        %4020 = vmatprep.subr.mxu0 %v3957
        %4021 = vmatpush1.msra.mxu0 %v3956
        %4022 = vmatprep.mubr.f32.mxu0 %v3208
        %4023 = vmatmul.mubr.f32.gmra.mrb[0].mxu0 %v3207
        %v4024 = vpop.f32.mrb[0].mxu0
        %v4025 = vadd.f32 0.0, %v4024
        %v4026 = vpop.f32.mrb[0].mxu0
        %v4027 = vadd.f32 0.0, %v4026
        %4028 = vdwg.mxu0
        %4029 = vst [vmem:[#allocation3 + $0x50] sm:$0xff] %v4025
        %4030 = vst [vmem:[#allocation3 + $0x58] sm:$0xff] %v4027
        %v4031 = vld [vmem:[%s1341] sm:$0xff]
        %v4032 = vld [vmem:[%s1341 + $0x8] sm:$0xff]
        %v4033 = vld [vmem:[%s1341 + $0x10] sm:$0xff]
        %v4034 = vld [vmem:[%s1341 + $0x18] sm:$0xff]
        %v4035 = vld [vmem:[%s1341 + $0x20] sm:$0xff]
        %v4036 = vld [vmem:[%s1341 + $0x28] sm:$0xff]
        %v4037 = vld [vmem:[%s1341 + $0x30] sm:$0xff]
        %v4038 = vld [vmem:[%s1341 + $0x38] sm:$0xff]
        %v4039 = vld [vmem:[%s1341 + $0x40] sm:$0xff]
        %v4040 = vld [vmem:[%s1341 + $0x48] sm:$0xff]
        %v4041 = vld [vmem:[%s1341 + $0x50] sm:$0xff]
        %v4042 = vld [vmem:[%s1341 + $0x58] sm:$0xff]
        %v4043 = vld [vmem:[%s1341 + $0x60] sm:$0xff]
        %v4044 = vld [vmem:[%s1341 + $0x68] sm:$0xff]
        %v4045 = vld [vmem:[%s1341 + $0x70] sm:$0xff]
        %v4046 = vld [vmem:[%s1341 + $0x78] sm:$0xff]
        %v4047 = vld [vmem:[%s1341 + $0x80] sm:$0xff]
        %v4048 = vld [vmem:[%s1341 + $0x88] sm:$0xff]
        %v4049 = vld [vmem:[%s1341 + $0x90] sm:$0xff]
        %v4050 = vld [vmem:[%s1341 + $0x98] sm:$0xff]
        %v4051 = vld [vmem:[%s1341 + $0xa0] sm:$0xff]
        %v4052 = vld [vmem:[%s1341 + $0xa8] sm:$0xff]
        %v4053 = vld [vmem:[%s1341 + $0xb0] sm:$0xff]
        %v4054 = vld [vmem:[%s1341 + $0xb8] sm:$0xff]
        %v4055 = vld [vmem:[%s1341 + $0xc0] sm:$0xff]
        %v4056 = vld [vmem:[%s1341 + $0xc8] sm:$0xff]
        %v4057 = vld [vmem:[%s1341 + $0xd0] sm:$0xff]
        %v4058 = vld [vmem:[%s1341 + $0xd8] sm:$0xff]
        %v4059 = vld [vmem:[%s1341 + $0xe0] sm:$0xff]
        %v4060 = vld [vmem:[%s1341 + $0xe8] sm:$0xff]
        %v4061 = vld [vmem:[%s1341 + $0xf0] sm:$0xff]
        %v4062 = vld [vmem:[%s1341 + $0xf8] sm:$0xff]
        %v4063 = vld [vmem:[%s1341 + $0x100] sm:$0xff]
        %v4064 = vld [vmem:[%s1341 + $0x108] sm:$0xff]
        %v4065 = vld [vmem:[%s1341 + $0x110] sm:$0xff]
        %v4066 = vld [vmem:[%s1341 + $0x118] sm:$0xff]
        %v4067 = vld [vmem:[%s1341 + $0x120] sm:$0xff]
        %v4068 = vld [vmem:[%s1341 + $0x128] sm:$0xff]
        %v4069 = vld [vmem:[%s1341 + $0x130] sm:$0xff]
        %v4070 = vld [vmem:[%s1341 + $0x138] sm:$0xff]
        %v4071 = vld [vmem:[%s1341 + $0x140] sm:$0xff]
        %v4072 = vld [vmem:[%s1341 + $0x148] sm:$0xff]
        %v4073 = vld [vmem:[%s1341 + $0x150] sm:$0xff]
        %v4074 = vld [vmem:[%s1341 + $0x158] sm:$0xff]
        %v4075 = vld [vmem:[%s1341 + $0x160] sm:$0xff]
        %v4076 = vld [vmem:[%s1341 + $0x168] sm:$0xff]
        %v4077 = vld [vmem:[%s1341 + $0x170] sm:$0xff]
        %v4078 = vld [vmem:[%s1341 + $0x178] sm:$0xff]
        %v4079 = vld [vmem:[%s1341 + $0x180] sm:$0xff]
        %v4080 = vld [vmem:[%s1341 + $0x188] sm:$0xff]
        %v4081 = vld [vmem:[%s1341 + $0x190] sm:$0xff]
        %v4082 = vld [vmem:[%s1341 + $0x198] sm:$0xff]
        %v4083 = vld [vmem:[%s1341 + $0x1a0] sm:$0xff]
        %v4084 = vld [vmem:[%s1341 + $0x1a8] sm:$0xff]
        %v4085 = vld [vmem:[%s1341 + $0x1b0] sm:$0xff]
        %v4086 = vld [vmem:[%s1341 + $0x1b8] sm:$0xff]
        %v4087 = vld [vmem:[%s1341 + $0x1c0] sm:$0xff]
        %v4088 = vld [vmem:[%s1341 + $0x1c8] sm:$0xff]
        %v4089 = vld [vmem:[%s1341 + $0x1d0] sm:$0xff]
        %v4090 = vld [vmem:[%s1341 + $0x1d8] sm:$0xff]
        %v4091 = vld [vmem:[%s1341 + $0x1e0] sm:$0xff]
        %v4092 = vld [vmem:[%s1341 + $0x1e8] sm:$0xff]
        %v4093 = vld [vmem:[%s1341 + $0x1f0] sm:$0xff]
        %v4094 = vld [vmem:[%s1341 + $0x1f8] sm:$0xff]
        %4095 = vmatprep.subr.mxu0 %v4032
        %4096 = vmatpush1.msra.mxu0 %v4031
        %4097 = vmatprep.subr.mxu0 %v4034
        %4098 = vmatpush1.msra.mxu0 %v4033
        %4099 = vmatprep.subr.mxu0 %v4036
        %4100 = vmatpush1.msra.mxu0 %v4035
        %4101 = vmatprep.subr.mxu0 %v4038
        %4102 = vmatpush1.msra.mxu0 %v4037
        %4103 = vmatprep.subr.mxu0 %v4040
        %4104 = vmatpush1.msra.mxu0 %v4039
        %4105 = vmatprep.subr.mxu0 %v4042
        %4106 = vmatpush1.msra.mxu0 %v4041
        %4107 = vmatprep.subr.mxu0 %v4044
        %4108 = vmatpush1.msra.mxu0 %v4043
        %4109 = vmatprep.subr.mxu0 %v4046
        %4110 = vmatpush1.msra.mxu0 %v4045
        %4111 = vmatprep.subr.mxu0 %v4048
        %4112 = vmatpush1.msra.mxu0 %v4047
        %4113 = vmatprep.subr.mxu0 %v4050
        %4114 = vmatpush1.msra.mxu0 %v4049
        %4115 = vmatprep.subr.mxu0 %v4052
        %4116 = vmatpush1.msra.mxu0 %v4051
        %4117 = vmatprep.subr.mxu0 %v4054
        %4118 = vmatpush1.msra.mxu0 %v4053
        %4119 = vmatprep.subr.mxu0 %v4056
        %4120 = vmatpush1.msra.mxu0 %v4055
        %4121 = vmatprep.subr.mxu0 %v4058
        %4122 = vmatpush1.msra.mxu0 %v4057
        %4123 = vmatprep.subr.mxu0 %v4060
        %4124 = vmatpush1.msra.mxu0 %v4059
        %4125 = vmatprep.subr.mxu0 %v4062
        %4126 = vmatpush1.msra.mxu0 %v4061
        %4127 = vmatprep.subr.mxu0 %v4064
        %4128 = vmatpush1.msra.mxu0 %v4063
        %4129 = vmatprep.subr.mxu0 %v4066
        %4130 = vmatpush1.msra.mxu0 %v4065
        %4131 = vmatprep.subr.mxu0 %v4068
        %4132 = vmatpush1.msra.mxu0 %v4067
        %4133 = vmatprep.subr.mxu0 %v4070
        %4134 = vmatpush1.msra.mxu0 %v4069
        %4135 = vmatprep.subr.mxu0 %v4072
        %4136 = vmatpush1.msra.mxu0 %v4071
        %4137 = vmatprep.subr.mxu0 %v4074
        %4138 = vmatpush1.msra.mxu0 %v4073
        %4139 = vmatprep.subr.mxu0 %v4076
        %4140 = vmatpush1.msra.mxu0 %v4075
        %4141 = vmatprep.subr.mxu0 %v4078
        %4142 = vmatpush1.msra.mxu0 %v4077
        %4143 = vmatprep.subr.mxu0 %v4080
        %4144 = vmatpush1.msra.mxu0 %v4079
        %4145 = vmatprep.subr.mxu0 %v4082
        %4146 = vmatpush1.msra.mxu0 %v4081
        %4147 = vmatprep.subr.mxu0 %v4084
        %4148 = vmatpush1.msra.mxu0 %v4083
        %4149 = vmatprep.subr.mxu0 %v4086
        %4150 = vmatpush1.msra.mxu0 %v4085
        %4151 = vmatprep.subr.mxu0 %v4088
        %4152 = vmatpush1.msra.mxu0 %v4087
        %4153 = vmatprep.subr.mxu0 %v4090
        %4154 = vmatpush1.msra.mxu0 %v4089
        %4155 = vmatprep.subr.mxu0 %v4092
        %4156 = vmatpush1.msra.mxu0 %v4091
        %4157 = vmatprep.subr.mxu0 %v4094
        %4158 = vmatpush1.msra.mxu0 %v4093
        %4159 = vmatprep.mubr.f32.mxu0 %v3208
        %4160 = vmatmul.mubr.f32.gmra.mrb[0].mxu0 %v3207
        %v4161 = vpop.f32.mrb[0].mxu0
        %v4162 = vadd.f32 0.0, %v4161
        %v4163 = vpop.f32.mrb[0].mxu0
        %v4164 = vadd.f32 0.0, %v4163
        %4165 = vdwg.mxu0
        %4166 = vst [vmem:[#allocation3 + $0x60] sm:$0xff] %v4162
        %4167 = vst [vmem:[#allocation3 + $0x68] sm:$0xff] %v4164
        %v4168 = vld [vmem:[%s1479] sm:$0xff]
        %v4169 = vld [vmem:[%s1479 + $0x8] sm:$0xff]
        %v4170 = vld [vmem:[%s1479 + $0x10] sm:$0xff]
        %v4171 = vld [vmem:[%s1479 + $0x18] sm:$0xff]
        %v4172 = vld [vmem:[%s1479 + $0x20] sm:$0xff]
        %v4173 = vld [vmem:[%s1479 + $0x28] sm:$0xff]
        %v4174 = vld [vmem:[%s1479 + $0x30] sm:$0xff]
        %v4175 = vld [vmem:[%s1479 + $0x38] sm:$0xff]
        %v4176 = vld [vmem:[%s1479 + $0x40] sm:$0xff]
        %v4177 = vld [vmem:[%s1479 + $0x48] sm:$0xff]
        %v4178 = vld [vmem:[%s1479 + $0x50] sm:$0xff]
        %v4179 = vld [vmem:[%s1479 + $0x58] sm:$0xff]
        %v4180 = vld [vmem:[%s1479 + $0x60] sm:$0xff]
        %v4181 = vld [vmem:[%s1479 + $0x68] sm:$0xff]
        %v4182 = vld [vmem:[%s1479 + $0x70] sm:$0xff]
        %v4183 = vld [vmem:[%s1479 + $0x78] sm:$0xff]
        %v4184 = vld [vmem:[%s1479 + $0x80] sm:$0xff]
        %v4185 = vld [vmem:[%s1479 + $0x88] sm:$0xff]
        %v4186 = vld [vmem:[%s1479 + $0x90] sm:$0xff]
        %v4187 = vld [vmem:[%s1479 + $0x98] sm:$0xff]
        %v4188 = vld [vmem:[%s1479 + $0xa0] sm:$0xff]
        %v4189 = vld [vmem:[%s1479 + $0xa8] sm:$0xff]
        %v4190 = vld [vmem:[%s1479 + $0xb0] sm:$0xff]
        %v4191 = vld [vmem:[%s1479 + $0xb8] sm:$0xff]
        %v4192 = vld [vmem:[%s1479 + $0xc0] sm:$0xff]
        %v4193 = vld [vmem:[%s1479 + $0xc8] sm:$0xff]
        %v4194 = vld [vmem:[%s1479 + $0xd0] sm:$0xff]
        %v4195 = vld [vmem:[%s1479 + $0xd8] sm:$0xff]
        %v4196 = vld [vmem:[%s1479 + $0xe0] sm:$0xff]
        %v4197 = vld [vmem:[%s1479 + $0xe8] sm:$0xff]
        %v4198 = vld [vmem:[%s1479 + $0xf0] sm:$0xff]
        %v4199 = vld [vmem:[%s1479 + $0xf8] sm:$0xff]
        %v4200 = vld [vmem:[%s1479 + $0x100] sm:$0xff]
        %v4201 = vld [vmem:[%s1479 + $0x108] sm:$0xff]
        %v4202 = vld [vmem:[%s1479 + $0x110] sm:$0xff]
        %v4203 = vld [vmem:[%s1479 + $0x118] sm:$0xff]
        %v4204 = vld [vmem:[%s1479 + $0x120] sm:$0xff]
        %v4205 = vld [vmem:[%s1479 + $0x128] sm:$0xff]
        %v4206 = vld [vmem:[%s1479 + $0x130] sm:$0xff]
        %v4207 = vld [vmem:[%s1479 + $0x138] sm:$0xff]
        %v4208 = vld [vmem:[%s1479 + $0x140] sm:$0xff]
        %v4209 = vld [vmem:[%s1479 + $0x148] sm:$0xff]
        %v4210 = vld [vmem:[%s1479 + $0x150] sm:$0xff]
        %v4211 = vld [vmem:[%s1479 + $0x158] sm:$0xff]
        %v4212 = vld [vmem:[%s1479 + $0x160] sm:$0xff]
        %v4213 = vld [vmem:[%s1479 + $0x168] sm:$0xff]
        %v4214 = vld [vmem:[%s1479 + $0x170] sm:$0xff]
        %v4215 = vld [vmem:[%s1479 + $0x178] sm:$0xff]
        %v4216 = vld [vmem:[%s1479 + $0x180] sm:$0xff]
        %v4217 = vld [vmem:[%s1479 + $0x188] sm:$0xff]
        %v4218 = vld [vmem:[%s1479 + $0x190] sm:$0xff]
        %v4219 = vld [vmem:[%s1479 + $0x198] sm:$0xff]
        %v4220 = vld [vmem:[%s1479 + $0x1a0] sm:$0xff]
        %v4221 = vld [vmem:[%s1479 + $0x1a8] sm:$0xff]
        %v4222 = vld [vmem:[%s1479 + $0x1b0] sm:$0xff]
        %v4223 = vld [vmem:[%s1479 + $0x1b8] sm:$0xff]
        %v4224 = vld [vmem:[%s1479 + $0x1c0] sm:$0xff]
        %v4225 = vld [vmem:[%s1479 + $0x1c8] sm:$0xff]
        %v4226 = vld [vmem:[%s1479 + $0x1d0] sm:$0xff]
        %v4227 = vld [vmem:[%s1479 + $0x1d8] sm:$0xff]
        %v4228 = vld [vmem:[%s1479 + $0x1e0] sm:$0xff]
        %v4229 = vld [vmem:[%s1479 + $0x1e8] sm:$0xff]
        %v4230 = vld [vmem:[%s1479 + $0x1f0] sm:$0xff]
        %v4231 = vld [vmem:[%s1479 + $0x1f8] sm:$0xff]
        %4232 = vmatprep.subr.mxu0 %v4169
        %4233 = vmatpush1.msra.mxu0 %v4168
        %4234 = vmatprep.subr.mxu0 %v4171
        %4235 = vmatpush1.msra.mxu0 %v4170
        %4236 = vmatprep.subr.mxu0 %v4173
        %4237 = vmatpush1.msra.mxu0 %v4172
        %4238 = vmatprep.subr.mxu0 %v4175
        %4239 = vmatpush1.msra.mxu0 %v4174
        %4240 = vmatprep.subr.mxu0 %v4177
        %4241 = vmatpush1.msra.mxu0 %v4176
        %4242 = vmatprep.subr.mxu0 %v4179
        %4243 = vmatpush1.msra.mxu0 %v4178
        %4244 = vmatprep.subr.mxu0 %v4181
        %4245 = vmatpush1.msra.mxu0 %v4180
        %4246 = vmatprep.subr.mxu0 %v4183
        %4247 = vmatpush1.msra.mxu0 %v4182
        %4248 = vmatprep.subr.mxu0 %v4185
        %4249 = vmatpush1.msra.mxu0 %v4184
        %4250 = vmatprep.subr.mxu0 %v4187
        %4251 = vmatpush1.msra.mxu0 %v4186
        %4252 = vmatprep.subr.mxu0 %v4189
        %4253 = vmatpush1.msra.mxu0 %v4188
        %4254 = vmatprep.subr.mxu0 %v4191
        %4255 = vmatpush1.msra.mxu0 %v4190
        %4256 = vmatprep.subr.mxu0 %v4193
        %4257 = vmatpush1.msra.mxu0 %v4192
        %4258 = vmatprep.subr.mxu0 %v4195
        %4259 = vmatpush1.msra.mxu0 %v4194
        %4260 = vmatprep.subr.mxu0 %v4197
        %4261 = vmatpush1.msra.mxu0 %v4196
        %4262 = vmatprep.subr.mxu0 %v4199
        %4263 = vmatpush1.msra.mxu0 %v4198
        %4264 = vmatprep.subr.mxu0 %v4201
        %4265 = vmatpush1.msra.mxu0 %v4200
        %4266 = vmatprep.subr.mxu0 %v4203
        %4267 = vmatpush1.msra.mxu0 %v4202
        %4268 = vmatprep.subr.mxu0 %v4205
        %4269 = vmatpush1.msra.mxu0 %v4204
        %4270 = vmatprep.subr.mxu0 %v4207
        %4271 = vmatpush1.msra.mxu0 %v4206
        %4272 = vmatprep.subr.mxu0 %v4209
        %4273 = vmatpush1.msra.mxu0 %v4208
        %4274 = vmatprep.subr.mxu0 %v4211
        %4275 = vmatpush1.msra.mxu0 %v4210
        %4276 = vmatprep.subr.mxu0 %v4213
        %4277 = vmatpush1.msra.mxu0 %v4212
        %4278 = vmatprep.subr.mxu0 %v4215
        %4279 = vmatpush1.msra.mxu0 %v4214
        %4280 = vmatprep.subr.mxu0 %v4217
        %4281 = vmatpush1.msra.mxu0 %v4216
        %4282 = vmatprep.subr.mxu0 %v4219
        %4283 = vmatpush1.msra.mxu0 %v4218
        %4284 = vmatprep.subr.mxu0 %v4221
        %4285 = vmatpush1.msra.mxu0 %v4220
        %4286 = vmatprep.subr.mxu0 %v4223
        %4287 = vmatpush1.msra.mxu0 %v4222
        %4288 = vmatprep.subr.mxu0 %v4225
        %4289 = vmatpush1.msra.mxu0 %v4224
        %4290 = vmatprep.subr.mxu0 %v4227
        %4291 = vmatpush1.msra.mxu0 %v4226
        %4292 = vmatprep.subr.mxu0 %v4229
        %4293 = vmatpush1.msra.mxu0 %v4228
        %4294 = vmatprep.subr.mxu0 %v4231
        %4295 = vmatpush1.msra.mxu0 %v4230
        %4296 = vmatprep.mubr.f32.mxu0 %v3208
        %4297 = vmatmul.mubr.f32.gmra.mrb[0].mxu0 %v3207
        %v4298 = vpop.f32.mrb[0].mxu0
        %v4299 = vadd.f32 0.0, %v4298
        %v4300 = vpop.f32.mrb[0].mxu0
        %v4301 = vadd.f32 0.0, %v4300
        %4302 = vdwg.mxu0
        %4303 = vst [vmem:[#allocation3 + $0x70] sm:$0xff] %v4299
        %4304 = vst [vmem:[#allocation3 + $0x78] sm:$0xff] %v4301
        %v4305 = vld [vmem:[%s1617] sm:$0xff]
        %v4306 = vld [vmem:[%s1617 + $0x8] sm:$0xff]
        %v4307 = vld [vmem:[%s1617 + $0x10] sm:$0xff]
        %v4308 = vld [vmem:[%s1617 + $0x18] sm:$0xff]
        %v4309 = vld [vmem:[%s1617 + $0x20] sm:$0xff]
        %v4310 = vld [vmem:[%s1617 + $0x28] sm:$0xff]
        %v4311 = vld [vmem:[%s1617 + $0x30] sm:$0xff]
        %v4312 = vld [vmem:[%s1617 + $0x38] sm:$0xff]
        %v4313 = vld [vmem:[%s1617 + $0x40] sm:$0xff]
        %v4314 = vld [vmem:[%s1617 + $0x48] sm:$0xff]
        %v4315 = vld [vmem:[%s1617 + $0x50] sm:$0xff]
        %v4316 = vld [vmem:[%s1617 + $0x58] sm:$0xff]
        %v4317 = vld [vmem:[%s1617 + $0x60] sm:$0xff]
        %v4318 = vld [vmem:[%s1617 + $0x68] sm:$0xff]
        %v4319 = vld [vmem:[%s1617 + $0x70] sm:$0xff]
        %v4320 = vld [vmem:[%s1617 + $0x78] sm:$0xff]
        %v4321 = vld [vmem:[%s1617 + $0x80] sm:$0xff]
        %v4322 = vld [vmem:[%s1617 + $0x88] sm:$0xff]
        %v4323 = vld [vmem:[%s1617 + $0x90] sm:$0xff]
        %v4324 = vld [vmem:[%s1617 + $0x98] sm:$0xff]
        %v4325 = vld [vmem:[%s1617 + $0xa0] sm:$0xff]
        %v4326 = vld [vmem:[%s1617 + $0xa8] sm:$0xff]
        %v4327 = vld [vmem:[%s1617 + $0xb0] sm:$0xff]
        %v4328 = vld [vmem:[%s1617 + $0xb8] sm:$0xff]
        %v4329 = vld [vmem:[%s1617 + $0xc0] sm:$0xff]
        %v4330 = vld [vmem:[%s1617 + $0xc8] sm:$0xff]
        %v4331 = vld [vmem:[%s1617 + $0xd0] sm:$0xff]
        %v4332 = vld [vmem:[%s1617 + $0xd8] sm:$0xff]
        %v4333 = vld [vmem:[%s1617 + $0xe0] sm:$0xff]
        %v4334 = vld [vmem:[%s1617 + $0xe8] sm:$0xff]
        %v4335 = vld [vmem:[%s1617 + $0xf0] sm:$0xff]
        %v4336 = vld [vmem:[%s1617 + $0xf8] sm:$0xff]
        %v4337 = vld [vmem:[%s1617 + $0x100] sm:$0xff]
        %v4338 = vld [vmem:[%s1617 + $0x108] sm:$0xff]
        %v4339 = vld [vmem:[%s1617 + $0x110] sm:$0xff]
        %v4340 = vld [vmem:[%s1617 + $0x118] sm:$0xff]
        %v4341 = vld [vmem:[%s1617 + $0x120] sm:$0xff]
        %v4342 = vld [vmem:[%s1617 + $0x128] sm:$0xff]
        %v4343 = vld [vmem:[%s1617 + $0x130] sm:$0xff]
        %v4344 = vld [vmem:[%s1617 + $0x138] sm:$0xff]
        %v4345 = vld [vmem:[%s1617 + $0x140] sm:$0xff]
        %v4346 = vld [vmem:[%s1617 + $0x148] sm:$0xff]
        %v4347 = vld [vmem:[%s1617 + $0x150] sm:$0xff]
        %v4348 = vld [vmem:[%s1617 + $0x158] sm:$0xff]
        %v4349 = vld [vmem:[%s1617 + $0x160] sm:$0xff]
        %v4350 = vld [vmem:[%s1617 + $0x168] sm:$0xff]
        %v4351 = vld [vmem:[%s1617 + $0x170] sm:$0xff]
        %v4352 = vld [vmem:[%s1617 + $0x178] sm:$0xff]
        %v4353 = vld [vmem:[%s1617 + $0x180] sm:$0xff]
        %v4354 = vld [vmem:[%s1617 + $0x188] sm:$0xff]
        %v4355 = vld [vmem:[%s1617 + $0x190] sm:$0xff]
        %v4356 = vld [vmem:[%s1617 + $0x198] sm:$0xff]
        %v4357 = vld [vmem:[%s1617 + $0x1a0] sm:$0xff]
        %v4358 = vld [vmem:[%s1617 + $0x1a8] sm:$0xff]
        %v4359 = vld [vmem:[%s1617 + $0x1b0] sm:$0xff]
        %v4360 = vld [vmem:[%s1617 + $0x1b8] sm:$0xff]
        %v4361 = vld [vmem:[%s1617 + $0x1c0] sm:$0xff]
        %v4362 = vld [vmem:[%s1617 + $0x1c8] sm:$0xff]
        %v4363 = vld [vmem:[%s1617 + $0x1d0] sm:$0xff]
        %v4364 = vld [vmem:[%s1617 + $0x1d8] sm:$0xff]
        %v4365 = vld [vmem:[%s1617 + $0x1e0] sm:$0xff]
        %v4366 = vld [vmem:[%s1617 + $0x1e8] sm:$0xff]
        %v4367 = vld [vmem:[%s1617 + $0x1f0] sm:$0xff]
        %v4368 = vld [vmem:[%s1617 + $0x1f8] sm:$0xff]
        %4369 = vmatprep.subr.mxu0 %v4306
        %4370 = vmatpush1.msra.mxu0 %v4305
        %4371 = vmatprep.subr.mxu0 %v4308
        %4372 = vmatpush1.msra.mxu0 %v4307
        %4373 = vmatprep.subr.mxu0 %v4310
        %4374 = vmatpush1.msra.mxu0 %v4309
        %4375 = vmatprep.subr.mxu0 %v4312
        %4376 = vmatpush1.msra.mxu0 %v4311
        %4377 = vmatprep.subr.mxu0 %v4314
        %4378 = vmatpush1.msra.mxu0 %v4313
        %4379 = vmatprep.subr.mxu0 %v4316
        %4380 = vmatpush1.msra.mxu0 %v4315
        %4381 = vmatprep.subr.mxu0 %v4318
        %4382 = vmatpush1.msra.mxu0 %v4317
        %4383 = vmatprep.subr.mxu0 %v4320
        %4384 = vmatpush1.msra.mxu0 %v4319
        %4385 = vmatprep.subr.mxu0 %v4322
        %4386 = vmatpush1.msra.mxu0 %v4321
        %4387 = vmatprep.subr.mxu0 %v4324
        %4388 = vmatpush1.msra.mxu0 %v4323
        %4389 = vmatprep.subr.mxu0 %v4326
        %4390 = vmatpush1.msra.mxu0 %v4325
        %4391 = vmatprep.subr.mxu0 %v4328
        %4392 = vmatpush1.msra.mxu0 %v4327
        %4393 = vmatprep.subr.mxu0 %v4330
        %4394 = vmatpush1.msra.mxu0 %v4329
        %4395 = vmatprep.subr.mxu0 %v4332
        %4396 = vmatpush1.msra.mxu0 %v4331
        %4397 = vmatprep.subr.mxu0 %v4334
        %4398 = vmatpush1.msra.mxu0 %v4333
        %4399 = vmatprep.subr.mxu0 %v4336
        %4400 = vmatpush1.msra.mxu0 %v4335
        %4401 = vmatprep.subr.mxu0 %v4338
        %4402 = vmatpush1.msra.mxu0 %v4337
        %4403 = vmatprep.subr.mxu0 %v4340
        %4404 = vmatpush1.msra.mxu0 %v4339
        %4405 = vmatprep.subr.mxu0 %v4342
        %4406 = vmatpush1.msra.mxu0 %v4341
        %4407 = vmatprep.subr.mxu0 %v4344
        %4408 = vmatpush1.msra.mxu0 %v4343
        %4409 = vmatprep.subr.mxu0 %v4346
        %4410 = vmatpush1.msra.mxu0 %v4345
        %4411 = vmatprep.subr.mxu0 %v4348
        %4412 = vmatpush1.msra.mxu0 %v4347
        %4413 = vmatprep.subr.mxu0 %v4350
        %4414 = vmatpush1.msra.mxu0 %v4349
        %4415 = vmatprep.subr.mxu0 %v4352
        %4416 = vmatpush1.msra.mxu0 %v4351
        %4417 = vmatprep.subr.mxu0 %v4354
        %4418 = vmatpush1.msra.mxu0 %v4353
        %4419 = vmatprep.subr.mxu0 %v4356
        %4420 = vmatpush1.msra.mxu0 %v4355
        %4421 = vmatprep.subr.mxu0 %v4358
        %4422 = vmatpush1.msra.mxu0 %v4357
        %4423 = vmatprep.subr.mxu0 %v4360
        %4424 = vmatpush1.msra.mxu0 %v4359
        %4425 = vmatprep.subr.mxu0 %v4362
        %4426 = vmatpush1.msra.mxu0 %v4361
        %4427 = vmatprep.subr.mxu0 %v4364
        %4428 = vmatpush1.msra.mxu0 %v4363
        %4429 = vmatprep.subr.mxu0 %v4366
        %4430 = vmatpush1.msra.mxu0 %v4365
        %4431 = vmatprep.subr.mxu0 %v4368
        %4432 = vmatpush1.msra.mxu0 %v4367
        %4433 = vmatprep.mubr.f32.mxu0 %v3208
        %4434 = vmatmul.mubr.f32.gmra.mrb[0].mxu0 %v3207
        %v4435 = vpop.f32.mrb[0].mxu0
        %v4436 = vadd.f32 0.0, %v4435
        %v4437 = vpop.f32.mrb[0].mxu0
        %v4438 = vadd.f32 0.0, %v4437
        %4439 = vdwg.mxu0
        %4440 = vst [vmem:[#allocation3 + $0x80] sm:$0xff] %v4436
        %4441 = vst [vmem:[#allocation3 + $0x88] sm:$0xff] %v4438
        %s4442 = scalar_lea.vmem [#allocation8], 16
        %v4443 = vld [vmem:[%s4442] sm:$0xff]
        %v4444 = vld [vmem:[#allocation3] sm:$0xff]
        %v4445 = vld [vmem:[#allocation3 + $0x8] sm:$0xff]
        %v4446 = vld [vmem:[#allocation3 + $0x10] sm:$0xff]
        %v4447 = vld [vmem:[#allocation3 + $0x18] sm:$0xff]
        %v4448 = vld [vmem:[#allocation3 + $0x20] sm:$0xff]
        %v4449 = vld [vmem:[#allocation3 + $0x28] sm:$0xff]
        %v4450 = vld [vmem:[#allocation3 + $0x30] sm:$0xff]
        %v4451 = vld [vmem:[#allocation3 + $0x38] sm:$0xff]
        %v4452 = vld [vmem:[#allocation3 + $0x40] sm:$0xff]
        %v4453 = vld [vmem:[#allocation3 + $0x48] sm:$0xff]
        %v4454 = vld [vmem:[#allocation3 + $0x50] sm:$0xff]
        %v4455 = vld [vmem:[#allocation3 + $0x58] sm:$0xff]
        %v4456 = vld [vmem:[#allocation3 + $0x60] sm:$0xff]
        %v4457 = vld [vmem:[#allocation3 + $0x68] sm:$0xff]
        %v4458 = vld [vmem:[#allocation3 + $0x70] sm:$0xff]
        %v4459 = vld [vmem:[#allocation3 + $0x78] sm:$0xff]
        %v4460 = vld [vmem:[#allocation3 + $0x80] sm:$0xff]
        %v4461 = vld [vmem:[#allocation3 + $0x88] sm:$0xff]
        %s4462 = scalar_lea.vmem %s5, 16
        %v4463 = vld [vmem:[%s4462] sm:$0xff]
        %4465 = vset.pattern.permute.xlu0 0
        %4466 = vperm.xlu0 %4465, %v4463
        %v4467 = vpop.permute.xlu0 %4466
        %v4470 = vsel %vm1780, %v4443, 0
        %4472 = vmatprep.subr.mxu0 %v4445
        %4473 = vmatpush1.msra.mxu0 %v4444
        %4474 = vmatprep.subr.mxu0 %v4447
        %4475 = vmatpush1.msra.mxu0 %v4446
        %4476 = vmatprep.subr.mxu0 %v4449
        %4477 = vmatpush1.msra.mxu0 %v4448
        %4478 = vmatprep.subr.mxu0 %v4451
        %4479 = vmatpush1.msra.mxu0 %v4450
        %4480 = vmatprep.subr.mxu0 %v4453
        %4481 = vmatpush1.msra.mxu0 %v4452
        %4482 = vmatprep.subr.mxu0 %v4455
        %4483 = vmatpush1.msra.mxu0 %v4454
        %4484 = vmatprep.subr.mxu0 %v4457
        %4485 = vmatpush1.msra.mxu0 %v4456
        %4486 = vmatprep.subr.mxu0 %v4459
        %4487 = vmatpush1.msra.mxu0 %v4458
        %4488 = vmatprep.subr.mxu0 %v4461
        %4489 = vmatpush1.msra.mxu0 %v4460
        %4490 = vmatprep.subr.mxu0 0.0
        %4491 = vmatpush1.msra.mxu0 0.0
        %4492 = vmatprep.subr.mxu0 0.0
        %4493 = vmatpush1.msra.mxu0 0.0
        %4494 = vmatprep.subr.mxu0 0.0
        %4495 = vmatpush1.msra.mxu0 0.0
        %4496 = vmatprep.subr.mxu0 0.0
        %4497 = vmatpush1.msra.mxu0 0.0
        %4498 = vmatprep.subr.mxu0 0.0
        %4499 = vmatpush1.msra.mxu0 0.0
        %4500 = vmatprep.subr.mxu0 0.0
        %4501 = vmatpush1.msra.mxu0 0.0
        %4502 = vmatprep.subr.mxu0 0.0
        %4503 = vmatpush1.msra.mxu0 0.0
        %4504 = vmatprep.subr.mxu0 0.0
        %4505 = vmatpush1.msra.mxu0 0.0
        %4506 = vmatprep.subr.mxu0 0.0
        %4507 = vmatpush1.msra.mxu0 0.0
        %4508 = vmatprep.subr.mxu0 0.0
        %4509 = vmatpush1.msra.mxu0 0.0
        %4510 = vmatprep.subr.mxu0 0.0
        %4511 = vmatpush1.msra.mxu0 0.0
        %4512 = vmatprep.subr.mxu0 0.0
        %4513 = vmatpush1.msra.mxu0 0.0
        %4514 = vmatprep.subr.mxu0 0.0
        %4515 = vmatpush1.msra.mxu0 0.0
        %4516 = vmatprep.subr.mxu0 0.0
        %4517 = vmatpush1.msra.mxu0 0.0
        %4518 = vmatprep.subr.mxu0 0.0
        %4519 = vmatpush1.msra.mxu0 0.0
        %4520 = vmatprep.subr.mxu0 0.0
        %4521 = vmatpush1.msra.mxu0 0.0
        %4522 = vmatprep.subr.mxu0 0.0
        %4523 = vmatpush1.msra.mxu0 0.0
        %4524 = vmatprep.subr.mxu0 0.0
        %4525 = vmatpush1.msra.mxu0 0.0
        %4526 = vmatprep.subr.mxu0 0.0
        %4527 = vmatpush1.msra.mxu0 0.0
        %4528 = vmatprep.subr.mxu0 0.0
        %4529 = vmatpush1.msra.mxu0 0.0
        %4530 = vmatprep.subr.mxu0 0.0
        %4531 = vmatpush1.msra.mxu0 0.0
        %4532 = vmatprep.subr.mxu0 0.0
        %4533 = vmatpush1.msra.mxu0 0.0
        %4534 = vmatprep.subr.mxu0 0.0
        %4535 = vmatpush1.msra.mxu0 0.0
        %4536 = vmatprep.mubr.f32.mxu0 0.0
        %4537 = vmatmul.mubr.f32.gmra.mrb[0].mxu0 %v4470
        %v4538 = vpop.f32.mrb[0].mxu0
        %v4539 = vadd.f32 %v4467, %v4538
        %v4540 = vpop.f32.mrb[0].mxu0
        %v4541 = vadd.f32 %v4467, %v4540
        %4542 = vdwg.mxu0
        %v4543 = vmax.f32 %v4539, 0.0
        %v4544 = vmax.f32 %v4541, 0.0
        %4545 = vst [vmem:[#allocation2 + $0x20] sm:$0xff] %v4543
        %4546 = vst [vmem:[#allocation2 + $0x28] sm:$0xff] %v4544
        %v4547 = vld [vmem:[%s6] sm:$0xff]
        %v4548 = vld [vmem:[%s6 + $0x8] sm:$0xff]
        %v4549 = vld [vmem:[%s6 + $0x10] sm:$0xff]
        %v4550 = vld [vmem:[%s6 + $0x18] sm:$0xff]
        %v4551 = vld [vmem:[%s6 + $0x20] sm:$0xff]
        %v4552 = vld [vmem:[%s6 + $0x28] sm:$0xff]
        %v4553 = vld [vmem:[%s6 + $0x30] sm:$0xff]
        %v4554 = vld [vmem:[%s6 + $0x38] sm:$0xff]
        %v4555 = vld [vmem:[#allocation2] sm:$0xff]
        %v4556 = vld [vmem:[#allocation2 + $0x8] sm:$0xff]
        %v4557 = vld [vmem:[#allocation2 + $0x10] sm:$0xff]
        %v4558 = vld [vmem:[#allocation2 + $0x18] sm:$0xff]
        %v4559 = vld [vmem:[#allocation2 + $0x20] sm:$0xff]
        %v4560 = vld [vmem:[#allocation2 + $0x28] sm:$0xff]
        %v4561 = vld [vmem:[#allocation2 + $0x30] sm:$0xff]
        %v4562 = vld [vmem:[#allocation2 + $0x38] sm:$0xff]
        %v4563 = vld [vmem:[%s7] sm:$0xff]
        %v4564 = vld [vmem:[%s7 + $0x8] sm:$0xff]
        %v4565 = vld [vmem:[%s7 + $0x10] sm:$0xff]
        %v4566 = vld [vmem:[%s7 + $0x18] sm:$0xff]
        %v4567 = vld [vmem:[%s7 + $0x20] sm:$0xff]
        %v4568 = vld [vmem:[%s7 + $0x28] sm:$0xff]
        %v4569 = vld [vmem:[%s7 + $0x30] sm:$0xff]
        %v4570 = vld [vmem:[%s7 + $0x38] sm:$0xff]
        %4572 = vset.pattern.permute.xlu0 0
        %4573 = vperm.xlu0 %4572, %v4563
        %v4574 = vpop.permute.xlu0 %4573
        %4577 = vset.pattern.permute.xlu0 0
        %4578 = vperm.xlu0 %4577, %v4564
        %v4579 = vpop.permute.xlu0 %4578
        %4582 = vset.pattern.permute.xlu0 0
        %4583 = vperm.xlu0 %4582, %v4565
        %v4584 = vpop.permute.xlu0 %4583
        %4587 = vset.pattern.permute.xlu0 0
        %4588 = vperm.xlu0 %4587, %v4566
        %v4589 = vpop.permute.xlu0 %4588
        %4592 = vset.pattern.permute.xlu0 0
        %4593 = vperm.xlu0 %4592, %v4567
        %v4594 = vpop.permute.xlu0 %4593
        %4597 = vset.pattern.permute.xlu0 0
        %4598 = vperm.xlu0 %4597, %v4568
        %v4599 = vpop.permute.xlu0 %4598
        %4602 = vset.pattern.permute.xlu0 0
        %4603 = vperm.xlu0 %4602, %v4569
        %v4604 = vpop.permute.xlu0 %4603
        %4607 = vset.pattern.permute.xlu0 0
        %4608 = vperm.xlu0 %4607, %v4570
        %v4609 = vpop.permute.xlu0 %4608
        %vm4611 = vcmask 261120
        %v4613 = vsel %vm4611, %v4547, 0
        %v4616 = vsel %vm4611, %v4548, 0
        %v4619 = vsel %vm4611, %v4549, 0
        %v4622 = vsel %vm4611, %v4550, 0
        %v4625 = vsel %vm4611, %v4551, 0
        %v4628 = vsel %vm4611, %v4552, 0
        %v4631 = vsel %vm4611, %v4553, 0
        %v4634 = vsel %vm4611, %v4554, 0
        %4636 = vmatprep.subr.mxu0 %v4556
        %4637 = vmatpush1.msra.mxu0 %v4555
        %4638 = vmatprep.subr.mxu0 %v4558
        %4639 = vmatpush1.msra.mxu0 %v4557
        %4640 = vmatprep.subr.mxu0 %v4560
        %4641 = vmatpush1.msra.mxu0 %v4559
        %4642 = vmatprep.subr.mxu0 %v4562
        %4643 = vmatpush1.msra.mxu0 %v4561
        %4644 = vmatprep.subr.mxu0 0.0
        %4645 = vmatpush1.msra.mxu0 0.0
        %4646 = vmatprep.subr.mxu0 0.0
        %4647 = vmatpush1.msra.mxu0 0.0
        %4648 = vmatprep.subr.mxu0 0.0
        %4649 = vmatpush1.msra.mxu0 0.0
        %4650 = vmatprep.subr.mxu0 0.0
        %4651 = vmatpush1.msra.mxu0 0.0
        %4652 = vmatprep.subr.mxu0 0.0
        %4653 = vmatpush1.msra.mxu0 0.0
        %4654 = vmatprep.subr.mxu0 0.0
        %4655 = vmatpush1.msra.mxu0 0.0
        %4656 = vmatprep.subr.mxu0 0.0
        %4657 = vmatpush1.msra.mxu0 0.0
        %4658 = vmatprep.subr.mxu0 0.0
        %4659 = vmatpush1.msra.mxu0 0.0
        %4660 = vmatprep.subr.mxu0 0.0
        %4661 = vmatpush1.msra.mxu0 0.0
        %4662 = vmatprep.subr.mxu0 0.0
        %4663 = vmatpush1.msra.mxu0 0.0
        %4664 = vmatprep.subr.mxu0 0.0
        %4665 = vmatpush1.msra.mxu0 0.0
        %4666 = vmatprep.subr.mxu0 0.0
        %4667 = vmatpush1.msra.mxu0 0.0
        %4668 = vmatprep.subr.mxu0 0.0
        %4669 = vmatpush1.msra.mxu0 0.0
        %4670 = vmatprep.subr.mxu0 0.0
        %4671 = vmatpush1.msra.mxu0 0.0
        %4672 = vmatprep.subr.mxu0 0.0
        %4673 = vmatpush1.msra.mxu0 0.0
        %4674 = vmatprep.subr.mxu0 0.0
        %4675 = vmatpush1.msra.mxu0 0.0
        %4676 = vmatprep.subr.mxu0 0.0
        %4677 = vmatpush1.msra.mxu0 0.0
        %4678 = vmatprep.subr.mxu0 0.0
        %4679 = vmatpush1.msra.mxu0 0.0
        %4680 = vmatprep.subr.mxu0 0.0
        %4681 = vmatpush1.msra.mxu0 0.0
        %4682 = vmatprep.subr.mxu0 0.0
        %4683 = vmatpush1.msra.mxu0 0.0
        %4684 = vmatprep.subr.mxu0 0.0
        %4685 = vmatpush1.msra.mxu0 0.0
        %4686 = vmatprep.subr.mxu0 0.0
        %4687 = vmatpush1.msra.mxu0 0.0
        %4688 = vmatprep.subr.mxu0 0.0
        %4689 = vmatpush1.msra.mxu0 0.0
        %4690 = vmatprep.subr.mxu0 0.0
        %4691 = vmatpush1.msra.mxu0 0.0
        %4692 = vmatprep.subr.mxu0 0.0
        %4693 = vmatpush1.msra.mxu0 0.0
        %4694 = vmatprep.subr.mxu0 0.0
        %4695 = vmatpush1.msra.mxu0 0.0
        %4696 = vmatprep.subr.mxu0 0.0
        %4697 = vmatpush1.msra.mxu0 0.0
        %4698 = vmatprep.subr.mxu0 0.0
        %4699 = vmatpush1.msra.mxu0 0.0
        %4700 = vmatprep.mubr.f32.mxu0 0.0
        %4701 = vmatmul.mubr.f32.gmra.mrb[0].mxu0 %v4613
        %v4702 = vpop.f32.mrb[0].mxu0
        %v4703 = vadd.f32 %v4574, %v4702
        %v4704 = vpop.f32.mrb[0].mxu0
        %v4705 = vadd.f32 %v4574, %v4704
        %4706 = vmatprep.mubr.f32.mxu0 0.0
        %4707 = vmatmul.mubr.f32.gmra.mrb[0].mxu0 %v4616
        %v4708 = vpop.f32.mrb[0].mxu0
        %v4709 = vadd.f32 %v4579, %v4708
        %v4710 = vpop.f32.mrb[0].mxu0
        %v4711 = vadd.f32 %v4579, %v4710
        %4712 = vmatprep.mubr.f32.mxu0 0.0
        %4713 = vmatmul.mubr.f32.gmra.mrb[0].mxu0 %v4619
        %v4714 = vpop.f32.mrb[0].mxu0
        %v4715 = vadd.f32 %v4584, %v4714
        %v4716 = vpop.f32.mrb[0].mxu0
        %v4717 = vadd.f32 %v4584, %v4716
        %4718 = vmatprep.mubr.f32.mxu0 0.0
        %4719 = vmatmul.mubr.f32.gmra.mrb[0].mxu0 %v4622
        %v4720 = vpop.f32.mrb[0].mxu0
        %v4721 = vadd.f32 %v4589, %v4720
        %v4722 = vpop.f32.mrb[0].mxu0
        %v4723 = vadd.f32 %v4589, %v4722
        %4724 = vmatprep.mubr.f32.mxu0 0.0
        %4725 = vmatmul.mubr.f32.gmra.mrb[0].mxu0 %v4625
        %v4726 = vpop.f32.mrb[0].mxu0
        %v4727 = vadd.f32 %v4594, %v4726
        %v4728 = vpop.f32.mrb[0].mxu0
        %v4729 = vadd.f32 %v4594, %v4728
        %4730 = vmatprep.mubr.f32.mxu0 0.0
        %4731 = vmatmul.mubr.f32.gmra.mrb[0].mxu0 %v4628
        %v4732 = vpop.f32.mrb[0].mxu0
        %v4733 = vadd.f32 %v4599, %v4732
        %v4734 = vpop.f32.mrb[0].mxu0
        %v4735 = vadd.f32 %v4599, %v4734
        %4736 = vmatprep.mubr.f32.mxu0 0.0
        %4737 = vmatmul.mubr.f32.gmra.mrb[0].mxu0 %v4631
        %v4738 = vpop.f32.mrb[0].mxu0
        %v4739 = vadd.f32 %v4604, %v4738
        %v4740 = vpop.f32.mrb[0].mxu0
        %v4741 = vadd.f32 %v4604, %v4740
        %4742 = vmatprep.mubr.f32.mxu0 0.0
        %4743 = vmatmul.mubr.f32.gmra.mrb[0].mxu0 %v4634
        %v4744 = vpop.f32.mrb[0].mxu0
        %v4745 = vadd.f32 %v4609, %v4744
        %v4746 = vpop.f32.mrb[0].mxu0
        %v4747 = vadd.f32 %v4609, %v4746
        %4748 = vdwg.mxu0
        %v4749 = vadd.f32 %v4703, %v350
        %v4750 = vadd.f32 %v4705, %v351
        %v4751 = vadd.f32 %v4709, %v352
        %v4752 = vadd.f32 %v4711, %v353
        %v4753 = vadd.f32 %v4715, %v354
        %v4754 = vadd.f32 %v4717, %v355
        %v4755 = vadd.f32 %v4721, %v356
        %v4756 = vadd.f32 %v4723, %v357
        %v4757 = vadd.f32 %v4727, %v358
        %v4758 = vadd.f32 %v4729, %v359
        %v4759 = vadd.f32 %v4733, %v360
        %v4760 = vadd.f32 %v4735, %v361
        %v4761 = vadd.f32 %v4739, %v362
        %v4762 = vadd.f32 %v4741, %v363
        %v4763 = vadd.f32 %v4745, %v364
        %v4764 = vadd.f32 %v4747, %v365
        %v4765 = vmax.f32 %v4749, 0.0
        %v4766 = vmax.f32 %v4750, 0.0
        %v4767 = vmax.f32 %v4751, 0.0
        %v4768 = vmax.f32 %v4752, 0.0
        %v4769 = vmax.f32 %v4753, 0.0
        %v4770 = vmax.f32 %v4754, 0.0
        %v4771 = vmax.f32 %v4755, 0.0
        %v4772 = vmax.f32 %v4756, 0.0
        %v4773 = vmax.f32 %v4757, 0.0
        %v4774 = vmax.f32 %v4758, 0.0
        %v4775 = vmax.f32 %v4759, 0.0
        %v4776 = vmax.f32 %v4760, 0.0
        %v4777 = vmax.f32 %v4761, 0.0
        %v4778 = vmax.f32 %v4762, 0.0
        %v4779 = vmax.f32 %v4763, 0.0
        %v4780 = vmax.f32 %v4764, 0.0
        %4781 = vst [vmem:[%s349] sm:$0xff] %v4765
        %4782 = vst [vmem:[%s349 + $0x8] sm:$0xff] %v4766
        %4783 = vst [vmem:[%s349 + $0x10] sm:$0xff] %v4767
        %4784 = vst [vmem:[%s349 + $0x18] sm:$0xff] %v4768
        %4785 = vst [vmem:[%s349 + $0x20] sm:$0xff] %v4769
        %4786 = vst [vmem:[%s349 + $0x28] sm:$0xff] %v4770
        %4787 = vst [vmem:[%s349 + $0x30] sm:$0xff] %v4771
        %4788 = vst [vmem:[%s349 + $0x38] sm:$0xff] %v4772
        %4789 = vst [vmem:[%s349 + $0x40] sm:$0xff] %v4773
        %4790 = vst [vmem:[%s349 + $0x48] sm:$0xff] %v4774
        %4791 = vst [vmem:[%s349 + $0x50] sm:$0xff] %v4775
        %4792 = vst [vmem:[%s349 + $0x58] sm:$0xff] %v4776
        %4793 = vst [vmem:[%s349 + $0x60] sm:$0xff] %v4777
        %4794 = vst [vmem:[%s349 + $0x68] sm:$0xff] %v4778
        %4795 = vst [vmem:[%s349 + $0x70] sm:$0xff] %v4779
        %4796 = vst [vmem:[%s349 + $0x78] sm:$0xff] %v4780
        %p4797 = scmp.lt.s32.totalorder %s21, 1
        %s4798 = scalar_select %p4797, %s21, 1
        %s4799 = smul.addr %s4798, 16
        %s4800 = smul.addr %s4799, 8
        %s4801 = scalar_lea.vmem %s8, %s4800
        // Predicated region
        $region65: #{bottle2neck_forward.1} parent=51 // pred_check
          %p4802 = pneg %p212
        $region66: #{bottle2neck_forward.1} parent=51 // pred_check_branch
          %4804 = sbr.rel (%p4802) target = $region68
        $region67: #{bottle2neck_forward.1} parent=51 // pred_region
          _
        $region68: #{bottle2neck_forward.1} parent=51 // pred_fallthru
          _
      $region52: #{bottle2neck_forward.1} parent=5 // pred_fallthru
        _
      %p4805 = scmp.le.s32.totalorder 2, %s16
      // Predicated region
      $region69: #{bottle2neck_forward.1} parent=5 // pred_check
        %p4806 = pneg %p4805
      $region70: #{bottle2neck_forward.1} parent=5 // pred_check_branch
        %4808 = sbr.rel (%p4806) target = $region72
      $region71: #{bottle2neck_forward.1} parent=5 // pred_region
        %s4809 = ssub.s32 %s16, 2
        // Predicated region
        $region73: #{bottle2neck_forward.1} parent=71 // pred_check
          %p4810 = pneg %p218
        $region74: #{bottle2neck_forward.1} parent=71 // pred_check_branch
          %4812 = sbr.rel (%p4810) target = $region76
        $region75: #{bottle2neck_forward.1} parent=71 // pred_region
          %p4813 = scmp.lt.s32.totalorder %s22, 1
          %s4814 = scalar_select %p4813, %s22, 1
          %s4815 = smul.addr %s4814, 16
          %s4816 = smul.addr %s4815, 8
          %s4817 = scalar_lea.vmem %s8, %s4816
        $region76: #{bottle2neck_forward.1} parent=71 // pred_fallthru
          _
      $region72: #{bottle2neck_forward.1} parent=5 // pred_fallthru
        _
    $region6: #{bottle2neck_forward.1} parent=1 // loop_footer
      %s20 = sadd.s32 1, %s16
    $region7: #{bottle2neck_forward.1} parent=1 // loop_footer_branch
      %15 = sbr.rel target = $region3
    $region8: #{bottle2neck_forward.1} parent=1 // loop_exit
      _
    %4818 = vsyncpa [#allocation5], 1
    %s4819 = scalar_lea.sflag [#allocation5], 1
    %4820 = vsyncpa %s4819, 1
    %4821 = vsyncpa [#allocation7], 1

</llo_original>
